<compile_context>
chip_gen: v6e
topology: v6e:2x2x1
jax: 0.10.0
libtpu: 0.0.40
codegen_flags: <defaults>
</compile_context>

<pallas_src>
import functools

import jax
import jax.numpy as jnp
import numpy as np
from jax.experimental import pallas as pl
from jax.experimental.pallas import tpu as pltpu


def _round_up(x, m):
    return ((x + m - 1) // m) * m


def _vmem_capacity_bytes():
    """Per-TensorCore VMEM capacity; conservative fallback if the query fails."""
    try:
        return int(pltpu.get_tpu_info().vmem_capacity_bytes)
    except Exception:
        return 64 * 1024 * 1024          # v7x-sized fallback (safe on all gens)


def _choose_tile_d(D, c, nw_pad, nh_pad, Hp, WRp, in_itemsize, budget_bytes):
    """Pick TILE_D (multiple of 8) minimizing padded-disparity waste, then steps.

    TILE_D is kept a multiple of 8 so per-tile disparity offsets are
    sublane-tile aligned; candidates up to 64 exploit the 128-MiB VMEM parts
    (v5e/v6e), while the VMEM budget (derived from the detected generation)
    keeps v7x's 64 MiB happy.
    """
    d_ceil = _round_up(D, 8)
    best = None
    for cand in (64, 32, 16, 8):
        if cand > d_ceil:
            continue
        d_pad = _round_up(D, cand)
        WLp = WRp + d_pad - 1
        inputs = 2 * c * Hp * (WLp + WRp) * in_itemsize   # double-buffered in blocks
        output = 2 * cand * nw_pad * nh_pad * 4           # double-buffered out block
        # Rough footprint of the live in-kernel f32 planes (l/r channels, phase
        # copies, squared sums, box planes, cross/matmul temps, band).
        values = 4 * ((3 * c + 5) * (WRp + cand) * Hp
                      + (3 * (nw_pad + cand) + Hp) * nh_pad)
        if inputs + output + values > budget_bytes:
            continue
        # Penalize round_up(D, cand) overshoot (dead disparities) first, then
        # prefer the largest tile (fewer grid steps, better amortization).
        key = (d_pad, -cand)
        if best is None or key < best[0]:
            best = (key, cand)
    if best is not None:
        return best[1]
    # TODO(synk): add an output-height (lane) grid axis with a kH-1 halo for
    # frames whose inputs alone exceed the VMEM budget; TILE_D=8 is the floor.
    return 8


def _ssd_cost_volume_kernel(lp_ref, rp_ref, band_ref, out_ref, *, C, TILE_D,
                            kW, nw_pad, WRp):
    # lp_ref  : (1, C, WLp, Hp)     left  (disparity pad + unfold pad + align pad)
    # rp_ref  : (1, C, WRp, Hp)     right (unfold pad + align pad)
    # band_ref: (Hp, nh_pad) bf16   banded-ones height box filter (exact 0/1)
    # out_ref : (1, TILE_D, nw_pad, nh_pad)
    # Layout: image width on sublanes (second-to-last), height on lanes (last).
    WL_loc = WRp + TILE_D - 1
    d0 = pl.multiple_of(pl.program_id(1) * TILE_D, TILE_D)  # sublane-aligned
    band = band_ref[...]                                     # (Hp, nh_pad) bf16

    def box_h(p):
        # kH sliding sum along lanes as a banded-ones matmul on the MXU.  The
        # exact hi/lo bf16 split keeps ~f32 accuracy regardless of the MXU's
        # default f32 matmul precision (band entries are exact in bf16, the
        # contraction axis is real zeros beyond the image).
        p_hi = p.astype(jnp.bfloat16)
        p_lo = (p - p_hi.astype(jnp.float32)).astype(jnp.bfloat16)
        return (jnp.dot(p_hi, band, preferred_element_type=jnp.float32)
                + jnp.dot(p_lo, band, preferred_element_type=jnp.float32))

    def box_w(x, out_w):
        # kW sliding sum along sublanes via log-depth doubling partial sums
        # (~log2(kW)+popcount(kW)-1 shift+adds instead of kW-1 sequential).
        windows = {1: x}
        w, cur = 1, x
        while 2 * w <= kW:
            n = cur.shape[0]
            cur = cur[: n - w] + cur[w:]
            w *= 2
            windows[w] = cur
        res, off = None, 0
        for w in sorted(windows, reverse=True):
            if kW & w:
                seg = windows[w][off: off + out_w]
                res = seg if res is None else res + seg
                off += w
        return res

    def box(p, out_w):
        # Height pass first (MXU) so the width pass runs on nh_pad lanes only.
        return box_w(box_h(p), out_w)

    # ---- disparity-independent terms (computed once per disparity tile) ----
    # l_loc / r_loc stay live across the tile by design: they feed both the
    # squared terms and every sublane phase below (footprint is budgeted in
    # _choose_tile_d).
    r_loc = [rp_ref[0, ci].astype(jnp.float32) for ci in range(C)]
    l_loc = [lp_ref[0, ci, pl.ds(d0, WL_loc), :].astype(jnp.float32)
             for ci in range(C)]
    sr2 = r_loc[0] * r_loc[0]
    sl2 = l_loc[0] * l_loc[0]
    for ci in range(1, C):
        sr2 = sr2 + r_loc[ci] * r_loc[ci]
        sl2 = sl2 + l_loc[ci] * l_loc[ci]
    box_r2 = box(sr2, nw_pad)                        # (nw_pad, nh_pad)
    box_l2 = box(sl2, nw_pad + TILE_D - 1)           # (nw_pad+TILE_D-1, nh_pad)

    # ---- per-disparity cross terms, grouped by sublane phase r = dl % 8 ----
    n_phase = min(8, TILE_D)
    n_q = TILE_D // n_phase
    w_phase = WRp + TILE_D - n_phase
    bl2_w_phase = nw_pad + TILE_D - n_phase
    for r in range(n_phase):
        # One sublane-shifted copy per channel (and of box_l2) per phase; each
        # is reused by the TILE_D/8 disparities of this phase (8x amortized vs
        # shifting inside the disparity loop).
        l_r = [l_loc[ci][r: r + w_phase, :] for ci in range(C)]
        bl2_r = box_l2[r: r + bl2_w_phase, :]
        for q in range(n_q):
            dl = q * n_phase + r
            o = q * n_phase                  # static, 8-aligned sublane offset
            cross = l_r[0][o: o + WRp, :] * r_loc[0]
            for ci in range(1, C):
                cross = cross + l_r[ci][o: o + WRp, :] * r_loc[ci]
            ssd = bl2_r[o: o + nw_pad, :] + box_r2 - 2.0 * box(cross, nw_pad)
            # Exact SSD is >= 0; the decomposition can dip slightly negative.
            out_ref[0, dl] = jnp.maximum(ssd, 0.0)


def ssd_cost_volume(im_left, im_right, correlation_width,
                    horizontal_radius=3, vertical_radius=3, pad_to_same=True):
    """JAX/Pallas equivalent of SsdCostVolume.forward (compressor=None)."""
    # TODO(synk): the optional `compressor` matmul (None in this configuration)
    # is not implemented.
    b, c, h, w = im_left.shape
    assert im_right.shape == (b, c, h, w)
    D = int(correlation_width)
    if pad_to_same and horizontal_radius != vertical_radius:
        # The PyTorch module's reshape also fails in this case.
        raise ValueError("pad_to_same=True requires horizontal_radius == "
                         "vertical_radius")

    kH = 2 * vertical_radius + 1
    kW = 2 * horizontal_radius + 1
    # nn.Unfold(padding=(hr, vr)) pads H by hr and W by vr — the module's quirk.
    pad_h = horizontal_radius if pad_to_same else 0
    pad_w = vertical_radius if pad_to_same else 0
    nh = h + 2 * pad_h - kH + 1
    nw = w + 2 * pad_w - kW + 1

    # Kernel layout: width on sublanes, height on lanes.
    nh_pad = _round_up(nh, 128)                  # lane-dense output stores
    nw_pad = _round_up(nw, 8)                    # sublane alignment
    Hp = _round_up(nh_pad + kH - 1, 128)         # lane-aligned MXU contraction
    WRp = nw_pad + kW - 1

    capacity = _vmem_capacity_bytes()
    in_itemsize = jnp.dtype(im_left.dtype).itemsize
    TILE_D = _choose_tile_d(D, c, nw_pad, nh_pad, Hp, WRp, in_itemsize,
                            budget_bytes=int(0.55 * capacity))
    D_pad = _round_up(D, TILE_D)
    n_dt = D_pad // TILE_D
    WLp = WRp + D_pad - 1

    # (b, c, W, H) layout + zero padding.  Padding beyond the module's own
    # ZeroPad2d / Unfold padding only feeds output rows/cols/disparities that
    # are cropped below.  Inputs keep their source dtype (f32 cast in-kernel).
    lt = jnp.swapaxes(im_left, 2, 3)
    rt = jnp.swapaxes(im_right, 2, 3)
    lp = jnp.pad(lt, ((0, 0), (0, 0),
                      (pad_w, WLp - w - pad_w), (pad_h, Hp - h - pad_h)))
    rp = jnp.pad(rt, ((0, 0), (0, 0),
                      (pad_w, WRp - w - pad_w), (pad_h, Hp - h - pad_h)))

    # Banded-ones matrix for the kH height box filter (exact 0/1 in bf16).
    row = jnp.arange(Hp)[:, None]
    col = jnp.arange(nh_pad)[None, :]
    band = ((row >= col) & (row < col + kH)).astype(jnp.bfloat16)

    kernel = functools.partial(_ssd_cost_volume_kernel, C=c, TILE_D=TILE_D,
                               kW=kW, nw_pad=nw_pad, WRp=WRp)
    out_k = pl.pallas_call(
        kernel,
        out_shape=jax.ShapeDtypeStruct((b, D_pad, nw_pad, nh_pad), jnp.float32),
        grid=(b, n_dt),
        in_specs=[
            # TODO(synk): pipeline_mode=pl.Buffered(1) on the two image inputs
            # (their block index is constant along the disparity-tile axis)
            # would halve input VMEM on v7x; left at default double-buffering.
            pl.BlockSpec((1, c, WLp, Hp), lambda i, j: (i, 0, 0, 0)),
            pl.BlockSpec((1, c, WRp, Hp), lambda i, j: (i, 0, 0, 0)),
            pl.BlockSpec((Hp, nh_pad), lambda i, j: (0, 0)),
        ],
        out_specs=pl.BlockSpec((1, TILE_D, nw_pad, nh_pad),
                               lambda i, j: (i, j, 0, 0)),
        compiler_params=pltpu.CompilerParams(
            dimension_semantics=("parallel", "parallel"),
            vmem_limit_bytes=int(0.8 * capacity)),
    )(lp, rp, band)

    # Crop alignment padding; restore PyTorch output layout (b, nh, nw, D).
    out = out_k[:, :D, :nw, :nh]
    # TODO(synk): this transpose re-reads/re-writes the whole cost volume in
    # HBM; if the consumer can take (b, D, nw, nh) (or fuse the transpose) it
    # should — biggest relative win on v5e/v6e bandwidth.
    return jnp.transpose(out, (0, 3, 2, 1))


# ---------------- pure-JAX reference (mirrors the PyTorch code path) --------
def _unfold_nchw(x, kH, kW, pad_h, pad_w):
    b, c, h, w = x.shape
    xp = jnp.pad(x, ((0, 0), (0, 0), (pad_h, pad_h), (pad_w, pad_w)))
    oh = h + 2 * pad_h - kH + 1
    ow = w + 2 * pad_w - kW + 1
    cols = [xp[:, :, ky:ky + oh, kx:kx + ow]
            for ky in range(kH) for kx in range(kW)]
    return jnp.stack(cols, axis=2).reshape(b, c * kH * kW, oh, ow)


def _reference(im_left, im_right, D, hr, vr):
    kH, kW = 2 * vr + 1, 2 * hr + 1
    left_ext = jnp.pad(im_left, ((0, 0), (0, 0), (0, 0), (0, D - 1)))
    patches_l = _unfold_nchw(left_ext, kH, kW, hr, vr)
    patches_r = _unfold_nchw(im_right, kH, kW, hr, vr)
    nw = patches_r.shape[-1]
    view_left = jnp.stack([patches_l[..., d:d + nw] for d in range(D)],
                          axis=-1)                     # (b, C', nh, nw, D)
    view_right = patches_r[..., None]                  # (b, C', nh, nw, 1)
    return jnp.sum(jnp.square(view_left - view_right), axis=1)


if __name__ == "__main__":
    key = jax.random.PRNGKey(0)
    # (b, c, h, w, correlationWidth D, radius): the first config exercises the
    # sublane-phase amortization (TILE_D=16, n_q=2), the second exercises
    # multiple disparity tiles (TILE_D=8, 3 tiles, nonzero per-tile offset) and
    # a 5x5 correlation window.
    configs = [
        (2, 4, 16, 16, 16, 1),
        (1, 3, 16, 24, 24, 2),
    ]
    for (b, c, h, w, D, rad) in configs:
        key, k1, k2 = jax.random.split(key, 3)
        im_left = jax.random.normal(k1, (b, c, h, w), dtype=jnp.float32)
        im_right = jax.random.normal(k2, (b, c, h, w), dtype=jnp.float32)

        out = ssd_cost_volume(im_left, im_right, D, rad, rad, pad_to_same=True)
        out = jax.block_until_ready(out)
        assert out.shape == (b, h, w, D), out.shape

        ref = _reference(im_left, im_right, D, rad, rad)
        # Tolerance covers (a) the L^2 + R^2 - 2LR decomposition vs diff^2 and
        # (b) the exact hi/lo-bf16 banded-matmul box filter (worst-case abs
        # error here is a few 1e-2 on cost values of O(100)); any real bug
        # produces O(1)-O(100) errors and still trips this check.
        np.testing.assert_allclose(np.asarray(out), np.asarray(ref),
                                   rtol=5e-3, atol=5e-2)
    print("KERNEL_OK")
</pallas_src>

<mosaic_0001>
module attributes {stable_mosaic.version = 11 : i64} {
  func.func @_ssd_cost_volume_kernel(%arg0: i32, %arg1: i32, %arg2: memref<1x4x33x256xf32, #tpu.memory_space<vmem>>, %arg3: memref<1x4x18x256xf32, #tpu.memory_space<vmem>>, %arg4: memref<256x128xbf16, #tpu.memory_space<vmem>>, %arg5: memref<1x16x16x128xf32, #tpu.memory_space<vmem>>) attributes {dimension_semantics = [#tpu.dimension_semantics<parallel>, #tpu.dimension_semantics<parallel>], iteration_bounds = array<i64: 2, 1>, scalar_prefetch = 0 : i64, scratch_operands = 0 : i64, tpu.core_type = #tpu.core_type<tc>, window_params = [{transform_indices = @transform_0, window_bounds = array<i64: 1, 4, 33, 256>}, {transform_indices = @transform_1, window_bounds = array<i64: 1, 4, 18, 256>}, {pipeline_mode = #tpu.pipeline_mode<synchronous>, transform_indices = @transform_2, window_bounds = array<i64: 256, 128>}, {transform_indices = @transform_3, window_bounds = array<i64: 1, 16, 16, 128>}]} {
    %c16_i32 = arith.constant 16 : i32
    %0 = arith.muli %arg1, %c16_i32 : i32
    %1 = tpu.assume_multiple %0, 16 : i32
    %c0 = arith.constant 0 : index
    %c0_0 = arith.constant 0 : index
    %2 = vector.load %arg4[%c0, %c0_0] : memref<256x128xbf16, #tpu.memory_space<vmem>>, vector<256x128xbf16>
    %c0_1 = arith.constant 0 : index
    %c0_2 = arith.constant 0 : index
    %c0_3 = arith.constant 0 : index
    %c0_4 = arith.constant 0 : index
    %3 = vector.load %arg3[%c0_1, %c0_2, %c0_3, %c0_4] : memref<1x4x18x256xf32, #tpu.memory_space<vmem>>, vector<1x1x18x256xf32>
    %4 = vector.shape_cast %3 : vector<1x1x18x256xf32> to vector<18x256xf32>
    %c0_5 = arith.constant 0 : index
    %c1 = arith.constant 1 : index
    %c0_6 = arith.constant 0 : index
    %c0_7 = arith.constant 0 : index
    %5 = vector.load %arg3[%c0_5, %c1, %c0_6, %c0_7] : memref<1x4x18x256xf32, #tpu.memory_space<vmem>>, vector<1x1x18x256xf32>
    %6 = vector.shape_cast %5 : vector<1x1x18x256xf32> to vector<18x256xf32>
    %c0_8 = arith.constant 0 : index
    %c2 = arith.constant 2 : index
    %c0_9 = arith.constant 0 : index
    %c0_10 = arith.constant 0 : index
    %7 = vector.load %arg3[%c0_8, %c2, %c0_9, %c0_10] : memref<1x4x18x256xf32, #tpu.memory_space<vmem>>, vector<1x1x18x256xf32>
    %8 = vector.shape_cast %7 : vector<1x1x18x256xf32> to vector<18x256xf32>
    %c0_11 = arith.constant 0 : index
    %c3 = arith.constant 3 : index
    %c0_12 = arith.constant 0 : index
    %c0_13 = arith.constant 0 : index
    %9 = vector.load %arg3[%c0_11, %c3, %c0_12, %c0_13] : memref<1x4x18x256xf32, #tpu.memory_space<vmem>>, vector<1x1x18x256xf32>
    %10 = vector.shape_cast %9 : vector<1x1x18x256xf32> to vector<18x256xf32>
    %c0_14 = arith.constant 0 : index
    %c0_15 = arith.constant 0 : index
    %11 = arith.index_cast %1 : i32 to index
    %c0_16 = arith.constant 0 : index
    %12 = vector.load %arg2[%c0_14, %c0_15, %11, %c0_16] : memref<1x4x33x256xf32, #tpu.memory_space<vmem>>, vector<1x1x33x256xf32>
    %13 = vector.shape_cast %12 : vector<1x1x33x256xf32> to vector<33x256xf32>
    %c0_17 = arith.constant 0 : index
    %c1_18 = arith.constant 1 : index
    %14 = arith.index_cast %1 : i32 to index
    %c0_19 = arith.constant 0 : index
    %15 = vector.load %arg2[%c0_17, %c1_18, %14, %c0_19] : memref<1x4x33x256xf32, #tpu.memory_space<vmem>>, vector<1x1x33x256xf32>
    %16 = vector.shape_cast %15 : vector<1x1x33x256xf32> to vector<33x256xf32>
    %c0_20 = arith.constant 0 : index
    %c2_21 = arith.constant 2 : index
    %17 = arith.index_cast %1 : i32 to index
    %c0_22 = arith.constant 0 : index
    %18 = vector.load %arg2[%c0_20, %c2_21, %17, %c0_22] : memref<1x4x33x256xf32, #tpu.memory_space<vmem>>, vector<1x1x33x256xf32>
    %19 = vector.shape_cast %18 : vector<1x1x33x256xf32> to vector<33x256xf32>
    %c0_23 = arith.constant 0 : index
    %c3_24 = arith.constant 3 : index
    %20 = arith.index_cast %1 : i32 to index
    %c0_25 = arith.constant 0 : index
    %21 = vector.load %arg2[%c0_23, %c3_24, %20, %c0_25] : memref<1x4x33x256xf32, #tpu.memory_space<vmem>>, vector<1x1x33x256xf32>
    %22 = vector.shape_cast %21 : vector<1x1x33x256xf32> to vector<33x256xf32>
    %23 = arith.mulf %4, %4 : vector<18x256xf32>
    %24 = arith.mulf %13, %13 : vector<33x256xf32>
    %25 = arith.mulf %6, %6 : vector<18x256xf32>
    %26 = arith.addf %23, %25 : vector<18x256xf32>
    %27 = arith.mulf %16, %16 : vector<33x256xf32>
    %28 = arith.addf %24, %27 : vector<33x256xf32>
    %29 = arith.mulf %8, %8 : vector<18x256xf32>
    %30 = arith.addf %26, %29 : vector<18x256xf32>
    %31 = arith.mulf %19, %19 : vector<33x256xf32>
    %32 = arith.addf %28, %31 : vector<33x256xf32>
    %33 = arith.mulf %10, %10 : vector<18x256xf32>
    %34 = arith.addf %30, %33 : vector<18x256xf32>
    %35 = arith.mulf %22, %22 : vector<33x256xf32>
    %36 = arith.addf %32, %35 : vector<33x256xf32>
    %37 = arith.truncf %34 : vector<18x256xf32> to vector<18x256xbf16>
    %38 = arith.extf %37 : vector<18x256xbf16> to vector<18x256xf32>
    %39 = arith.subf %34, %38 : vector<18x256xf32>
    %40 = arith.truncf %39 : vector<18x256xf32> to vector<18x256xbf16>
    %cst = arith.constant dense<0.000000e+00> : vector<18x128xf32>
    %41 = tpu.matmul %37, %2, %cst {dimension_numbers = #tpu.dot_dimension_numbers<[1], [0], [0], [1], [0, 0, 1, 1], [], []>} : vector<18x256xbf16>, vector<256x128xbf16>, vector<18x128xf32> -> vector<18x128xf32>
    %cst_26 = arith.constant dense<0.000000e+00> : vector<18x128xf32>
    %42 = tpu.matmul %40, %2, %cst_26 {dimension_numbers = #tpu.dot_dimension_numbers<[1], [0], [0], [1], [0, 0, 1, 1], [], []>} : vector<18x256xbf16>, vector<256x128xbf16>, vector<18x128xf32> -> vector<18x128xf32>
    %43 = arith.addf %41, %42 : vector<18x128xf32>
    %44 = vector.extract_strided_slice %43 {offsets = [0, 0], sizes = [17, 128], strides = [1, 1]} : vector<18x128xf32> to vector<17x128xf32>
    %45 = vector.extract_strided_slice %43 {offsets = [1, 0], sizes = [17, 128], strides = [1, 1]} : vector<18x128xf32> to vector<17x128xf32>
    %46 = arith.addf %44, %45 : vector<17x128xf32>
    %47 = vector.extract_strided_slice %46 {offsets = [0, 0], sizes = [16, 128], strides = [1, 1]} : vector<17x128xf32> to vector<16x128xf32>
    %48 = vector.extract_strided_slice %43 {offsets = [2, 0], sizes = [16, 128], strides = [1, 1]} : vector<18x128xf32> to vector<16x128xf32>
    %49 = arith.addf %47, %48 : vector<16x128xf32>
    %50 = arith.truncf %36 : vector<33x256xf32> to vector<33x256xbf16>
    %51 = arith.extf %50 : vector<33x256xbf16> to vector<33x256xf32>
    %52 = arith.subf %36, %51 : vector<33x256xf32>
    %53 = arith.truncf %52 : vector<33x256xf32> to vector<33x256xbf16>
    %cst_27 = arith.constant dense<0.000000e+00> : vector<33x128xf32>
    %54 = tpu.matmul %50, %2, %cst_27 {dimension_numbers = #tpu.dot_dimension_numbers<[1], [0], [0], [1], [0, 0, 1, 1], [], []>} : vector<33x256xbf16>, vector<256x128xbf16>, vector<33x128xf32> -> vector<33x128xf32>
    %cst_28 = arith.constant dense<0.000000e+00> : vector<33x128xf32>
    %55 = tpu.matmul %53, %2, %cst_28 {dimension_numbers = #tpu.dot_dimension_numbers<[1], [0], [0], [1], [0, 0, 1, 1], [], []>} : vector<33x256xbf16>, vector<256x128xbf16>, vector<33x128xf32> -> vector<33x128xf32>
    %56 = arith.addf %54, %55 : vector<33x128xf32>
    %57 = vector.extract_strided_slice %56 {offsets = [0, 0], sizes = [32, 128], strides = [1, 1]} : vector<33x128xf32> to vector<32x128xf32>
    %58 = vector.extract_strided_slice %56 {offsets = [1, 0], sizes = [32, 128], strides = [1, 1]} : vector<33x128xf32> to vector<32x128xf32>
    %59 = arith.addf %57, %58 : vector<32x128xf32>
    %60 = vector.extract_strided_slice %59 {offsets = [0, 0], sizes = [31, 128], strides = [1, 1]} : vector<32x128xf32> to vector<31x128xf32>
    %61 = vector.extract_strided_slice %56 {offsets = [2, 0], sizes = [31, 128], strides = [1, 1]} : vector<33x128xf32> to vector<31x128xf32>
    %62 = arith.addf %60, %61 : vector<31x128xf32>
    %63 = vector.extract_strided_slice %13 {offsets = [0, 0], sizes = [26, 256], strides = [1, 1]} : vector<33x256xf32> to vector<26x256xf32>
    %64 = vector.extract_strided_slice %16 {offsets = [0, 0], sizes = [26, 256], strides = [1, 1]} : vector<33x256xf32> to vector<26x256xf32>
    %65 = vector.extract_strided_slice %19 {offsets = [0, 0], sizes = [26, 256], strides = [1, 1]} : vector<33x256xf32> to vector<26x256xf32>
    %66 = vector.extract_strided_slice %22 {offsets = [0, 0], sizes = [26, 256], strides = [1, 1]} : vector<33x256xf32> to vector<26x256xf32>
    %67 = vector.extract_strided_slice %62 {offsets = [0, 0], sizes = [24, 128], strides = [1, 1]} : vector<31x128xf32> to vector<24x128xf32>
    %68 = vector.extract_strided_slice %63 {offsets = [0, 0], sizes = [18, 256], strides = [1, 1]} : vector<26x256xf32> to vector<18x256xf32>
    %69 = arith.mulf %68, %4 : vector<18x256xf32>
    %70 = vector.extract_strided_slice %64 {offsets = [0, 0], sizes = [18, 256], strides = [1, 1]} : vector<26x256xf32> to vector<18x256xf32>
    %71 = arith.mulf %70, %6 : vector<18x256xf32>
    %72 = arith.addf %69, %71 : vector<18x256xf32>
    %73 = vector.extract_strided_slice %65 {offsets = [0, 0], sizes = [18, 256], strides = [1, 1]} : vector<26x256xf32> to vector<18x256xf32>
    %74 = arith.mulf %73, %8 : vector<18x256xf32>
    %75 = arith.addf %72, %74 : vector<18x256xf32>
    %76 = vector.extract_strided_slice %66 {offsets = [0, 0], sizes = [18, 256], strides = [1, 1]} : vector<26x256xf32> to vector<18x256xf32>
    %77 = arith.mulf %76, %10 : vector<18x256xf32>
    %78 = arith.addf %75, %77 : vector<18x256xf32>
    %79 = vector.extract_strided_slice %67 {offsets = [0, 0], sizes = [16, 128], strides = [1, 1]} : vector<24x128xf32> to vector<16x128xf32>
    %80 = arith.addf %79, %49 : vector<16x128xf32>
    %81 = arith.truncf %78 : vector<18x256xf32> to vector<18x256xbf16>
    %82 = arith.extf %81 : vector<18x256xbf16> to vector<18x256xf32>
    %83 = arith.subf %78, %82 : vector<18x256xf32>
    %84 = arith.truncf %83 : vector<18x256xf32> to vector<18x256xbf16>
    %cst_29 = arith.constant dense<0.000000e+00> : vector<18x128xf32>
    %85 = tpu.matmul %81, %2, %cst_29 {dimension_numbers = #tpu.dot_dimension_numbers<[1], [0], [0], [1], [0, 0, 1, 1], [], []>} : vector<18x256xbf16>, vector<256x128xbf16>, vector<18x128xf32> -> vector<18x128xf32>
    %cst_30 = arith.constant dense<0.000000e+00> : vector<18x128xf32>
    %86 = tpu.matmul %84, %2, %cst_30 {dimension_numbers = #tpu.dot_dimension_numbers<[1], [0], [0], [1], [0, 0, 1, 1], [], []>} : vector<18x256xbf16>, vector<256x128xbf16>, vector<18x128xf32> -> vector<18x128xf32>
    %87 = arith.addf %85, %86 : vector<18x128xf32>
    %88 = vector.extract_strided_slice %87 {offsets = [0, 0], sizes = [17, 128], strides = [1, 1]} : vector<18x128xf32> to vector<17x128xf32>
    %89 = vector.extract_strided_slice %87 {offsets = [1, 0], sizes = [17, 128], strides = [1, 1]} : vector<18x128xf32> to vector<17x128xf32>
    %90 = arith.addf %88, %89 : vector<17x128xf32>
    %91 = vector.extract_strided_slice %90 {offsets = [0, 0], sizes = [16, 128], strides = [1, 1]} : vector<17x128xf32> to vector<16x128xf32>
    %92 = vector.extract_strided_slice %87 {offsets = [2, 0], sizes = [16, 128], strides = [1, 1]} : vector<18x128xf32> to vector<16x128xf32>
    %93 = arith.addf %91, %92 : vector<16x128xf32>
    %cst_31 = arith.constant 2.000000e+00 : f32
    %94 = vector.broadcast %cst_31 : f32 to vector<16x128xf32>
    %95 = arith.mulf %94, %93 : vector<16x128xf32>
    %96 = arith.subf %80, %95 : vector<16x128xf32>
    %cst_32 = arith.constant 0.000000e+00 : f32
    %97 = vector.broadcast %cst_32 : f32 to vector<16x128xf32>
    %98 = arith.maximumf %96, %97 : vector<16x128xf32>
    %c0_33 = arith.constant 0 : index
    %c0_34 = arith.constant 0 : index
    %c0_35 = arith.constant 0 : index
    %c0_36 = arith.constant 0 : index
    %99 = vector.load %arg5[%c0_33, %c0_34, %c0_35, %c0_36] : memref<1x16x16x128xf32, #tpu.memory_space<vmem>>, vector<1x1x16x128xf32>
    %100 = vector.shape_cast %99 : vector<1x1x16x128xf32> to vector<16x128xf32>
    %101 = vector.shape_cast %98 : vector<16x128xf32> to vector<1x1x16x128xf32>
    tpu.vector_store %arg5[%c0_33, %c0_34, %c0_35, %c0_36], %101 {strides = array<i32>} : memref<1x16x16x128xf32, #tpu.memory_space<vmem>>, vector<1x1x16x128xf32>,
    %102 = vector.extract_strided_slice %63 {offsets = [8, 0], sizes = [18, 256], strides = [1, 1]} : vector<26x256xf32> to vector<18x256xf32>
    %103 = arith.mulf %102, %4 : vector<18x256xf32>
    %104 = vector.extract_strided_slice %64 {offsets = [8, 0], sizes = [18, 256], strides = [1, 1]} : vector<26x256xf32> to vector<18x256xf32>
    %105 = arith.mulf %104, %6 : vector<18x256xf32>
    %106 = arith.addf %103, %105 : vector<18x256xf32>
    %107 = vector.extract_strided_slice %65 {offsets = [8, 0], sizes = [18, 256], strides = [1, 1]} : vector<26x256xf32> to vector<18x256xf32>
    %108 = arith.mulf %107, %8 : vector<18x256xf32>
    %109 = arith.addf %106, %108 : vector<18x256xf32>
    %110 = vector.extract_strided_slice %66 {offsets = [8, 0], sizes = [18, 256], strides = [1, 1]} : vector<26x256xf32> to vector<18x256xf32>
    %111 = arith.mulf %110, %10 : vector<18x256xf32>
    %112 = arith.addf %109, %111 : vector<18x256xf32>
    %113 = vector.extract_strided_slice %67 {offsets = [8, 0], sizes = [16, 128], strides = [1, 1]} : vector<24x128xf32> to vector<16x128xf32>
    %114 = arith.addf %113, %49 : vector<16x128xf32>
    %115 = arith.truncf %112 : vector<18x256xf32> to vector<18x256xbf16>
    %116 = arith.extf %115 : vector<18x256xbf16> to vector<18x256xf32>
    %117 = arith.subf %112, %116 : vector<18x256xf32>
    %118 = arith.truncf %117 : vector<18x256xf32> to vector<18x256xbf16>
    %cst_37 = arith.constant dense<0.000000e+00> : vector<18x128xf32>
    %119 = tpu.matmul %115, %2, %cst_37 {dimension_numbers = #tpu.dot_dimension_numbers<[1], [0], [0], [1], [0, 0, 1, 1], [], []>} : vector<18x256xbf16>, vector<256x128xbf16>, vector<18x128xf32> -> vector<18x128xf32>
    %cst_38 = arith.constant dense<0.000000e+00> : vector<18x128xf32>
    %120 = tpu.matmul %118, %2, %cst_38 {dimension_numbers = #tpu.dot_dimension_numbers<[1], [0], [0], [1], [0, 0, 1, 1], [], []>} : vector<18x256xbf16>, vector<256x128xbf16>, vector<18x128xf32> -> vector<18x128xf32>
    %121 = arith.addf %119, %120 : vector<18x128xf32>
    %122 = vector.extract_strided_slice %121 {offsets = [0, 0], sizes = [17, 128], strides = [1, 1]} : vector<18x128xf32> to vector<17x128xf32>
    %123 = vector.extract_strided_slice %121 {offsets = [1, 0], sizes = [17, 128], strides = [1, 1]} : vector<18x128xf32> to vector<17x128xf32>
    %124 = arith.addf %122, %123 : vector<17x128xf32>
    %125 = vector.extract_strided_slice %124 {offsets = [0, 0], sizes = [16, 128], strides = [1, 1]} : vector<17x128xf32> to vector<16x128xf32>
    %126 = vector.extract_strided_slice %121 {offsets = [2, 0], sizes = [16, 128], strides = [1, 1]} : vector<18x128xf32> to vector<16x128xf32>
    %127 = arith.addf %125, %126 : vector<16x128xf32>
    %cst_39 = arith.constant 2.000000e+00 : f32
    %128 = vector.broadcast %cst_39 : f32 to vector<16x128xf32>
    %129 = arith.mulf %128, %127 : vector<16x128xf32>
    %130 = arith.subf %114, %129 : vector<16x128xf32>
    %cst_40 = arith.constant 0.000000e+00 : f32
    %131 = vector.broadcast %cst_40 : f32 to vector<16x128xf32>
    %132 = arith.maximumf %130, %131 : vector<16x128xf32>
    %c0_41 = arith.constant 0 : index
    %c8 = arith.constant 8 : index
    %c0_42 = arith.constant 0 : index
    %c0_43 = arith.constant 0 : index
    %133 = vector.load %arg5[%c0_41, %c8, %c0_42, %c0_43] : memref<1x16x16x128xf32, #tpu.memory_space<vmem>>, vector<1x1x16x128xf32>
    %134 = vector.shape_cast %133 : vector<1x1x16x128xf32> to vector<16x128xf32>
    %135 = vector.shape_cast %132 : vector<16x128xf32> to vector<1x1x16x128xf32>
    tpu.vector_store %arg5[%c0_41, %c8, %c0_42, %c0_43], %135 {strides = array<i32>} : memref<1x16x16x128xf32, #tpu.memory_space<vmem>>, vector<1x1x16x128xf32>,
    %136 = vector.extract_strided_slice %13 {offsets = [1, 0], sizes = [26, 256], strides = [1, 1]} : vector<33x256xf32> to vector<26x256xf32>
    %137 = vector.extract_strided_slice %16 {offsets = [1, 0], sizes = [26, 256], strides = [1, 1]} : vector<33x256xf32> to vector<26x256xf32>
    %138 = vector.extract_strided_slice %19 {offsets = [1, 0], sizes = [26, 256], strides = [1, 1]} : vector<33x256xf32> to vector<26x256xf32>
    %139 = vector.extract_strided_slice %22 {offsets = [1, 0], sizes = [26, 256], strides = [1, 1]} : vector<33x256xf32> to vector<26x256xf32>
    %140 = vector.extract_strided_slice %62 {offsets = [1, 0], sizes = [24, 128], strides = [1, 1]} : vector<31x128xf32> to vector<24x128xf32>
    %141 = vector.extract_strided_slice %136 {offsets = [0, 0], sizes = [18, 256], strides = [1, 1]} : vector<26x256xf32> to vector<18x256xf32>
    %142 = arith.mulf %141, %4 : vector<18x256xf32>
    %143 = vector.extract_strided_slice %137 {offsets = [0, 0], sizes = [18, 256], strides = [1, 1]} : vector<26x256xf32> to vector<18x256xf32>
    %144 = arith.mulf %143, %6 : vector<18x256xf32>
    %145 = arith.addf %142, %144 : vector<18x256xf32>
    %146 = vector.extract_strided_slice %138 {offsets = [0, 0], sizes = [18, 256], strides = [1, 1]} : vector<26x256xf32> to vector<18x256xf32>
    %147 = arith.mulf %146, %8 : vector<18x256xf32>
    %148 = arith.addf %145, %147 : vector<18x256xf32>
    %149 = vector.extract_strided_slice %139 {offsets = [0, 0], sizes = [18, 256], strides = [1, 1]} : vector<26x256xf32> to vector<18x256xf32>
    %150 = arith.mulf %149, %10 : vector<18x256xf32>
    %151 = arith.addf %148, %150 : vector<18x256xf32>
    %152 = vector.extract_strided_slice %140 {offsets = [0, 0], sizes = [16, 128], strides = [1, 1]} : vector<24x128xf32> to vector<16x128xf32>
    %153 = arith.addf %152, %49 : vector<16x128xf32>
    %154 = arith.truncf %151 : vector<18x256xf32> to vector<18x256xbf16>
    %155 = arith.extf %154 : vector<18x256xbf16> to vector<18x256xf32>
    %156 = arith.subf %151, %155 : vector<18x256xf32>
    %157 = arith.truncf %156 : vector<18x256xf32> to vector<18x256xbf16>
    %cst_44 = arith.constant dense<0.000000e+00> : vector<18x128xf32>
    %158 = tpu.matmul %154, %2, %cst_44 {dimension_numbers = #tpu.dot_dimension_numbers<[1], [0], [0], [1], [0, 0, 1, 1], [], []>} : vector<18x256xbf16>, vector<256x128xbf16>, vector<18x128xf32> -> vector<18x128xf32>
    %cst_45 = arith.constant dense<0.000000e+00> : vector<18x128xf32>
    %159 = tpu.matmul %157, %2, %cst_45 {dimension_numbers = #tpu.dot_dimension_numbers<[1], [0], [0], [1], [0, 0, 1, 1], [], []>} : vector<18x256xbf16>, vector<256x128xbf16>, vector<18x128xf32> -> vector<18x128xf32>
    %160 = arith.addf %158, %159 : vector<18x128xf32>
    %161 = vector.extract_strided_slice %160 {offsets = [0, 0], sizes = [17, 128], strides = [1, 1]} : vector<18x128xf32> to vector<17x128xf32>
    %162 = vector.extract_strided_slice %160 {offsets = [1, 0], sizes = [17, 128], strides = [1, 1]} : vector<18x128xf32> to vector<17x128xf32>
    %163 = arith.addf %161, %162 : vector<17x128xf32>
    %164 = vector.extract_strided_slice %163 {offsets = [0, 0], sizes = [16, 128], strides = [1, 1]} : vector<17x128xf32> to vector<16x128xf32>
    %165 = vector.extract_strided_slice %160 {offsets = [2, 0], sizes = [16, 128], strides = [1, 1]} : vector<18x128xf32> to vector<16x128xf32>
    %166 = arith.addf %164, %165 : vector<16x128xf32>
    %cst_46 = arith.constant 2.000000e+00 : f32
    %167 = vector.broadcast %cst_46 : f32 to vector<16x128xf32>
    %168 = arith.mulf %167, %166 : vector<16x128xf32>
    %169 = arith.subf %153, %168 : vector<16x128xf32>
    %cst_47 = arith.constant 0.000000e+00 : f32
    %170 = vector.broadcast %cst_47 : f32 to vector<16x128xf32>
    %171 = arith.maximumf %169, %170 : vector<16x128xf32>
    %c0_48 = arith.constant 0 : index
    %c1_49 = arith.constant 1 : index
    %c0_50 = arith.constant 0 : index
    %c0_51 = arith.constant 0 : index
    %172 = vector.load %arg5[%c0_48, %c1_49, %c0_50, %c0_51] : memref<1x16x16x128xf32, #tpu.memory_space<vmem>>, vector<1x1x16x128xf32>
    %173 = vector.shape_cast %172 : vector<1x1x16x128xf32> to vector<16x128xf32>
    %174 = vector.shape_cast %171 : vector<16x128xf32> to vector<1x1x16x128xf32>
    tpu.vector_store %arg5[%c0_48, %c1_49, %c0_50, %c0_51], %174 {strides = array<i32>} : memref<1x16x16x128xf32, #tpu.memory_space<vmem>>, vector<1x1x16x128xf32>,
    %175 = vector.extract_strided_slice %136 {offsets = [8, 0], sizes = [18, 256], strides = [1, 1]} : vector<26x256xf32> to vector<18x256xf32>
    %176 = arith.mulf %175, %4 : vector<18x256xf32>
    %177 = vector.extract_strided_slice %137 {offsets = [8, 0], sizes = [18, 256], strides = [1, 1]} : vector<26x256xf32> to vector<18x256xf32>
    %178 = arith.mulf %177, %6 : vector<18x256xf32>
    %179 = arith.addf %176, %178 : vector<18x256xf32>
    %180 = vector.extract_strided_slice %138 {offsets = [8, 0], sizes = [18, 256], strides = [1, 1]} : vector<26x256xf32> to vector<18x256xf32>
    %181 = arith.mulf %180, %8 : vector<18x256xf32>
    %182 = arith.addf %179, %181 : vector<18x256xf32>
    %183 = vector.extract_strided_slice %139 {offsets = [8, 0], sizes = [18, 256], strides = [1, 1]} : vector<26x256xf32> to vector<18x256xf32>
    %184 = arith.mulf %183, %10 : vector<18x256xf32>
    %185 = arith.addf %182, %184 : vector<18x256xf32>
    %186 = vector.extract_strided_slice %140 {offsets = [8, 0], sizes = [16, 128], strides = [1, 1]} : vector<24x128xf32> to vector<16x128xf32>
    %187 = arith.addf %186, %49 : vector<16x128xf32>
    %188 = arith.truncf %185 : vector<18x256xf32> to vector<18x256xbf16>
    %189 = arith.extf %188 : vector<18x256xbf16> to vector<18x256xf32>
    %190 = arith.subf %185, %189 : vector<18x256xf32>
    %191 = arith.truncf %190 : vector<18x256xf32> to vector<18x256xbf16>
    %cst_52 = arith.constant dense<0.000000e+00> : vector<18x128xf32>
    %192 = tpu.matmul %188, %2, %cst_52 {dimension_numbers = #tpu.dot_dimension_numbers<[1], [0], [0], [1], [0, 0, 1, 1], [], []>} : vector<18x256xbf16>, vector<256x128xbf16>, vector<18x128xf32> -> vector<18x128xf32>
    %cst_53 = arith.constant dense<0.000000e+00> : vector<18x128xf32>
    %193 = tpu.matmul %191, %2, %cst_53 {dimension_numbers = #tpu.dot_dimension_numbers<[1], [0], [0], [1], [0, 0, 1, 1], [], []>} : vector<18x256xbf16>, vector<256x128xbf16>, vector<18x128xf32> -> vector<18x128xf32>
    %194 = arith.addf %192, %193 : vector<18x128xf32>
    %195 = vector.extract_strided_slice %194 {offsets = [0, 0], sizes = [17, 128], strides = [1, 1]} : vector<18x128xf32> to vector<17x128xf32>
    %196 = vector.extract_strided_slice %194 {offsets = [1, 0], sizes = [17, 128], strides = [1, 1]} : vector<18x128xf32> to vector<17x128xf32>
    %197 = arith.addf %195, %196 : vector<17x128xf32>
    %198 = vector.extract_strided_slice %197 {offsets = [0, 0], sizes = [16, 128], strides = [1, 1]} : vector<17x128xf32> to vector<16x128xf32>
    %199 = vector.extract_strided_slice %194 {offsets = [2, 0], sizes = [16, 128], strides = [1, 1]} : vector<18x128xf32> to vector<16x128xf32>
    %200 = arith.addf %198, %199 : vector<16x128xf32>
    %cst_54 = arith.constant 2.000000e+00 : f32
    %201 = vector.broadcast %cst_54 : f32 to vector<16x128xf32>
    %202 = arith.mulf %201, %200 : vector<16x128xf32>
    %203 = arith.subf %187, %202 : vector<16x128xf32>
    %cst_55 = arith.constant 0.000000e+00 : f32
    %204 = vector.broadcast %cst_55 : f32 to vector<16x128xf32>
    %205 = arith.maximumf %203, %204 : vector<16x128xf32>
    %c0_56 = arith.constant 0 : index
    %c9 = arith.constant 9 : index
    %c0_57 = arith.constant 0 : index
    %c0_58 = arith.constant 0 : index
    %206 = vector.load %arg5[%c0_56, %c9, %c0_57, %c0_58] : memref<1x16x16x128xf32, #tpu.memory_space<vmem>>, vector<1x1x16x128xf32>
    %207 = vector.shape_cast %206 : vector<1x1x16x128xf32> to vector<16x128xf32>
    %208 = vector.shape_cast %205 : vector<16x128xf32> to vector<1x1x16x128xf32>
    tpu.vector_store %arg5[%c0_56, %c9, %c0_57, %c0_58], %208 {strides = array<i32>} : memref<1x16x16x128xf32, #tpu.memory_space<vmem>>, vector<1x1x16x128xf32>,
    %209 = vector.extract_strided_slice %13 {offsets = [2, 0], sizes = [26, 256], strides = [1, 1]} : vector<33x256xf32> to vector<26x256xf32>
    %210 = vector.extract_strided_slice %16 {offsets = [2, 0], sizes = [26, 256], strides = [1, 1]} : vector<33x256xf32> to vector<26x256xf32>
    %211 = vector.extract_strided_slice %19 {offsets = [2, 0], sizes = [26, 256], strides = [1, 1]} : vector<33x256xf32> to vector<26x256xf32>
    %212 = vector.extract_strided_slice %22 {offsets = [2, 0], sizes = [26, 256], strides = [1, 1]} : vector<33x256xf32> to vector<26x256xf32>
    %213 = vector.extract_strided_slice %62 {offsets = [2, 0], sizes = [24, 128], strides = [1, 1]} : vector<31x128xf32> to vector<24x128xf32>
    %214 = vector.extract_strided_slice %209 {offsets = [0, 0], sizes = [18, 256], strides = [1, 1]} : vector<26x256xf32> to vector<18x256xf32>
    %215 = arith.mulf %214, %4 : vector<18x256xf32>
    %216 = vector.extract_strided_slice %210 {offsets = [0, 0], sizes = [18, 256], strides = [1, 1]} : vector<26x256xf32> to vector<18x256xf32>
    %217 = arith.mulf %216, %6 : vector<18x256xf32>
    %218 = arith.addf %215, %217 : vector<18x256xf32>
    %219 = vector.extract_strided_slice %211 {offsets = [0, 0], sizes = [18, 256], strides = [1, 1]} : vector<26x256xf32> to vector<18x256xf32>
    %220 = arith.mulf %219, %8 : vector<18x256xf32>
    %221 = arith.addf %218, %220 : vector<18x256xf32>
    %222 = vector.extract_strided_slice %212 {offsets = [0, 0], sizes = [18, 256], strides = [1, 1]} : vector<26x256xf32> to vector<18x256xf32>
    %223 = arith.mulf %222, %10 : vector<18x256xf32>
    %224 = arith.addf %221, %223 : vector<18x256xf32>
    %225 = vector.extract_strided_slice %213 {offsets = [0, 0], sizes = [16, 128], strides = [1, 1]} : vector<24x128xf32> to vector<16x128xf32>
    %226 = arith.addf %225, %49 : vector<16x128xf32>
    %227 = arith.truncf %224 : vector<18x256xf32> to vector<18x256xbf16>
    %228 = arith.extf %227 : vector<18x256xbf16> to vector<18x256xf32>
    %229 = arith.subf %224, %228 : vector<18x256xf32>
    %230 = arith.truncf %229 : vector<18x256xf32> to vector<18x256xbf16>
    %cst_59 = arith.constant dense<0.000000e+00> : vector<18x128xf32>
    %231 = tpu.matmul %227, %2, %cst_59 {dimension_numbers = #tpu.dot_dimension_numbers<[1], [0], [0], [1], [0, 0, 1, 1], [], []>} : vector<18x256xbf16>, vector<256x128xbf16>, vector<18x128xf32> -> vector<18x128xf32>
    %cst_60 = arith.constant dense<0.000000e+00> : vector<18x128xf32>
    %232 = tpu.matmul %230, %2, %cst_60 {dimension_numbers = #tpu.dot_dimension_numbers<[1], [0], [0], [1], [0, 0, 1, 1], [], []>} : vector<18x256xbf16>, vector<256x128xbf16>, vector<18x128xf32> -> vector<18x128xf32>
    %233 = arith.addf %231, %232 : vector<18x128xf32>
    %234 = vector.extract_strided_slice %233 {offsets = [0, 0], sizes = [17, 128], strides = [1, 1]} : vector<18x128xf32> to vector<17x128xf32>
    %235 = vector.extract_strided_slice %233 {offsets = [1, 0], sizes = [17, 128], strides = [1, 1]} : vector<18x128xf32> to vector<17x128xf32>
    %236 = arith.addf %234, %235 : vector<17x128xf32>
    %237 = vector.extract_strided_slice %236 {offsets = [0, 0], sizes = [16, 128], strides = [1, 1]} : vector<17x128xf32> to vector<16x128xf32>
    %238 = vector.extract_strided_slice %233 {offsets = [2, 0], sizes = [16, 128], strides = [1, 1]} : vector<18x128xf32> to vector<16x128xf32>
    %239 = arith.addf %237, %238 : vector<16x128xf32>
    %cst_61 = arith.constant 2.000000e+00 : f32
    %240 = vector.broadcast %cst_61 : f32 to vector<16x128xf32>
    %241 = arith.mulf %240, %239 : vector<16x128xf32>
    %242 = arith.subf %226, %241 : vector<16x128xf32>
    %cst_62 = arith.constant 0.000000e+00 : f32
    %243 = vector.broadcast %cst_62 : f32 to vector<16x128xf32>
    %244 = arith.maximumf %242, %243 : vector<16x128xf32>
    %c0_63 = arith.constant 0 : index
    %c2_64 = arith.constant 2 : index
    %c0_65 = arith.constant 0 : index
    %c0_66 = arith.constant 0 : index
    %245 = vector.load %arg5[%c0_63, %c2_64, %c0_65, %c0_66] : memref<1x16x16x128xf32, #tpu.memory_space<vmem>>, vector<1x1x16x128xf32>
    %246 = vector.shape_cast %245 : vector<1x1x16x128xf32> to vector<16x128xf32>
    %247 = vector.shape_cast %244 : vector<16x128xf32> to vector<1x1x16x128xf32>
    tpu.vector_store %arg5[%c0_63, %c2_64, %c0_65, %c0_66], %247 {strides = array<i32>} : memref<1x16x16x128xf32, #tpu.memory_space<vmem>>, vector<1x1x16x128xf32>,
    %248 = vector.extract_strided_slice %209 {offsets = [8, 0], sizes = [18, 256], strides = [1, 1]} : vector<26x256xf32> to vector<18x256xf32>
    %249 = arith.mulf %248, %4 : vector<18x256xf32>
    %250 = vector.extract_strided_slice %210 {offsets = [8, 0], sizes = [18, 256], strides = [1, 1]} : vector<26x256xf32> to vector<18x256xf32>
    %251 = arith.mulf %250, %6 : vector<18x256xf32>
    %252 = arith.addf %249, %251 : vector<18x256xf32>
    %253 = vector.extract_strided_slice %211 {offsets = [8, 0], sizes = [18, 256], strides = [1, 1]} : vector<26x256xf32> to vector<18x256xf32>
    %254 = arith.mulf %253, %8 : vector<18x256xf32>
    %255 = arith.addf %252, %254 : vector<18x256xf32>
    %256 = vector.extract_strided_slice %212 {offsets = [8, 0], sizes = [18, 256], strides = [1, 1]} : vector<26x256xf32> to vector<18x256xf32>
    %257 = arith.mulf %256, %10 : vector<18x256xf32>
    %258 = arith.addf %255, %257 : vector<18x256xf32>
    %259 = vector.extract_strided_slice %213 {offsets = [8, 0], sizes = [16, 128], strides = [1, 1]} : vector<24x128xf32> to vector<16x128xf32>
    %260 = arith.addf %259, %49 : vector<16x128xf32>
    %261 = arith.truncf %258 : vector<18x256xf32> to vector<18x256xbf16>
    %262 = arith.extf %261 : vector<18x256xbf16> to vector<18x256xf32>
    %263 = arith.subf %258, %262 : vector<18x256xf32>
    %264 = arith.truncf %263 : vector<18x256xf32> to vector<18x256xbf16>
    %cst_67 = arith.constant dense<0.000000e+00> : vector<18x128xf32>
    %265 = tpu.matmul %261, %2, %cst_67 {dimension_numbers = #tpu.dot_dimension_numbers<[1], [0], [0], [1], [0, 0, 1, 1], [], []>} : vector<18x256xbf16>, vector<256x128xbf16>, vector<18x128xf32> -> vector<18x128xf32>
    %cst_68 = arith.constant dense<0.000000e+00> : vector<18x128xf32>
    %266 = tpu.matmul %264, %2, %cst_68 {dimension_numbers = #tpu.dot_dimension_numbers<[1], [0], [0], [1], [0, 0, 1, 1], [], []>} : vector<18x256xbf16>, vector<256x128xbf16>, vector<18x128xf32> -> vector<18x128xf32>
    %267 = arith.addf %265, %266 : vector<18x128xf32>
    %268 = vector.extract_strided_slice %267 {offsets = [0, 0], sizes = [17, 128], strides = [1, 1]} : vector<18x128xf32> to vector<17x128xf32>
    %269 = vector.extract_strided_slice %267 {offsets = [1, 0], sizes = [17, 128], strides = [1, 1]} : vector<18x128xf32> to vector<17x128xf32>
    %270 = arith.addf %268, %269 : vector<17x128xf32>
    %271 = vector.extract_strided_slice %270 {offsets = [0, 0], sizes = [16, 128], strides = [1, 1]} : vector<17x128xf32> to vector<16x128xf32>
    %272 = vector.extract_strided_slice %267 {offsets = [2, 0], sizes = [16, 128], strides = [1, 1]} : vector<18x128xf32> to vector<16x128xf32>
    %273 = arith.addf %271, %272 : vector<16x128xf32>
    %cst_69 = arith.constant 2.000000e+00 : f32
    %274 = vector.broadcast %cst_69 : f32 to vector<16x128xf32>
    %275 = arith.mulf %274, %273 : vector<16x128xf32>
    %276 = arith.subf %260, %275 : vector<16x128xf32>
    %cst_70 = arith.constant 0.000000e+00 : f32
    %277 = vector.broadcast %cst_70 : f32 to vector<16x128xf32>
    %278 = arith.maximumf %276, %277 : vector<16x128xf32>
    %c0_71 = arith.constant 0 : index
    %c10 = arith.constant 10 : index
    %c0_72 = arith.constant 0 : index
    %c0_73 = arith.constant 0 : index
    %279 = vector.load %arg5[%c0_71, %c10, %c0_72, %c0_73] : memref<1x16x16x128xf32, #tpu.memory_space<vmem>>, vector<1x1x16x128xf32>
    %280 = vector.shape_cast %279 : vector<1x1x16x128xf32> to vector<16x128xf32>
    %281 = vector.shape_cast %278 : vector<16x128xf32> to vector<1x1x16x128xf32>
    tpu.vector_store %arg5[%c0_71, %c10, %c0_72, %c0_73], %281 {strides = array<i32>} : memref<1x16x16x128xf32, #tpu.memory_space<vmem>>, vector<1x1x16x128xf32>,
    %282 = vector.extract_strided_slice %13 {offsets = [3, 0], sizes = [26, 256], strides = [1, 1]} : vector<33x256xf32> to vector<26x256xf32>
    %283 = vector.extract_strided_slice %16 {offsets = [3, 0], sizes = [26, 256], strides = [1, 1]} : vector<33x256xf32> to vector<26x256xf32>
    %284 = vector.extract_strided_slice %19 {offsets = [3, 0], sizes = [26, 256], strides = [1, 1]} : vector<33x256xf32> to vector<26x256xf32>
    %285 = vector.extract_strided_slice %22 {offsets = [3, 0], sizes = [26, 256], strides = [1, 1]} : vector<33x256xf32> to vector<26x256xf32>
    %286 = vector.extract_strided_slice %62 {offsets = [3, 0], sizes = [24, 128], strides = [1, 1]} : vector<31x128xf32> to vector<24x128xf32>
    %287 = vector.extract_strided_slice %282 {offsets = [0, 0], sizes = [18, 256], strides = [1, 1]} : vector<26x256xf32> to vector<18x256xf32>
    %288 = arith.mulf %287, %4 : vector<18x256xf32>
    %289 = vector.extract_strided_slice %283 {offsets = [0, 0], sizes = [18, 256], strides = [1, 1]} : vector<26x256xf32> to vector<18x256xf32>
    %290 = arith.mulf %289, %6 : vector<18x256xf32>
    %291 = arith.addf %288, %290 : vector<18x256xf32>
    %292 = vector.extract_strided_slice %284 {offsets = [0, 0], sizes = [18, 256], strides = [1, 1]} : vector<26x256xf32> to vector<18x256xf32>
    %293 = arith.mulf %292, %8 : vector<18x256xf32>
    %294 = arith.addf %291, %293 : vector<18x256xf32>
    %295 = vector.extract_strided_slice %285 {offsets = [0, 0], sizes = [18, 256], strides = [1, 1]} : vector<26x256xf32> to vector<18x256xf32>
    %296 = arith.mulf %295, %10 : vector<18x256xf32>
    %297 = arith.addf %294, %296 : vector<18x256xf32>
    %298 = vector.extract_strided_slice %286 {offsets = [0, 0], sizes = [16, 128], strides = [1, 1]} : vector<24x128xf32> to vector<16x128xf32>
    %299 = arith.addf %298, %49 : vector<16x128xf32>
    %300 = arith.truncf %297 : vector<18x256xf32> to vector<18x256xbf16>
    %301 = arith.extf %300 : vector<18x256xbf16> to vector<18x256xf32>
    %302 = arith.subf %297, %301 : vector<18x256xf32>
    %303 = arith.truncf %302 : vector<18x256xf32> to vector<18x256xbf16>
    %cst_74 = arith.constant dense<0.000000e+00> : vector<18x128xf32>
    %304 = tpu.matmul %300, %2, %cst_74 {dimension_numbers = #tpu.dot_dimension_numbers<[1], [0], [0], [1], [0, 0, 1, 1], [], []>} : vector<18x256xbf16>, vector<256x128xbf16>, vector<18x128xf32> -> vector<18x128xf32>
    %cst_75 = arith.constant dense<0.000000e+00> : vector<18x128xf32>
    %305 = tpu.matmul %303, %2, %cst_75 {dimension_numbers = #tpu.dot_dimension_numbers<[1], [0], [0], [1], [0, 0, 1, 1], [], []>} : vector<18x256xbf16>, vector<256x128xbf16>, vector<18x128xf32> -> vector<18x128xf32>
    %306 = arith.addf %304, %305 : vector<18x128xf32>
    %307 = vector.extract_strided_slice %306 {offsets = [0, 0], sizes = [17, 128], strides = [1, 1]} : vector<18x128xf32> to vector<17x128xf32>
    %308 = vector.extract_strided_slice %306 {offsets = [1, 0], sizes = [17, 128], strides = [1, 1]} : vector<18x128xf32> to vector<17x128xf32>
    %309 = arith.addf %307, %308 : vector<17x128xf32>
    %310 = vector.extract_strided_slice %309 {offsets = [0, 0], sizes = [16, 128], strides = [1, 1]} : vector<17x128xf32> to vector<16x128xf32>
    %311 = vector.extract_strided_slice %306 {offsets = [2, 0], sizes = [16, 128], strides = [1, 1]} : vector<18x128xf32> to vector<16x128xf32>
    %312 = arith.addf %310, %311 : vector<16x128xf32>
    %cst_76 = arith.constant 2.000000e+00 : f32
    %313 = vector.broadcast %cst_76 : f32 to vector<16x128xf32>
    %314 = arith.mulf %313, %312 : vector<16x128xf32>
    %315 = arith.subf %299, %314 : vector<16x128xf32>
    %cst_77 = arith.constant 0.000000e+00 : f32
    %316 = vector.broadcast %cst_77 : f32 to vector<16x128xf32>
    %317 = arith.maximumf %315, %316 : vector<16x128xf32>
    %c0_78 = arith.constant 0 : index
    %c3_79 = arith.constant 3 : index
    %c0_80 = arith.constant 0 : index
    %c0_81 = arith.constant 0 : index
    %318 = vector.load %arg5[%c0_78, %c3_79, %c0_80, %c0_81] : memref<1x16x16x128xf32, #tpu.memory_space<vmem>>, vector<1x1x16x128xf32>
    %319 = vector.shape_cast %318 : vector<1x1x16x128xf32> to vector<16x128xf32>
    %320 = vector.shape_cast %317 : vector<16x128xf32> to vector<1x1x16x128xf32>
    tpu.vector_store %arg5[%c0_78, %c3_79, %c0_80, %c0_81], %320 {strides = array<i32>} : memref<1x16x16x128xf32, #tpu.memory_space<vmem>>, vector<1x1x16x128xf32>,
    %321 = vector.extract_strided_slice %282 {offsets = [8, 0], sizes = [18, 256], strides = [1, 1]} : vector<26x256xf32> to vector<18x256xf32>
    %322 = arith.mulf %321, %4 : vector<18x256xf32>
    %323 = vector.extract_strided_slice %283 {offsets = [8, 0], sizes = [18, 256], strides = [1, 1]} : vector<26x256xf32> to vector<18x256xf32>
    %324 = arith.mulf %323, %6 : vector<18x256xf32>
    %325 = arith.addf %322, %324 : vector<18x256xf32>
    %326 = vector.extract_strided_slice %284 {offsets = [8, 0], sizes = [18, 256], strides = [1, 1]} : vector<26x256xf32> to vector<18x256xf32>
    %327 = arith.mulf %326, %8 : vector<18x256xf32>
    %328 = arith.addf %325, %327 : vector<18x256xf32>
    %329 = vector.extract_strided_slice %285 {offsets = [8, 0], sizes = [18, 256], strides = [1, 1]} : vector<26x256xf32> to vector<18x256xf32>
    %330 = arith.mulf %329, %10 : vector<18x256xf32>
    %331 = arith.addf %328, %330 : vector<18x256xf32>
    %332 = vector.extract_strided_slice %286 {offsets = [8, 0], sizes = [16, 128], strides = [1, 1]} : vector<24x128xf32> to vector<16x128xf32>
    %333 = arith.addf %332, %49 : vector<16x128xf32>
    %334 = arith.truncf %331 : vector<18x256xf32> to vector<18x256xbf16>
    %335 = arith.extf %334 : vector<18x256xbf16> to vector<18x256xf32>
    %336 = arith.subf %331, %335 : vector<18x256xf32>
    %337 = arith.truncf %336 : vector<18x256xf32> to vector<18x256xbf16>
    %cst_82 = arith.constant dense<0.000000e+00> : vector<18x128xf32>
    %338 = tpu.matmul %334, %2, %cst_82 {dimension_numbers = #tpu.dot_dimension_numbers<[1], [0], [0], [1], [0, 0, 1, 1], [], []>} : vector<18x256xbf16>, vector<256x128xbf16>, vector<18x128xf32> -> vector<18x128xf32>
    %cst_83 = arith.constant dense<0.000000e+00> : vector<18x128xf32>
    %339 = tpu.matmul %337, %2, %cst_83 {dimension_numbers = #tpu.dot_dimension_numbers<[1], [0], [0], [1], [0, 0, 1, 1], [], []>} : vector<18x256xbf16>, vector<256x128xbf16>, vector<18x128xf32> -> vector<18x128xf32>
    %340 = arith.addf %338, %339 : vector<18x128xf32>
    %341 = vector.extract_strided_slice %340 {offsets = [0, 0], sizes = [17, 128], strides = [1, 1]} : vector<18x128xf32> to vector<17x128xf32>
    %342 = vector.extract_strided_slice %340 {offsets = [1, 0], sizes = [17, 128], strides = [1, 1]} : vector<18x128xf32> to vector<17x128xf32>
    %343 = arith.addf %341, %342 : vector<17x128xf32>
    %344 = vector.extract_strided_slice %343 {offsets = [0, 0], sizes = [16, 128], strides = [1, 1]} : vector<17x128xf32> to vector<16x128xf32>
    %345 = vector.extract_strided_slice %340 {offsets = [2, 0], sizes = [16, 128], strides = [1, 1]} : vector<18x128xf32> to vector<16x128xf32>
    %346 = arith.addf %344, %345 : vector<16x128xf32>
    %cst_84 = arith.constant 2.000000e+00 : f32
    %347 = vector.broadcast %cst_84 : f32 to vector<16x128xf32>
    %348 = arith.mulf %347, %346 : vector<16x128xf32>
    %349 = arith.subf %333, %348 : vector<16x128xf32>
    %cst_85 = arith.constant 0.000000e+00 : f32
    %350 = vector.broadcast %cst_85 : f32 to vector<16x128xf32>
    %351 = arith.maximumf %349, %350 : vector<16x128xf32>
    %c0_86 = arith.constant 0 : index
    %c11 = arith.constant 11 : index
    %c0_87 = arith.constant 0 : index
    %c0_88 = arith.constant 0 : index
    %352 = vector.load %arg5[%c0_86, %c11, %c0_87, %c0_88] : memref<1x16x16x128xf32, #tpu.memory_space<vmem>>, vector<1x1x16x128xf32>
    %353 = vector.shape_cast %352 : vector<1x1x16x128xf32> to vector<16x128xf32>
    %354 = vector.shape_cast %351 : vector<16x128xf32> to vector<1x1x16x128xf32>
    tpu.vector_store %arg5[%c0_86, %c11, %c0_87, %c0_88], %354 {strides = array<i32>} : memref<1x16x16x128xf32, #tpu.memory_space<vmem>>, vector<1x1x16x128xf32>,
    %355 = vector.extract_strided_slice %13 {offsets = [4, 0], sizes = [26, 256], strides = [1, 1]} : vector<33x256xf32> to vector<26x256xf32>
    %356 = vector.extract_strided_slice %16 {offsets = [4, 0], sizes = [26, 256], strides = [1, 1]} : vector<33x256xf32> to vector<26x256xf32>
    %357 = vector.extract_strided_slice %19 {offsets = [4, 0], sizes = [26, 256], strides = [1, 1]} : vector<33x256xf32> to vector<26x256xf32>
    %358 = vector.extract_strided_slice %22 {offsets = [4, 0], sizes = [26, 256], strides = [1, 1]} : vector<33x256xf32> to vector<26x256xf32>
    %359 = vector.extract_strided_slice %62 {offsets = [4, 0], sizes = [24, 128], strides = [1, 1]} : vector<31x128xf32> to vector<24x128xf32>
    %360 = vector.extract_strided_slice %355 {offsets = [0, 0], sizes = [18, 256], strides = [1, 1]} : vector<26x256xf32> to vector<18x256xf32>
    %361 = arith.mulf %360, %4 : vector<18x256xf32>
    %362 = vector.extract_strided_slice %356 {offsets = [0, 0], sizes = [18, 256], strides = [1, 1]} : vector<26x256xf32> to vector<18x256xf32>
    %363 = arith.mulf %362, %6 : vector<18x256xf32>
    %364 = arith.addf %361, %363 : vector<18x256xf32>
    %365 = vector.extract_strided_slice %357 {offsets = [0, 0], sizes = [18, 256], strides = [1, 1]} : vector<26x256xf32> to vector<18x256xf32>
    %366 = arith.mulf %365, %8 : vector<18x256xf32>
    %367 = arith.addf %364, %366 : vector<18x256xf32>
    %368 = vector.extract_strided_slice %358 {offsets = [0, 0], sizes = [18, 256], strides = [1, 1]} : vector<26x256xf32> to vector<18x256xf32>
    %369 = arith.mulf %368, %10 : vector<18x256xf32>
    %370 = arith.addf %367, %369 : vector<18x256xf32>
    %371 = vector.extract_strided_slice %359 {offsets = [0, 0], sizes = [16, 128], strides = [1, 1]} : vector<24x128xf32> to vector<16x128xf32>
    %372 = arith.addf %371, %49 : vector<16x128xf32>
    %373 = arith.truncf %370 : vector<18x256xf32> to vector<18x256xbf16>
    %374 = arith.extf %373 : vector<18x256xbf16> to vector<18x256xf32>
    %375 = arith.subf %370, %374 : vector<18x256xf32>
    %376 = arith.truncf %375 : vector<18x256xf32> to vector<18x256xbf16>
    %cst_89 = arith.constant dense<0.000000e+00> : vector<18x128xf32>
    %377 = tpu.matmul %373, %2, %cst_89 {dimension_numbers = #tpu.dot_dimension_numbers<[1], [0], [0], [1], [0, 0, 1, 1], [], []>} : vector<18x256xbf16>, vector<256x128xbf16>, vector<18x128xf32> -> vector<18x128xf32>
    %cst_90 = arith.constant dense<0.000000e+00> : vector<18x128xf32>
    %378 = tpu.matmul %376, %2, %cst_90 {dimension_numbers = #tpu.dot_dimension_numbers<[1], [0], [0], [1], [0, 0, 1, 1], [], []>} : vector<18x256xbf16>, vector<256x128xbf16>, vector<18x128xf32> -> vector<18x128xf32>
    %379 = arith.addf %377, %378 : vector<18x128xf32>
    %380 = vector.extract_strided_slice %379 {offsets = [0, 0], sizes = [17, 128], strides = [1, 1]} : vector<18x128xf32> to vector<17x128xf32>
    %381 = vector.extract_strided_slice %379 {offsets = [1, 0], sizes = [17, 128], strides = [1, 1]} : vector<18x128xf32> to vector<17x128xf32>
    %382 = arith.addf %380, %381 : vector<17x128xf32>
    %383 = vector.extract_strided_slice %382 {offsets = [0, 0], sizes = [16, 128], strides = [1, 1]} : vector<17x128xf32> to vector<16x128xf32>
    %384 = vector.extract_strided_slice %379 {offsets = [2, 0], sizes = [16, 128], strides = [1, 1]} : vector<18x128xf32> to vector<16x128xf32>
    %385 = arith.addf %383, %384 : vector<16x128xf32>
    %cst_91 = arith.constant 2.000000e+00 : f32
    %386 = vector.broadcast %cst_91 : f32 to vector<16x128xf32>
    %387 = arith.mulf %386, %385 : vector<16x128xf32>
    %388 = arith.subf %372, %387 : vector<16x128xf32>
    %cst_92 = arith.constant 0.000000e+00 : f32
    %389 = vector.broadcast %cst_92 : f32 to vector<16x128xf32>
    %390 = arith.maximumf %388, %389 : vector<16x128xf32>
    %c0_93 = arith.constant 0 : index
    %c4 = arith.constant 4 : index
    %c0_94 = arith.constant 0 : index
    %c0_95 = arith.constant 0 : index
    %391 = vector.load %arg5[%c0_93, %c4, %c0_94, %c0_95] : memref<1x16x16x128xf32, #tpu.memory_space<vmem>>, vector<1x1x16x128xf32>
    %392 = vector.shape_cast %391 : vector<1x1x16x128xf32> to vector<16x128xf32>
    %393 = vector.shape_cast %390 : vector<16x128xf32> to vector<1x1x16x128xf32>
    tpu.vector_store %arg5[%c0_93, %c4, %c0_94, %c0_95], %393 {strides = array<i32>} : memref<1x16x16x128xf32, #tpu.memory_space<vmem>>, vector<1x1x16x128xf32>,
    %394 = vector.extract_strided_slice %355 {offsets = [8, 0], sizes = [18, 256], strides = [1, 1]} : vector<26x256xf32> to vector<18x256xf32>
    %395 = arith.mulf %394, %4 : vector<18x256xf32>
    %396 = vector.extract_strided_slice %356 {offsets = [8, 0], sizes = [18, 256], strides = [1, 1]} : vector<26x256xf32> to vector<18x256xf32>
    %397 = arith.mulf %396, %6 : vector<18x256xf32>
    %398 = arith.addf %395, %397 : vector<18x256xf32>
    %399 = vector.extract_strided_slice %357 {offsets = [8, 0], sizes = [18, 256], strides = [1, 1]} : vector<26x256xf32> to vector<18x256xf32>
    %400 = arith.mulf %399, %8 : vector<18x256xf32>
    %401 = arith.addf %398, %400 : vector<18x256xf32>
    %402 = vector.extract_strided_slice %358 {offsets = [8, 0], sizes = [18, 256], strides = [1, 1]} : vector<26x256xf32> to vector<18x256xf32>
    %403 = arith.mulf %402, %10 : vector<18x256xf32>
    %404 = arith.addf %401, %403 : vector<18x256xf32>
    %405 = vector.extract_strided_slice %359 {offsets = [8, 0], sizes = [16, 128], strides = [1, 1]} : vector<24x128xf32> to vector<16x128xf32>
    %406 = arith.addf %405, %49 : vector<16x128xf32>
    %407 = arith.truncf %404 : vector<18x256xf32> to vector<18x256xbf16>
    %408 = arith.extf %407 : vector<18x256xbf16> to vector<18x256xf32>
    %409 = arith.subf %404, %408 : vector<18x256xf32>
    %410 = arith.truncf %409 : vector<18x256xf32> to vector<18x256xbf16>
    %cst_96 = arith.constant dense<0.000000e+00> : vector<18x128xf32>
    %411 = tpu.matmul %407, %2, %cst_96 {dimension_numbers = #tpu.dot_dimension_numbers<[1], [0], [0], [1], [0, 0, 1, 1], [], []>} : vector<18x256xbf16>, vector<256x128xbf16>, vector<18x128xf32> -> vector<18x128xf32>
    %cst_97 = arith.constant dense<0.000000e+00> : vector<18x128xf32>
    %412 = tpu.matmul %410, %2, %cst_97 {dimension_numbers = #tpu.dot_dimension_numbers<[1], [0], [0], [1], [0, 0, 1, 1], [], []>} : vector<18x256xbf16>, vector<256x128xbf16>, vector<18x128xf32> -> vector<18x128xf32>
    %413 = arith.addf %411, %412 : vector<18x128xf32>
    %414 = vector.extract_strided_slice %413 {offsets = [0, 0], sizes = [17, 128], strides = [1, 1]} : vector<18x128xf32> to vector<17x128xf32>
    %415 = vector.extract_strided_slice %413 {offsets = [1, 0], sizes = [17, 128], strides = [1, 1]} : vector<18x128xf32> to vector<17x128xf32>
    %416 = arith.addf %414, %415 : vector<17x128xf32>
    %417 = vector.extract_strided_slice %416 {offsets = [0, 0], sizes = [16, 128], strides = [1, 1]} : vector<17x128xf32> to vector<16x128xf32>
    %418 = vector.extract_strided_slice %413 {offsets = [2, 0], sizes = [16, 128], strides = [1, 1]} : vector<18x128xf32> to vector<16x128xf32>
    %419 = arith.addf %417, %418 : vector<16x128xf32>
    %cst_98 = arith.constant 2.000000e+00 : f32
    %420 = vector.broadcast %cst_98 : f32 to vector<16x128xf32>
    %421 = arith.mulf %420, %419 : vector<16x128xf32>
    %422 = arith.subf %406, %421 : vector<16x128xf32>
    %cst_99 = arith.constant 0.000000e+00 : f32
    %423 = vector.broadcast %cst_99 : f32 to vector<16x128xf32>
    %424 = arith.maximumf %422, %423 : vector<16x128xf32>
    %c0_100 = arith.constant 0 : index
    %c12 = arith.constant 12 : index
    %c0_101 = arith.constant 0 : index
    %c0_102 = arith.constant 0 : index
    %425 = vector.load %arg5[%c0_100, %c12, %c0_101, %c0_102] : memref<1x16x16x128xf32, #tpu.memory_space<vmem>>, vector<1x1x16x128xf32>
    %426 = vector.shape_cast %425 : vector<1x1x16x128xf32> to vector<16x128xf32>
    %427 = vector.shape_cast %424 : vector<16x128xf32> to vector<1x1x16x128xf32>
    tpu.vector_store %arg5[%c0_100, %c12, %c0_101, %c0_102], %427 {strides = array<i32>} : memref<1x16x16x128xf32, #tpu.memory_space<vmem>>, vector<1x1x16x128xf32>,
    %428 = vector.extract_strided_slice %13 {offsets = [5, 0], sizes = [26, 256], strides = [1, 1]} : vector<33x256xf32> to vector<26x256xf32>
    %429 = vector.extract_strided_slice %16 {offsets = [5, 0], sizes = [26, 256], strides = [1, 1]} : vector<33x256xf32> to vector<26x256xf32>
    %430 = vector.extract_strided_slice %19 {offsets = [5, 0], sizes = [26, 256], strides = [1, 1]} : vector<33x256xf32> to vector<26x256xf32>
    %431 = vector.extract_strided_slice %22 {offsets = [5, 0], sizes = [26, 256], strides = [1, 1]} : vector<33x256xf32> to vector<26x256xf32>
    %432 = vector.extract_strided_slice %62 {offsets = [5, 0], sizes = [24, 128], strides = [1, 1]} : vector<31x128xf32> to vector<24x128xf32>
    %433 = vector.extract_strided_slice %428 {offsets = [0, 0], sizes = [18, 256], strides = [1, 1]} : vector<26x256xf32> to vector<18x256xf32>
    %434 = arith.mulf %433, %4 : vector<18x256xf32>
    %435 = vector.extract_strided_slice %429 {offsets = [0, 0], sizes = [18, 256], strides = [1, 1]} : vector<26x256xf32> to vector<18x256xf32>
    %436 = arith.mulf %435, %6 : vector<18x256xf32>
    %437 = arith.addf %434, %436 : vector<18x256xf32>
    %438 = vector.extract_strided_slice %430 {offsets = [0, 0], sizes = [18, 256], strides = [1, 1]} : vector<26x256xf32> to vector<18x256xf32>
    %439 = arith.mulf %438, %8 : vector<18x256xf32>
    %440 = arith.addf %437, %439 : vector<18x256xf32>
    %441 = vector.extract_strided_slice %431 {offsets = [0, 0], sizes = [18, 256], strides = [1, 1]} : vector<26x256xf32> to vector<18x256xf32>
    %442 = arith.mulf %441, %10 : vector<18x256xf32>
    %443 = arith.addf %440, %442 : vector<18x256xf32>
    %444 = vector.extract_strided_slice %432 {offsets = [0, 0], sizes = [16, 128], strides = [1, 1]} : vector<24x128xf32> to vector<16x128xf32>
    %445 = arith.addf %444, %49 : vector<16x128xf32>
    %446 = arith.truncf %443 : vector<18x256xf32> to vector<18x256xbf16>
    %447 = arith.extf %446 : vector<18x256xbf16> to vector<18x256xf32>
    %448 = arith.subf %443, %447 : vector<18x256xf32>
    %449 = arith.truncf %448 : vector<18x256xf32> to vector<18x256xbf16>
    %cst_103 = arith.constant dense<0.000000e+00> : vector<18x128xf32>
    %450 = tpu.matmul %446, %2, %cst_103 {dimension_numbers = #tpu.dot_dimension_numbers<[1], [0], [0], [1], [0, 0, 1, 1], [], []>} : vector<18x256xbf16>, vector<256x128xbf16>, vector<18x128xf32> -> vector<18x128xf32>
    %cst_104 = arith.constant dense<0.000000e+00> : vector<18x128xf32>
    %451 = tpu.matmul %449, %2, %cst_104 {dimension_numbers = #tpu.dot_dimension_numbers<[1], [0], [0], [1], [0, 0, 1, 1], [], []>} : vector<18x256xbf16>, vector<256x128xbf16>, vector<18x128xf32> -> vector<18x128xf32>
    %452 = arith.addf %450, %451 : vector<18x128xf32>
    %453 = vector.extract_strided_slice %452 {offsets = [0, 0], sizes = [17, 128], strides = [1, 1]} : vector<18x128xf32> to vector<17x128xf32>
    %454 = vector.extract_strided_slice %452 {offsets = [1, 0], sizes = [17, 128], strides = [1, 1]} : vector<18x128xf32> to vector<17x128xf32>
    %455 = arith.addf %453, %454 : vector<17x128xf32>
    %456 = vector.extract_strided_slice %455 {offsets = [0, 0], sizes = [16, 128], strides = [1, 1]} : vector<17x128xf32> to vector<16x128xf32>
    %457 = vector.extract_strided_slice %452 {offsets = [2, 0], sizes = [16, 128], strides = [1, 1]} : vector<18x128xf32> to vector<16x128xf32>
    %458 = arith.addf %456, %457 : vector<16x128xf32>
    %cst_105 = arith.constant 2.000000e+00 : f32
    %459 = vector.broadcast %cst_105 : f32 to vector<16x128xf32>
    %460 = arith.mulf %459, %458 : vector<16x128xf32>
    %461 = arith.subf %445, %460 : vector<16x128xf32>
    %cst_106 = arith.constant 0.000000e+00 : f32
    %462 = vector.broadcast %cst_106 : f32 to vector<16x128xf32>
    %463 = arith.maximumf %461, %462 : vector<16x128xf32>
    %c0_107 = arith.constant 0 : index
    %c5 = arith.constant 5 : index
    %c0_108 = arith.constant 0 : index
    %c0_109 = arith.constant 0 : index
    %464 = vector.load %arg5[%c0_107, %c5, %c0_108, %c0_109] : memref<1x16x16x128xf32, #tpu.memory_space<vmem>>, vector<1x1x16x128xf32>
    %465 = vector.shape_cast %464 : vector<1x1x16x128xf32> to vector<16x128xf32>
    %466 = vector.shape_cast %463 : vector<16x128xf32> to vector<1x1x16x128xf32>
    tpu.vector_store %arg5[%c0_107, %c5, %c0_108, %c0_109], %466 {strides = array<i32>} : memref<1x16x16x128xf32, #tpu.memory_space<vmem>>, vector<1x1x16x128xf32>,
    %467 = vector.extract_strided_slice %428 {offsets = [8, 0], sizes = [18, 256], strides = [1, 1]} : vector<26x256xf32> to vector<18x256xf32>
    %468 = arith.mulf %467, %4 : vector<18x256xf32>
    %469 = vector.extract_strided_slice %429 {offsets = [8, 0], sizes = [18, 256], strides = [1, 1]} : vector<26x256xf32> to vector<18x256xf32>
    %470 = arith.mulf %469, %6 : vector<18x256xf32>
    %471 = arith.addf %468, %470 : vector<18x256xf32>
    %472 = vector.extract_strided_slice %430 {offsets = [8, 0], sizes = [18, 256], strides = [1, 1]} : vector<26x256xf32> to vector<18x256xf32>
    %473 = arith.mulf %472, %8 : vector<18x256xf32>
    %474 = arith.addf %471, %473 : vector<18x256xf32>
    %475 = vector.extract_strided_slice %431 {offsets = [8, 0], sizes = [18, 256], strides = [1, 1]} : vector<26x256xf32> to vector<18x256xf32>
    %476 = arith.mulf %475, %10 : vector<18x256xf32>
    %477 = arith.addf %474, %476 : vector<18x256xf32>
    %478 = vector.extract_strided_slice %432 {offsets = [8, 0], sizes = [16, 128], strides = [1, 1]} : vector<24x128xf32> to vector<16x128xf32>
    %479 = arith.addf %478, %49 : vector<16x128xf32>
    %480 = arith.truncf %477 : vector<18x256xf32> to vector<18x256xbf16>
    %481 = arith.extf %480 : vector<18x256xbf16> to vector<18x256xf32>
    %482 = arith.subf %477, %481 : vector<18x256xf32>
    %483 = arith.truncf %482 : vector<18x256xf32> to vector<18x256xbf16>
    %cst_110 = arith.constant dense<0.000000e+00> : vector<18x128xf32>
    %484 = tpu.matmul %480, %2, %cst_110 {dimension_numbers = #tpu.dot_dimension_numbers<[1], [0], [0], [1], [0, 0, 1, 1], [], []>} : vector<18x256xbf16>, vector<256x128xbf16>, vector<18x128xf32> -> vector<18x128xf32>
    %cst_111 = arith.constant dense<0.000000e+00> : vector<18x128xf32>
    %485 = tpu.matmul %483, %2, %cst_111 {dimension_numbers = #tpu.dot_dimension_numbers<[1], [0], [0], [1], [0, 0, 1, 1], [], []>} : vector<18x256xbf16>, vector<256x128xbf16>, vector<18x128xf32> -> vector<18x128xf32>
    %486 = arith.addf %484, %485 : vector<18x128xf32>
    %487 = vector.extract_strided_slice %486 {offsets = [0, 0], sizes = [17, 128], strides = [1, 1]} : vector<18x128xf32> to vector<17x128xf32>
    %488 = vector.extract_strided_slice %486 {offsets = [1, 0], sizes = [17, 128], strides = [1, 1]} : vector<18x128xf32> to vector<17x128xf32>
    %489 = arith.addf %487, %488 : vector<17x128xf32>
    %490 = vector.extract_strided_slice %489 {offsets = [0, 0], sizes = [16, 128], strides = [1, 1]} : vector<17x128xf32> to vector<16x128xf32>
    %491 = vector.extract_strided_slice %486 {offsets = [2, 0], sizes = [16, 128], strides = [1, 1]} : vector<18x128xf32> to vector<16x128xf32>
    %492 = arith.addf %490, %491 : vector<16x128xf32>
    %cst_112 = arith.constant 2.000000e+00 : f32
    %493 = vector.broadcast %cst_112 : f32 to vector<16x128xf32>
    %494 = arith.mulf %493, %492 : vector<16x128xf32>
    %495 = arith.subf %479, %494 : vector<16x128xf32>
    %cst_113 = arith.constant 0.000000e+00 : f32
    %496 = vector.broadcast %cst_113 : f32 to vector<16x128xf32>
    %497 = arith.maximumf %495, %496 : vector<16x128xf32>
    %c0_114 = arith.constant 0 : index
    %c13 = arith.constant 13 : index
    %c0_115 = arith.constant 0 : index
    %c0_116 = arith.constant 0 : index
    %498 = vector.load %arg5[%c0_114, %c13, %c0_115, %c0_116] : memref<1x16x16x128xf32, #tpu.memory_space<vmem>>, vector<1x1x16x128xf32>
    %499 = vector.shape_cast %498 : vector<1x1x16x128xf32> to vector<16x128xf32>
    %500 = vector.shape_cast %497 : vector<16x128xf32> to vector<1x1x16x128xf32>
    tpu.vector_store %arg5[%c0_114, %c13, %c0_115, %c0_116], %500 {strides = array<i32>} : memref<1x16x16x128xf32, #tpu.memory_space<vmem>>, vector<1x1x16x128xf32>,
    %501 = vector.extract_strided_slice %13 {offsets = [6, 0], sizes = [26, 256], strides = [1, 1]} : vector<33x256xf32> to vector<26x256xf32>
    %502 = vector.extract_strided_slice %16 {offsets = [6, 0], sizes = [26, 256], strides = [1, 1]} : vector<33x256xf32> to vector<26x256xf32>
    %503 = vector.extract_strided_slice %19 {offsets = [6, 0], sizes = [26, 256], strides = [1, 1]} : vector<33x256xf32> to vector<26x256xf32>
    %504 = vector.extract_strided_slice %22 {offsets = [6, 0], sizes = [26, 256], strides = [1, 1]} : vector<33x256xf32> to vector<26x256xf32>
    %505 = vector.extract_strided_slice %62 {offsets = [6, 0], sizes = [24, 128], strides = [1, 1]} : vector<31x128xf32> to vector<24x128xf32>
    %506 = vector.extract_strided_slice %501 {offsets = [0, 0], sizes = [18, 256], strides = [1, 1]} : vector<26x256xf32> to vector<18x256xf32>
    %507 = arith.mulf %506, %4 : vector<18x256xf32>
    %508 = vector.extract_strided_slice %502 {offsets = [0, 0], sizes = [18, 256], strides = [1, 1]} : vector<26x256xf32> to vector<18x256xf32>
    %509 = arith.mulf %508, %6 : vector<18x256xf32>
    %510 = arith.addf %507, %509 : vector<18x256xf32>
    %511 = vector.extract_strided_slice %503 {offsets = [0, 0], sizes = [18, 256], strides = [1, 1]} : vector<26x256xf32> to vector<18x256xf32>
    %512 = arith.mulf %511, %8 : vector<18x256xf32>
    %513 = arith.addf %510, %512 : vector<18x256xf32>
    %514 = vector.extract_strided_slice %504 {offsets = [0, 0], sizes = [18, 256], strides = [1, 1]} : vector<26x256xf32> to vector<18x256xf32>
    %515 = arith.mulf %514, %10 : vector<18x256xf32>
    %516 = arith.addf %513, %515 : vector<18x256xf32>
    %517 = vector.extract_strided_slice %505 {offsets = [0, 0], sizes = [16, 128], strides = [1, 1]} : vector<24x128xf32> to vector<16x128xf32>
    %518 = arith.addf %517, %49 : vector<16x128xf32>
    %519 = arith.truncf %516 : vector<18x256xf32> to vector<18x256xbf16>
    %520 = arith.extf %519 : vector<18x256xbf16> to vector<18x256xf32>
    %521 = arith.subf %516, %520 : vector<18x256xf32>
    %522 = arith.truncf %521 : vector<18x256xf32> to vector<18x256xbf16>
    %cst_117 = arith.constant dense<0.000000e+00> : vector<18x128xf32>
    %523 = tpu.matmul %519, %2, %cst_117 {dimension_numbers = #tpu.dot_dimension_numbers<[1], [0], [0], [1], [0, 0, 1, 1], [], []>} : vector<18x256xbf16>, vector<256x128xbf16>, vector<18x128xf32> -> vector<18x128xf32>
    %cst_118 = arith.constant dense<0.000000e+00> : vector<18x128xf32>
    %524 = tpu.matmul %522, %2, %cst_118 {dimension_numbers = #tpu.dot_dimension_numbers<[1], [0], [0], [1], [0, 0, 1, 1], [], []>} : vector<18x256xbf16>, vector<256x128xbf16>, vector<18x128xf32> -> vector<18x128xf32>
    %525 = arith.addf %523, %524 : vector<18x128xf32>
    %526 = vector.extract_strided_slice %525 {offsets = [0, 0], sizes = [17, 128], strides = [1, 1]} : vector<18x128xf32> to vector<17x128xf32>
    %527 = vector.extract_strided_slice %525 {offsets = [1, 0], sizes = [17, 128], strides = [1, 1]} : vector<18x128xf32> to vector<17x128xf32>
    %528 = arith.addf %526, %527 : vector<17x128xf32>
    %529 = vector.extract_strided_slice %528 {offsets = [0, 0], sizes = [16, 128], strides = [1, 1]} : vector<17x128xf32> to vector<16x128xf32>
    %530 = vector.extract_strided_slice %525 {offsets = [2, 0], sizes = [16, 128], strides = [1, 1]} : vector<18x128xf32> to vector<16x128xf32>
    %531 = arith.addf %529, %530 : vector<16x128xf32>
    %cst_119 = arith.constant 2.000000e+00 : f32
    %532 = vector.broadcast %cst_119 : f32 to vector<16x128xf32>
    %533 = arith.mulf %532, %531 : vector<16x128xf32>
    %534 = arith.subf %518, %533 : vector<16x128xf32>
    %cst_120 = arith.constant 0.000000e+00 : f32
    %535 = vector.broadcast %cst_120 : f32 to vector<16x128xf32>
    %536 = arith.maximumf %534, %535 : vector<16x128xf32>
    %c0_121 = arith.constant 0 : index
    %c6 = arith.constant 6 : index
    %c0_122 = arith.constant 0 : index
    %c0_123 = arith.constant 0 : index
    %537 = vector.load %arg5[%c0_121, %c6, %c0_122, %c0_123] : memref<1x16x16x128xf32, #tpu.memory_space<vmem>>, vector<1x1x16x128xf32>
    %538 = vector.shape_cast %537 : vector<1x1x16x128xf32> to vector<16x128xf32>
    %539 = vector.shape_cast %536 : vector<16x128xf32> to vector<1x1x16x128xf32>
    tpu.vector_store %arg5[%c0_121, %c6, %c0_122, %c0_123], %539 {strides = array<i32>} : memref<1x16x16x128xf32, #tpu.memory_space<vmem>>, vector<1x1x16x128xf32>,
    %540 = vector.extract_strided_slice %501 {offsets = [8, 0], sizes = [18, 256], strides = [1, 1]} : vector<26x256xf32> to vector<18x256xf32>
    %541 = arith.mulf %540, %4 : vector<18x256xf32>
    %542 = vector.extract_strided_slice %502 {offsets = [8, 0], sizes = [18, 256], strides = [1, 1]} : vector<26x256xf32> to vector<18x256xf32>
    %543 = arith.mulf %542, %6 : vector<18x256xf32>
    %544 = arith.addf %541, %543 : vector<18x256xf32>
    %545 = vector.extract_strided_slice %503 {offsets = [8, 0], sizes = [18, 256], strides = [1, 1]} : vector<26x256xf32> to vector<18x256xf32>
    %546 = arith.mulf %545, %8 : vector<18x256xf32>
    %547 = arith.addf %544, %546 : vector<18x256xf32>
    %548 = vector.extract_strided_slice %504 {offsets = [8, 0], sizes = [18, 256], strides = [1, 1]} : vector<26x256xf32> to vector<18x256xf32>
    %549 = arith.mulf %548, %10 : vector<18x256xf32>
    %550 = arith.addf %547, %549 : vector<18x256xf32>
    %551 = vector.extract_strided_slice %505 {offsets = [8, 0], sizes = [16, 128], strides = [1, 1]} : vector<24x128xf32> to vector<16x128xf32>
    %552 = arith.addf %551, %49 : vector<16x128xf32>
    %553 = arith.truncf %550 : vector<18x256xf32> to vector<18x256xbf16>
    %554 = arith.extf %553 : vector<18x256xbf16> to vector<18x256xf32>
    %555 = arith.subf %550, %554 : vector<18x256xf32>
    %556 = arith.truncf %555 : vector<18x256xf32> to vector<18x256xbf16>
    %cst_124 = arith.constant dense<0.000000e+00> : vector<18x128xf32>
    %557 = tpu.matmul %553, %2, %cst_124 {dimension_numbers = #tpu.dot_dimension_numbers<[1], [0], [0], [1], [0, 0, 1, 1], [], []>} : vector<18x256xbf16>, vector<256x128xbf16>, vector<18x128xf32> -> vector<18x128xf32>
    %cst_125 = arith.constant dense<0.000000e+00> : vector<18x128xf32>
    %558 = tpu.matmul %556, %2, %cst_125 {dimension_numbers = #tpu.dot_dimension_numbers<[1], [0], [0], [1], [0, 0, 1, 1], [], []>} : vector<18x256xbf16>, vector<256x128xbf16>, vector<18x128xf32> -> vector<18x128xf32>
    %559 = arith.addf %557, %558 : vector<18x128xf32>
    %560 = vector.extract_strided_slice %559 {offsets = [0, 0], sizes = [17, 128], strides = [1, 1]} : vector<18x128xf32> to vector<17x128xf32>
    %561 = vector.extract_strided_slice %559 {offsets = [1, 0], sizes = [17, 128], strides = [1, 1]} : vector<18x128xf32> to vector<17x128xf32>
    %562 = arith.addf %560, %561 : vector<17x128xf32>
    %563 = vector.extract_strided_slice %562 {offsets = [0, 0], sizes = [16, 128], strides = [1, 1]} : vector<17x128xf32> to vector<16x128xf32>
    %564 = vector.extract_strided_slice %559 {offsets = [2, 0], sizes = [16, 128], strides = [1, 1]} : vector<18x128xf32> to vector<16x128xf32>
    %565 = arith.addf %563, %564 : vector<16x128xf32>
    %cst_126 = arith.constant 2.000000e+00 : f32
    %566 = vector.broadcast %cst_126 : f32 to vector<16x128xf32>
    %567 = arith.mulf %566, %565 : vector<16x128xf32>
    %568 = arith.subf %552, %567 : vector<16x128xf32>
    %cst_127 = arith.constant 0.000000e+00 : f32
    %569 = vector.broadcast %cst_127 : f32 to vector<16x128xf32>
    %570 = arith.maximumf %568, %569 : vector<16x128xf32>
    %c0_128 = arith.constant 0 : index
    %c14 = arith.constant 14 : index
    %c0_129 = arith.constant 0 : index
    %c0_130 = arith.constant 0 : index
    %571 = vector.load %arg5[%c0_128, %c14, %c0_129, %c0_130] : memref<1x16x16x128xf32, #tpu.memory_space<vmem>>, vector<1x1x16x128xf32>
    %572 = vector.shape_cast %571 : vector<1x1x16x128xf32> to vector<16x128xf32>
    %573 = vector.shape_cast %570 : vector<16x128xf32> to vector<1x1x16x128xf32>
    tpu.vector_store %arg5[%c0_128, %c14, %c0_129, %c0_130], %573 {strides = array<i32>} : memref<1x16x16x128xf32, #tpu.memory_space<vmem>>, vector<1x1x16x128xf32>,
    %574 = vector.extract_strided_slice %13 {offsets = [7, 0], sizes = [26, 256], strides = [1, 1]} : vector<33x256xf32> to vector<26x256xf32>
    %575 = vector.extract_strided_slice %16 {offsets = [7, 0], sizes = [26, 256], strides = [1, 1]} : vector<33x256xf32> to vector<26x256xf32>
    %576 = vector.extract_strided_slice %19 {offsets = [7, 0], sizes = [26, 256], strides = [1, 1]} : vector<33x256xf32> to vector<26x256xf32>
    %577 = vector.extract_strided_slice %22 {offsets = [7, 0], sizes = [26, 256], strides = [1, 1]} : vector<33x256xf32> to vector<26x256xf32>
    %578 = vector.extract_strided_slice %62 {offsets = [7, 0], sizes = [24, 128], strides = [1, 1]} : vector<31x128xf32> to vector<24x128xf32>
    %579 = vector.extract_strided_slice %574 {offsets = [0, 0], sizes = [18, 256], strides = [1, 1]} : vector<26x256xf32> to vector<18x256xf32>
    %580 = arith.mulf %579, %4 : vector<18x256xf32>
    %581 = vector.extract_strided_slice %575 {offsets = [0, 0], sizes = [18, 256], strides = [1, 1]} : vector<26x256xf32> to vector<18x256xf32>
    %582 = arith.mulf %581, %6 : vector<18x256xf32>
    %583 = arith.addf %580, %582 : vector<18x256xf32>
    %584 = vector.extract_strided_slice %576 {offsets = [0, 0], sizes = [18, 256], strides = [1, 1]} : vector<26x256xf32> to vector<18x256xf32>
    %585 = arith.mulf %584, %8 : vector<18x256xf32>
    %586 = arith.addf %583, %585 : vector<18x256xf32>
    %587 = vector.extract_strided_slice %577 {offsets = [0, 0], sizes = [18, 256], strides = [1, 1]} : vector<26x256xf32> to vector<18x256xf32>
    %588 = arith.mulf %587, %10 : vector<18x256xf32>
    %589 = arith.addf %586, %588 : vector<18x256xf32>
    %590 = vector.extract_strided_slice %578 {offsets = [0, 0], sizes = [16, 128], strides = [1, 1]} : vector<24x128xf32> to vector<16x128xf32>
    %591 = arith.addf %590, %49 : vector<16x128xf32>
    %592 = arith.truncf %589 : vector<18x256xf32> to vector<18x256xbf16>
    %593 = arith.extf %592 : vector<18x256xbf16> to vector<18x256xf32>
    %594 = arith.subf %589, %593 : vector<18x256xf32>
    %595 = arith.truncf %594 : vector<18x256xf32> to vector<18x256xbf16>
    %cst_131 = arith.constant dense<0.000000e+00> : vector<18x128xf32>
    %596 = tpu.matmul %592, %2, %cst_131 {dimension_numbers = #tpu.dot_dimension_numbers<[1], [0], [0], [1], [0, 0, 1, 1], [], []>} : vector<18x256xbf16>, vector<256x128xbf16>, vector<18x128xf32> -> vector<18x128xf32>
    %cst_132 = arith.constant dense<0.000000e+00> : vector<18x128xf32>
    %597 = tpu.matmul %595, %2, %cst_132 {dimension_numbers = #tpu.dot_dimension_numbers<[1], [0], [0], [1], [0, 0, 1, 1], [], []>} : vector<18x256xbf16>, vector<256x128xbf16>, vector<18x128xf32> -> vector<18x128xf32>
    %598 = arith.addf %596, %597 : vector<18x128xf32>
    %599 = vector.extract_strided_slice %598 {offsets = [0, 0], sizes = [17, 128], strides = [1, 1]} : vector<18x128xf32> to vector<17x128xf32>
    %600 = vector.extract_strided_slice %598 {offsets = [1, 0], sizes = [17, 128], strides = [1, 1]} : vector<18x128xf32> to vector<17x128xf32>
    %601 = arith.addf %599, %600 : vector<17x128xf32>
    %602 = vector.extract_strided_slice %601 {offsets = [0, 0], sizes = [16, 128], strides = [1, 1]} : vector<17x128xf32> to vector<16x128xf32>
    %603 = vector.extract_strided_slice %598 {offsets = [2, 0], sizes = [16, 128], strides = [1, 1]} : vector<18x128xf32> to vector<16x128xf32>
    %604 = arith.addf %602, %603 : vector<16x128xf32>
    %cst_133 = arith.constant 2.000000e+00 : f32
    %605 = vector.broadcast %cst_133 : f32 to vector<16x128xf32>
    %606 = arith.mulf %605, %604 : vector<16x128xf32>
    %607 = arith.subf %591, %606 : vector<16x128xf32>
    %cst_134 = arith.constant 0.000000e+00 : f32
    %608 = vector.broadcast %cst_134 : f32 to vector<16x128xf32>
    %609 = arith.maximumf %607, %608 : vector<16x128xf32>
    %c0_135 = arith.constant 0 : index
    %c7 = arith.constant 7 : index
    %c0_136 = arith.constant 0 : index
    %c0_137 = arith.constant 0 : index
    %610 = vector.load %arg5[%c0_135, %c7, %c0_136, %c0_137] : memref<1x16x16x128xf32, #tpu.memory_space<vmem>>, vector<1x1x16x128xf32>
    %611 = vector.shape_cast %610 : vector<1x1x16x128xf32> to vector<16x128xf32>
    %612 = vector.shape_cast %609 : vector<16x128xf32> to vector<1x1x16x128xf32>
    tpu.vector_store %arg5[%c0_135, %c7, %c0_136, %c0_137], %612 {strides = array<i32>} : memref<1x16x16x128xf32, #tpu.memory_space<vmem>>, vector<1x1x16x128xf32>,
    %613 = vector.extract_strided_slice %574 {offsets = [8, 0], sizes = [18, 256], strides = [1, 1]} : vector<26x256xf32> to vector<18x256xf32>
    %614 = arith.mulf %613, %4 : vector<18x256xf32>
    %615 = vector.extract_strided_slice %575 {offsets = [8, 0], sizes = [18, 256], strides = [1, 1]} : vector<26x256xf32> to vector<18x256xf32>
    %616 = arith.mulf %615, %6 : vector<18x256xf32>
    %617 = arith.addf %614, %616 : vector<18x256xf32>
    %618 = vector.extract_strided_slice %576 {offsets = [8, 0], sizes = [18, 256], strides = [1, 1]} : vector<26x256xf32> to vector<18x256xf32>
    %619 = arith.mulf %618, %8 : vector<18x256xf32>
    %620 = arith.addf %617, %619 : vector<18x256xf32>
    %621 = vector.extract_strided_slice %577 {offsets = [8, 0], sizes = [18, 256], strides = [1, 1]} : vector<26x256xf32> to vector<18x256xf32>
    %622 = arith.mulf %621, %10 : vector<18x256xf32>
    %623 = arith.addf %620, %622 : vector<18x256xf32>
    %624 = vector.extract_strided_slice %578 {offsets = [8, 0], sizes = [16, 128], strides = [1, 1]} : vector<24x128xf32> to vector<16x128xf32>
    %625 = arith.addf %624, %49 : vector<16x128xf32>
    %626 = arith.truncf %623 : vector<18x256xf32> to vector<18x256xbf16>
    %627 = arith.extf %626 : vector<18x256xbf16> to vector<18x256xf32>
    %628 = arith.subf %623, %627 : vector<18x256xf32>
    %629 = arith.truncf %628 : vector<18x256xf32> to vector<18x256xbf16>
    %cst_138 = arith.constant dense<0.000000e+00> : vector<18x128xf32>
    %630 = tpu.matmul %626, %2, %cst_138 {dimension_numbers = #tpu.dot_dimension_numbers<[1], [0], [0], [1], [0, 0, 1, 1], [], []>} : vector<18x256xbf16>, vector<256x128xbf16>, vector<18x128xf32> -> vector<18x128xf32>
    %cst_139 = arith.constant dense<0.000000e+00> : vector<18x128xf32>
    %631 = tpu.matmul %629, %2, %cst_139 {dimension_numbers = #tpu.dot_dimension_numbers<[1], [0], [0], [1], [0, 0, 1, 1], [], []>} : vector<18x256xbf16>, vector<256x128xbf16>, vector<18x128xf32> -> vector<18x128xf32>
    %632 = arith.addf %630, %631 : vector<18x128xf32>
    %633 = vector.extract_strided_slice %632 {offsets = [0, 0], sizes = [17, 128], strides = [1, 1]} : vector<18x128xf32> to vector<17x128xf32>
    %634 = vector.extract_strided_slice %632 {offsets = [1, 0], sizes = [17, 128], strides = [1, 1]} : vector<18x128xf32> to vector<17x128xf32>
    %635 = arith.addf %633, %634 : vector<17x128xf32>
    %636 = vector.extract_strided_slice %635 {offsets = [0, 0], sizes = [16, 128], strides = [1, 1]} : vector<17x128xf32> to vector<16x128xf32>
    %637 = vector.extract_strided_slice %632 {offsets = [2, 0], sizes = [16, 128], strides = [1, 1]} : vector<18x128xf32> to vector<16x128xf32>
    %638 = arith.addf %636, %637 : vector<16x128xf32>
    %cst_140 = arith.constant 2.000000e+00 : f32
    %639 = vector.broadcast %cst_140 : f32 to vector<16x128xf32>
    %640 = arith.mulf %639, %638 : vector<16x128xf32>
    %641 = arith.subf %625, %640 : vector<16x128xf32>
    %cst_141 = arith.constant 0.000000e+00 : f32
    %642 = vector.broadcast %cst_141 : f32 to vector<16x128xf32>
    %643 = arith.maximumf %641, %642 : vector<16x128xf32>
    %c0_142 = arith.constant 0 : index
    %c15 = arith.constant 15 : index
    %c0_143 = arith.constant 0 : index
    %c0_144 = arith.constant 0 : index
    %644 = vector.load %arg5[%c0_142, %c15, %c0_143, %c0_144] : memref<1x16x16x128xf32, #tpu.memory_space<vmem>>, vector<1x1x16x128xf32>
    %645 = vector.shape_cast %644 : vector<1x1x16x128xf32> to vector<16x128xf32>
    %646 = vector.shape_cast %643 : vector<16x128xf32> to vector<1x1x16x128xf32>
    tpu.vector_store %arg5[%c0_142, %c15, %c0_143, %c0_144], %646 {strides = array<i32>} : memref<1x16x16x128xf32, #tpu.memory_space<vmem>>, vector<1x1x16x128xf32>,
    return
  }
  func.func @transform_0(%arg0: i32, %arg1: i32) -> (i32, i32, i32, i32) {
    %c0_i32 = arith.constant 0 : i32
    %c0_i32_0 = arith.constant 0 : i32
    %c0_i32_1 = arith.constant 0 : i32
    %c0_i32_2 = arith.constant 0 : i32
    return %arg0, %c0_i32, %c0_i32_0, %c0_i32_1 : i32, i32, i32, i32
  }
  func.func @transform_1(%arg0: i32, %arg1: i32) -> (i32, i32, i32, i32) {
    %c0_i32 = arith.constant 0 : i32
    %c0_i32_0 = arith.constant 0 : i32
    %c0_i32_1 = arith.constant 0 : i32
    %c0_i32_2 = arith.constant 0 : i32
    return %arg0, %c0_i32, %c0_i32_0, %c0_i32_1 : i32, i32, i32, i32
  }
  func.func @transform_2(%arg0: i32, %arg1: i32) -> (i32, i32) {
    %c0_i32 = arith.constant 0 : i32
    %c0_i32_0 = arith.constant 0 : i32
    %c0_i32_1 = arith.constant 0 : i32
    return %c0_i32, %c0_i32_0 : i32, i32
  }
  func.func @transform_3(%arg0: i32, %arg1: i32) -> (i32, i32, i32, i32) {
    %c0_i32 = arith.constant 0 : i32
    %c0_i32_0 = arith.constant 0 : i32
    %c0_i32_1 = arith.constant 0 : i32
    return %arg0, %arg1, %c0_i32, %c0_i32_0 : i32, i32, i32, i32
  }
}

</mosaic_0001>

<llo_original>
// kernel: tpu_custom_call.1
$region0: #{tpu_custom_call.1}
  #allocation0 [shape = 'u32[]', space=smem, size = 0x4, offset = 0x4, fixed_abs, tag = 'smem constant byte address 0x4 - core index']
  #allocation1 [shape = 'u32[144,128]{1,0:T(1,128)}', space=vmem, size = 0x12000, scoped, tag = 'internal scratch']
  %s0 = inlined_call_operand.vmem [shape: f32[2,4,33,256], index: 0, kind: input, shape index: {}]
  %s1 = inlined_call_operand.vmem [shape: f32[2,4,18,256], index: 1, kind: input, shape index: {}]
  %s2 = inlined_call_operand.vmem [shape: bf16[256,128], index: 2, kind: input, shape index: {}]
  %s3 = inlined_call_operand.hbm [shape: f32[2,16,16,128], index: 3, kind: output, shape index: {}]
  %s4 = sld [smem:[#allocation0]]
  $region45: #{tpu_custom_call.1} parent=0
    _
  %s6 = ssub.s32 1, %s4
  %s7 = scalar_select 0, %s6, %s4
  $region1: #{tpu_custom_call.1} parent=0
    #allocation2 [shape = 'u8[262144]{0}', space=vmem, size = 0x40000, scoped, tag = 'output window, operand 0']
    #allocation3 [shape = 's32[2]{0}', space=sflag, size = 0x8, scoped, tag = 'scoped memory for tpu_custom_call.1']
    %8 = vsyncpa [#allocation3], 0
    %s9 = scalar_lea.sflag [#allocation3], 1
    %10 = vsyncpa %s9, 0
    loop: start=0, step=1, limit=4
    $region2: #{tpu_custom_call.1} parent=1 // loop_pre_header
      _
    $region3: #{tpu_custom_call.1} parent=1 // loop_header
      %s12 = sphi 0, %s16
      %p13 = scmp.ge.s32.totalorder %s12, 4
      %s19 = sphi 0, %s31
      %s20 = sphi 0, %s27
      %s21 = sphi 0, %s19
      %s22 = sphi 0, %s20
      %s23 = sphi 0, %s21
      %s24 = sphi 0, %s22
      %s34 = sphi 0, %s36
      %s37 = sphi 0, %s34
      %s38 = sphi 0, %s37
      %s54 = sphi 0, %s38
      %s60 = sphi 0, %s62
      %s63 = sphi 0, %s60
      %s64 = sphi 0, %s63
      %s80 = sphi 0, %s64
      %s84 = sphi 0, %s84
      %s86 = sphi 0, %s84
      %s87 = sphi 0, %s86
      %s101 = sphi 0, %s87
      %s109 = sphi 0, %s111
      %s112 = sphi 0, %s109
      %s113 = sphi 0, %s112
      %s129 = sphi 0, %s113
    $region4: #{tpu_custom_call.1} parent=1 // loop_header_branch
      %15 = sbr.rel (%p13) target = $region8
    $region5: #{tpu_custom_call.1} parent=1 // loop_body
      %s17 = ssub.s32 %s12, 1
      %s18 = ssub.s32 %s12, 2
      %s25 = sadd.s32 1, %s20
      %p26 = scmp.ge.s32.totalorder %s25, 1
      %s27 = scalar_select %p26, 0, %s25
      %s28 = sadd.s32 1, %s19
      %s29 = scalar_select %p26, %s28, %s19
      %p30 = scmp.ge.s32.totalorder %s29, 2
      %s31 = scalar_select %p30, 0, %s29
      %s32 = ssub.s32 %s19, %s31
      %p33 = scmp.eq.s32.totalorder %s32, 0
      %s35 = sadd.s32 %s34, 1
      %s36 = scalar_select %p33, %s34, %s35
      %p39 = pneg %p33
      %p40 = scmp.eq.s32.totalorder %s12, 1
      %p41 = por %p39, %p40
      %p42 = scmp.ne.s32.totalorder %s34, %s37
      %p43 = scmp.eq.s32.totalorder %s12, 0
      %p44 = por %p42, %p43
      %p45 = scmp.ne.s32.totalorder %s34, %s37
      %p46 = scmp.eq.s32.totalorder %s17, 1
      %p47 = por %p45, %p46
      %p48 = scmp.ne.s32.totalorder %s37, %s38
      %p49 = scmp.eq.s32.totalorder %s17, 0
      %p50 = por %p48, %p49
      %p51 = scmp.ne.s32.totalorder %s37, %s38
      %p52 = scmp.eq.s32.totalorder %s18, 1
      %p53 = por %p51, %p52
      %p55 = scmp.ne.s32.totalorder %s38, %s54
      %p56 = scmp.eq.s32.totalorder %s18, 0
      %p57 = por %p55, %p56
      %s58 = ssub.s32 %s19, %s31
      %p59 = scmp.eq.s32.totalorder %s58, 0
      %s61 = sadd.s32 %s60, 1
      %s62 = scalar_select %p59, %s60, %s61
      %p65 = pneg %p59
      %p66 = scmp.eq.s32.totalorder %s12, 1
      %p67 = por %p65, %p66
      %p68 = scmp.ne.s32.totalorder %s60, %s63
      %p69 = scmp.eq.s32.totalorder %s12, 0
      %p70 = por %p68, %p69
      %p71 = scmp.ne.s32.totalorder %s60, %s63
      %p72 = scmp.eq.s32.totalorder %s17, 1
      %p73 = por %p71, %p72
      %p74 = scmp.ne.s32.totalorder %s63, %s64
      %p75 = scmp.eq.s32.totalorder %s17, 0
      %p76 = por %p74, %p75
      %p77 = scmp.ne.s32.totalorder %s63, %s64
      %p78 = scmp.eq.s32.totalorder %s18, 1
      %p79 = por %p77, %p78
      %p81 = scmp.ne.s32.totalorder %s64, %s80
      %p82 = scmp.eq.s32.totalorder %s18, 0
      %p83 = por %p81, %p82
      %s85 = sadd.s32 %s84, 1
      %p88 = scmp.eq.s32.totalorder %s12, 1
      %p89 = scmp.ne.s32.totalorder %s84, %s86
      %p90 = scmp.eq.s32.totalorder %s12, 0
      %p91 = por %p89, %p90
      %p92 = scmp.ne.s32.totalorder %s84, %s86
      %p93 = scmp.eq.s32.totalorder %s17, 1
      %p94 = por %p92, %p93
      %p95 = scmp.ne.s32.totalorder %s86, %s87
      %p96 = scmp.eq.s32.totalorder %s17, 0
      %p97 = por %p95, %p96
      %p98 = scmp.ne.s32.totalorder %s86, %s87
      %p99 = scmp.eq.s32.totalorder %s18, 1
      %p100 = por %p98, %p99
      %p102 = scmp.ne.s32.totalorder %s87, %s101
      %p103 = scmp.eq.s32.totalorder %s18, 0
      %p104 = por %p102, %p103
      %s105 = ssub.s32 %s19, %s31
      %s106 = ssub.s32 %s20, %s27
      %s107 = sor.u32 %s105, %s106
      %p108 = scmp.eq.s32.totalorder %s107, 0
      %s110 = sadd.s32 %s109, 1
      %s111 = scalar_select %p108, %s109, %s110
      %p114 = pneg %p108
      %p115 = scmp.eq.s32.totalorder %s12, 1
      %p116 = por %p114, %p115
      %p117 = scmp.ne.s32.totalorder %s109, %s112
      %p118 = scmp.eq.s32.totalorder %s12, 0
      %p119 = por %p117, %p118
      %p120 = scmp.ne.s32.totalorder %s109, %s112
      %p121 = scmp.eq.s32.totalorder %s17, 1
      %p122 = por %p120, %p121
      %p123 = scmp.ne.s32.totalorder %s112, %s113
      %p124 = scmp.eq.s32.totalorder %s17, 0
      %p125 = por %p123, %p124
      %p126 = scmp.ne.s32.totalorder %s112, %s113
      %p127 = scmp.eq.s32.totalorder %s18, 1
      %p128 = por %p126, %p127
      %p130 = scmp.ne.s32.totalorder %s113, %s129
      %p131 = scmp.eq.s32.totalorder %s18, 0
      %p132 = por %p130, %p131
      %p133 = scmp.le.s32.totalorder 1, %s12
      %p134 = scmp.lt.s32.totalorder %s12, 3
      %p135 = pnand %p133, %p134
      %p136 = pneg %p135
      // Predicated region
      $region9: #{tpu_custom_call.1} parent=5 // pred_check
        _
      $region10: #{tpu_custom_call.1} parent=5 // pred_check_branch
        %138 = sbr.rel (%p135) target = $region12
      $region11: #{tpu_custom_call.1} parent=5 // pred_region
        %s139 = ssub.s32 %s12, 1
        // Predicated region
        $region13: #{tpu_custom_call.1} parent=11 // pred_check
          %p140 = pneg %p97
        $region14: #{tpu_custom_call.1} parent=11 // pred_check_branch
          %142 = sbr.rel (%p140) target = $region16
        $region15: #{tpu_custom_call.1} parent=11 // pred_region
          _
        $region16: #{tpu_custom_call.1} parent=11 // pred_fallthru
          _
      $region12: #{tpu_custom_call.1} parent=5 // pred_fallthru
        _
      %p143 = scmp.lt.s32.totalorder %s12, 2
      // Predicated region
      $region17: #{tpu_custom_call.1} parent=5 // pred_check
        %p144 = pneg %p143
      $region18: #{tpu_custom_call.1} parent=5 // pred_check_branch
        %146 = sbr.rel (%p144) target = $region20
      $region19: #{tpu_custom_call.1} parent=5 // pred_region
        // Predicated region
        $region21: #{tpu_custom_call.1} parent=19 // pred_check
          %p147 = pneg %p44
        $region22: #{tpu_custom_call.1} parent=19 // pred_check_branch
          %149 = sbr.rel (%p147) target = $region24
        $region23: #{tpu_custom_call.1} parent=19 // pred_region
          %p150 = scmp.lt.s32.totalorder %s19, 1
          %s151 = scalar_select %p150, %s19, 1
          %s152 = smul.addr %s151, 40
          %s153 = smul.addr %s152, 8
          %s154 = scalar_lea.vmem %s0, %s153
        $region24: #{tpu_custom_call.1} parent=19 // pred_fallthru
          _
        // Predicated region
        $region25: #{tpu_custom_call.1} parent=19 // pred_check
          %p155 = pneg %p70
        $region26: #{tpu_custom_call.1} parent=19 // pred_check_branch
          %157 = sbr.rel (%p155) target = $region28
        $region27: #{tpu_custom_call.1} parent=19 // pred_region
          %p158 = scmp.lt.s32.totalorder %s19, 1
          %s159 = scalar_select %p158, %s19, 1
          %s160 = smul.addr %s159, 24
          %s161 = smul.addr %s160, 8
          %s162 = scalar_lea.vmem %s1, %s161
        $region28: #{tpu_custom_call.1} parent=19 // pred_fallthru
          _
      $region20: #{tpu_custom_call.1} parent=5 // pred_fallthru
        _
      %p163 = scmp.le.s32.totalorder 1, %s12
      %p164 = scmp.lt.s32.totalorder %s12, 3
      %p165 = pnand %p163, %p164
      %p166 = pneg %p165
      // Predicated region
      $region29: #{tpu_custom_call.1} parent=5 // pred_check
        _
      $region30: #{tpu_custom_call.1} parent=5 // pred_check_branch
        %168 = sbr.rel (%p165) target = $region32
      $region31: #{tpu_custom_call.1} parent=5 // pred_region
        %s169 = ssub.s32 %s12, 1
        %p170 = scmp.lt.s32.totalorder %s21, 1
        %s171 = scalar_select %p170, %s21, 1
        %s172 = smul.addr %s171, 40
        %s173 = smul.addr %s172, 8
        %s174 = scalar_lea.vmem %s0, %s173
        %p175 = pneg %p50
        %p176 = pneg %p47
        %p177 = scmp.lt.s32.totalorder %s21, 1
        %s178 = scalar_select %p177, %s21, 1
        %s179 = smul.addr %s178, 24
        %s180 = smul.addr %s179, 8
        %s181 = scalar_lea.vmem %s1, %s180
        %p182 = pneg %p76
        %p183 = pneg %p73
        %p184 = pneg %p97
        %p185 = pneg %p94
        %p186 = pneg %p125
        %p187 = pneg %p122
        %s188 = sand.u32 %s112, 1
        %s189 = scalar_lea.sflag [#allocation3], %s188
        %s190 = sand.u32 %s112, 1
        %s191 = smul.addr %s190, 256
        %s192 = scalar_lea.vmem [#allocation2], %s191
        %p193 = scmp.lt.s32.totalorder %s21, 1
        %s194 = scalar_select %p193, %s21, 1
        %s195 = smul.addr %s194, 40
        %s196 = smul.addr %s195, 8
        %s197 = scalar_lea.vmem %s0, %s196
        %p198 = scmp.lt.s32.totalorder %s21, 1
        %s199 = scalar_select %p198, %s21, 1
        %s200 = smul.addr %s199, 24
        %s201 = smul.addr %s200, 8
        %s202 = scalar_lea.vmem %s1, %s201
        %s203 = smul.u32 16, %s22
        %s205 = smul.u32 %s22, 16
        %v206 = vld [vmem:[%s2] sm:$0xf]
        %v207 = vld [vmem:[%s2 + $0x4] sm:$0xf]
        %v208 = vld [vmem:[%s2 + $0x8] sm:$0xf]
        %v209 = vld [vmem:[%s2 + $0xc] sm:$0xf]
        %v210 = vld [vmem:[%s2 + $0x10] sm:$0xf]
        %v211 = vld [vmem:[%s2 + $0x14] sm:$0xf]
        %v212 = vld [vmem:[%s2 + $0x18] sm:$0xf]
        %v213 = vld [vmem:[%s2 + $0x1c] sm:$0xf]
        %v214 = vld [vmem:[%s2 + $0x20] sm:$0xf]
        %v215 = vld [vmem:[%s2 + $0x24] sm:$0xf]
        %v216 = vld [vmem:[%s2 + $0x28] sm:$0xf]
        %v217 = vld [vmem:[%s2 + $0x2c] sm:$0xf]
        %v218 = vld [vmem:[%s2 + $0x30] sm:$0xf]
        %v219 = vld [vmem:[%s2 + $0x34] sm:$0xf]
        %v220 = vld [vmem:[%s2 + $0x38] sm:$0xf]
        %v221 = vld [vmem:[%s2 + $0x3c] sm:$0xf]
        %v222 = vld [vmem:[%s2 + $0x40] sm:$0xf]
        %v223 = vld [vmem:[%s2 + $0x44] sm:$0xf]
        %v224 = vld [vmem:[%s2 + $0x48] sm:$0xf]
        %v225 = vld [vmem:[%s2 + $0x4c] sm:$0xf]
        %v226 = vld [vmem:[%s2 + $0x50] sm:$0xf]
        %v227 = vld [vmem:[%s2 + $0x54] sm:$0xf]
        %v228 = vld [vmem:[%s2 + $0x58] sm:$0xf]
        %v229 = vld [vmem:[%s2 + $0x5c] sm:$0xf]
        %v230 = vld [vmem:[%s2 + $0x60] sm:$0xf]
        %v231 = vld [vmem:[%s2 + $0x64] sm:$0xf]
        %v232 = vld [vmem:[%s2 + $0x68] sm:$0xf]
        %v233 = vld [vmem:[%s2 + $0x6c] sm:$0xf]
        %v234 = vld [vmem:[%s2 + $0x70] sm:$0xf]
        %v235 = vld [vmem:[%s2 + $0x74] sm:$0xf]
        %v236 = vld [vmem:[%s2 + $0x78] sm:$0xf]
        %v237 = vld [vmem:[%s2 + $0x7c] sm:$0xf]
        %v238 = vld [vmem:[%s202] sm:$0xff]
        %v239 = vld [vmem:[%s202 + $0x8] sm:$0xff]
        %v240 = vld [vmem:[%s202 + $0x10] sm:$0xff]
        %v241 = vld [vmem:[%s202 + $0x18] sm:$0xff]
        %v242 = vld [vmem:[%s202 + $0x20] sm:$0x3]
        %v243 = vld [vmem:[%s202 + $0x28] sm:$0x3]
        %s244 = scalar_lea.vmem %s202, 48
        %v245 = vld [vmem:[%s244] sm:$0xff]
        %v246 = vld [vmem:[%s244 + $0x8] sm:$0xff]
        %v247 = vld [vmem:[%s244 + $0x10] sm:$0xff]
        %v248 = vld [vmem:[%s244 + $0x18] sm:$0xff]
        %v249 = vld [vmem:[%s244 + $0x20] sm:$0x3]
        %v250 = vld [vmem:[%s244 + $0x28] sm:$0x3]
        %s251 = scalar_lea.vmem %s202, 96
        %v252 = vld [vmem:[%s251] sm:$0xff]
        %v253 = vld [vmem:[%s251 + $0x8] sm:$0xff]
        %v254 = vld [vmem:[%s251 + $0x10] sm:$0xff]
        %v255 = vld [vmem:[%s251 + $0x18] sm:$0xff]
        %v256 = vld [vmem:[%s251 + $0x20] sm:$0x3]
        %v257 = vld [vmem:[%s251 + $0x28] sm:$0x3]
        %s258 = scalar_lea.vmem %s202, 144
        %v259 = vld [vmem:[%s258] sm:$0xff]
        %v260 = vld [vmem:[%s258 + $0x8] sm:$0xff]
        %v261 = vld [vmem:[%s258 + $0x10] sm:$0xff]
        %v262 = vld [vmem:[%s258 + $0x18] sm:$0xff]
        %v263 = vld [vmem:[%s258 + $0x20] sm:$0x3]
        %v264 = vld [vmem:[%s258 + $0x28] sm:$0x3]
        %s265 = sshra.s32 %s205, 3
        %s266 = sand.u32 %s205, 7
        %s267 = smul.u32 %s265, 2
        %s268 = smul.addr %s267, 8
        %s269 = scalar_lea.vmem %s197, %s268
        %v270 = vld [vmem:[%s269] sm:$0xff]
        %v271 = vld [vmem:[%s269 + $0x8] sm:$0xff]
        %v272 = vld [vmem:[%s269 + $0x10] sm:$0xff]
        %v273 = vld [vmem:[%s269 + $0x18] sm:$0xff]
        %v274 = vld [vmem:[%s269 + $0x20] sm:$0xff]
        %v275 = vld [vmem:[%s269 + $0x28] sm:$0xff]
        %v276 = vld [vmem:[%s269 + $0x30] sm:$0xff]
        %v277 = vld [vmem:[%s269 + $0x38] sm:$0xff]
        %v278 = vld [vmem:[%s269 + $0x40] sm:$0x1]
        %v279 = vld [vmem:[%s269 + $0x48] sm:$0x1]
        %s280 = sadd.s32 %s267, 10
        %s281 = smul.addr %s280, 8
        %s282 = scalar_lea.vmem %s197, %s281
        %v283 = vld [vmem:[%s282] sm:$0xff]
        %v284 = vld [vmem:[%s282 + $0x8] sm:$0xff]
        %v285 = vld [vmem:[%s282 + $0x10] sm:$0xff]
        %v286 = vld [vmem:[%s282 + $0x18] sm:$0xff]
        %v287 = vld [vmem:[%s282 + $0x20] sm:$0xff]
        %v288 = vld [vmem:[%s282 + $0x28] sm:$0xff]
        %v289 = vld [vmem:[%s282 + $0x30] sm:$0xff]
        %v290 = vld [vmem:[%s282 + $0x38] sm:$0xff]
        %v291 = vld [vmem:[%s282 + $0x40] sm:$0x1]
        %v292 = vld [vmem:[%s282 + $0x48] sm:$0x1]
        %s293 = sadd.s32 %s267, 20
        %s294 = smul.addr %s293, 8
        %s295 = scalar_lea.vmem %s197, %s294
        %v296 = vld [vmem:[%s295] sm:$0xff]
        %v297 = vld [vmem:[%s295 + $0x8] sm:$0xff]
        %v298 = vld [vmem:[%s295 + $0x10] sm:$0xff]
        %v299 = vld [vmem:[%s295 + $0x18] sm:$0xff]
        %v300 = vld [vmem:[%s295 + $0x20] sm:$0xff]
        %v301 = vld [vmem:[%s295 + $0x28] sm:$0xff]
        %v302 = vld [vmem:[%s295 + $0x30] sm:$0xff]
        %v303 = vld [vmem:[%s295 + $0x38] sm:$0xff]
        %v304 = vld [vmem:[%s295 + $0x40] sm:$0x1]
        %v305 = vld [vmem:[%s295 + $0x48] sm:$0x1]
        %s306 = sadd.s32 %s267, 30
        %s307 = smul.addr %s306, 8
        %s308 = scalar_lea.vmem %s197, %s307
        %v309 = vld [vmem:[%s308] sm:$0xff]
        %v310 = vld [vmem:[%s308 + $0x8] sm:$0xff]
        %v311 = vld [vmem:[%s308 + $0x10] sm:$0xff]
        %v312 = vld [vmem:[%s308 + $0x18] sm:$0xff]
        %v313 = vld [vmem:[%s308 + $0x20] sm:$0xff]
        %v314 = vld [vmem:[%s308 + $0x28] sm:$0xff]
        %v315 = vld [vmem:[%s308 + $0x30] sm:$0xff]
        %v316 = vld [vmem:[%s308 + $0x38] sm:$0xff]
        %v317 = vld [vmem:[%s308 + $0x40] sm:$0x1]
        %v318 = vld [vmem:[%s308 + $0x48] sm:$0x1]
        %v319 = vmul.f32 %v238, %v238
        %v320 = vmul.f32 %v239, %v239
        %v321 = vmul.f32 %v240, %v240
        %v322 = vmul.f32 %v241, %v241
        %v323 = vmul.f32 %v242, %v242
        %v324 = vmul.f32 %v243, %v243
        %v325 = vmul.f32 %v270, %v270
        %v326 = vmul.f32 %v271, %v271
        %v327 = vmul.f32 %v272, %v272
        %v328 = vmul.f32 %v273, %v273
        %v329 = vmul.f32 %v274, %v274
        %v330 = vmul.f32 %v275, %v275
        %v331 = vmul.f32 %v276, %v276
        %v332 = vmul.f32 %v277, %v277
        %v333 = vmul.f32 %v278, %v278
        %v334 = vmul.f32 %v279, %v279
        %v335 = vmul.f32 %v245, %v245
        %v336 = vmul.f32 %v246, %v246
        %v337 = vmul.f32 %v247, %v247
        %v338 = vmul.f32 %v248, %v248
        %v339 = vmul.f32 %v249, %v249
        %v340 = vmul.f32 %v250, %v250
        %v341 = vadd.f32 %v319, %v335
        %v342 = vadd.f32 %v320, %v336
        %v343 = vadd.f32 %v321, %v337
        %v344 = vadd.f32 %v322, %v338
        %v345 = vadd.f32 %v323, %v339
        %v346 = vadd.f32 %v324, %v340
        %v347 = vmul.f32 %v283, %v283
        %v348 = vmul.f32 %v284, %v284
        %v349 = vmul.f32 %v285, %v285
        %v350 = vmul.f32 %v286, %v286
        %v351 = vmul.f32 %v287, %v287
        %v352 = vmul.f32 %v288, %v288
        %v353 = vmul.f32 %v289, %v289
        %v354 = vmul.f32 %v290, %v290
        %v355 = vmul.f32 %v291, %v291
        %v356 = vmul.f32 %v292, %v292
        %v357 = vadd.f32 %v325, %v347
        %v358 = vadd.f32 %v326, %v348
        %v359 = vadd.f32 %v327, %v349
        %v360 = vadd.f32 %v328, %v350
        %v361 = vadd.f32 %v329, %v351
        %v362 = vadd.f32 %v330, %v352
        %v363 = vadd.f32 %v331, %v353
        %v364 = vadd.f32 %v332, %v354
        %v365 = vadd.f32 %v333, %v355
        %v366 = vadd.f32 %v334, %v356
        %v367 = vmul.f32 %v252, %v252
        %v368 = vmul.f32 %v253, %v253
        %v369 = vmul.f32 %v254, %v254
        %v370 = vmul.f32 %v255, %v255
        %v371 = vmul.f32 %v256, %v256
        %v372 = vmul.f32 %v257, %v257
        %v373 = vadd.f32 %v341, %v367
        %v374 = vadd.f32 %v342, %v368
        %v375 = vadd.f32 %v343, %v369
        %v376 = vadd.f32 %v344, %v370
        %v377 = vadd.f32 %v345, %v371
        %v378 = vadd.f32 %v346, %v372
        %v379 = vmul.f32 %v296, %v296
        %v380 = vmul.f32 %v297, %v297
        %v381 = vmul.f32 %v298, %v298
        %v382 = vmul.f32 %v299, %v299
        %v383 = vmul.f32 %v300, %v300
        %v384 = vmul.f32 %v301, %v301
        %v385 = vmul.f32 %v302, %v302
        %v386 = vmul.f32 %v303, %v303
        %v387 = vmul.f32 %v304, %v304
        %v388 = vmul.f32 %v305, %v305
        %v389 = vadd.f32 %v357, %v379
        %v390 = vadd.f32 %v358, %v380
        %v391 = vadd.f32 %v359, %v381
        %v392 = vadd.f32 %v360, %v382
        %v393 = vadd.f32 %v361, %v383
        %v394 = vadd.f32 %v362, %v384
        %v395 = vadd.f32 %v363, %v385
        %v396 = vadd.f32 %v364, %v386
        %v397 = vadd.f32 %v365, %v387
        %v398 = vadd.f32 %v366, %v388
        %v399 = vmul.f32 %v259, %v259
        %v400 = vmul.f32 %v260, %v260
        %v401 = vmul.f32 %v261, %v261
        %v402 = vmul.f32 %v262, %v262
        %v403 = vmul.f32 %v263, %v263
        %v404 = vmul.f32 %v264, %v264
        %v405 = vadd.f32 %v373, %v399
        %v406 = vadd.f32 %v374, %v400
        %v407 = vadd.f32 %v375, %v401
        %v408 = vadd.f32 %v376, %v402
        %v409 = vadd.f32 %v377, %v403
        %v410 = vadd.f32 %v378, %v404
        %v411 = vmul.f32 %v309, %v309
        %v412 = vmul.f32 %v310, %v310
        %v413 = vmul.f32 %v311, %v311
        %v414 = vmul.f32 %v312, %v312
        %v415 = vmul.f32 %v313, %v313
        %v416 = vmul.f32 %v314, %v314
        %v417 = vmul.f32 %v315, %v315
        %v418 = vmul.f32 %v316, %v316
        %v419 = vmul.f32 %v317, %v317
        %v420 = vmul.f32 %v318, %v318
        %v421 = vadd.f32 %v389, %v411
        %v422 = vadd.f32 %v390, %v412
        %v423 = vadd.f32 %v391, %v413
        %v424 = vadd.f32 %v392, %v414
        %v425 = vadd.f32 %v393, %v415
        %v426 = vadd.f32 %v394, %v416
        %v427 = vadd.f32 %v395, %v417
        %v428 = vadd.f32 %v396, %v418
        %v429 = vadd.f32 %v397, %v419
        %v430 = vadd.f32 %v398, %v420
        %v431 = vpack.c.bf16 %v407, %v405
        %v432 = vpack.c.bf16 %v408, %v406
        %v433 = vpack.c.bf16 %v409, %v409
        %v434 = vpack.c.bf16 %v410, %v410
        %v435 = vunpack.c.l.bf16 %v431
        %v436 = vunpack.c.l.bf16 %v432
        %v437 = vunpack.c.h.bf16 %v431
        %v438 = vunpack.c.h.bf16 %v432
        %v439 = vunpack.c.l.bf16 %v433
        %v440 = vunpack.c.l.bf16 %v434
        %v441 = vsub.f32 %v405, %v435
        %v442 = vsub.f32 %v406, %v436
        %v443 = vsub.f32 %v407, %v437
        %v444 = vsub.f32 %v408, %v438
        %v445 = vsub.f32 %v409, %v439
        %v446 = vsub.f32 %v410, %v440
        %v447 = vpack.c.bf16 %v443, %v441
        %v448 = vpack.c.bf16 %v444, %v442
        %v449 = vpack.c.bf16 %v445, %v445
        %v450 = vpack.c.bf16 %v446, %v446
        %v483 = vunpack.c.l.b16 %v206
        %v484 = vunpack.c.l.b16 %v207
        %v485 = vunpack.c.l.b16 %v208
        %v486 = vunpack.c.l.b16 %v209
        %v487 = vunpack.c.l.b16 %v210
        %v488 = vunpack.c.l.b16 %v211
        %v489 = vunpack.c.l.b16 %v212
        %v490 = vunpack.c.l.b16 %v213
        %v491 = vunpack.c.l.b16 %v214
        %v492 = vunpack.c.l.b16 %v215
        %v493 = vunpack.c.l.b16 %v216
        %v494 = vunpack.c.l.b16 %v217
        %v495 = vunpack.c.l.b16 %v218
        %v496 = vunpack.c.l.b16 %v219
        %v497 = vunpack.c.l.b16 %v220
        %v498 = vunpack.c.l.b16 %v221
        %v499 = vunpack.c.l.b16 %v222
        %v500 = vunpack.c.l.b16 %v223
        %v501 = vunpack.c.l.b16 %v224
        %v502 = vunpack.c.l.b16 %v225
        %v503 = vunpack.c.l.b16 %v226
        %v504 = vunpack.c.l.b16 %v227
        %v505 = vunpack.c.l.b16 %v228
        %v506 = vunpack.c.l.b16 %v229
        %v507 = vunpack.c.l.b16 %v230
        %v508 = vunpack.c.l.b16 %v231
        %v509 = vunpack.c.l.b16 %v232
        %v510 = vunpack.c.l.b16 %v233
        %v511 = vunpack.c.l.b16 %v234
        %v512 = vunpack.c.l.b16 %v235
        %v513 = vunpack.c.l.b16 %v236
        %v514 = vunpack.c.l.b16 %v237
        %v515 = vpack.c.b16 %v484, %v483
        %v516 = vpack.c.b16 %v486, %v485
        %v517 = vpack.c.b16 %v488, %v487
        %v518 = vpack.c.b16 %v490, %v489
        %v519 = vpack.c.b16 %v492, %v491
        %v520 = vpack.c.b16 %v494, %v493
        %v521 = vpack.c.b16 %v496, %v495
        %v522 = vpack.c.b16 %v498, %v497
        %v523 = vpack.c.b16 %v500, %v499
        %v524 = vpack.c.b16 %v502, %v501
        %v525 = vpack.c.b16 %v504, %v503
        %v526 = vpack.c.b16 %v506, %v505
        %v527 = vpack.c.b16 %v508, %v507
        %v528 = vpack.c.b16 %v510, %v509
        %v529 = vpack.c.b16 %v512, %v511
        %v530 = vpack.c.b16 %v514, %v513
        %547 = vmatprep.subr.bf16.mxu0 0
        %548 = vmatpush1.bf16.msra.mxu0 %v522
        %549 = vmatprep.subr.bf16.mxu0 0
        %550 = vmatpush1.bf16.msra.mxu0 %v521
        %551 = vmatprep.subr.bf16.mxu0 0
        %552 = vmatpush1.bf16.msra.mxu0 %v520
        %553 = vmatprep.subr.bf16.mxu0 0
        %554 = vmatpush1.bf16.msra.mxu0 %v519
        %555 = vmatprep.subr.bf16.mxu0 0
        %556 = vmatpush1.bf16.msra.mxu0 %v518
        %557 = vmatprep.subr.bf16.mxu0 0
        %558 = vmatpush1.bf16.msra.mxu0 %v517
        %559 = vmatprep.subr.bf16.mxu0 0
        %560 = vmatpush1.bf16.msra.mxu0 %v516
        %561 = vmatprep.subr.bf16.mxu0 0
        %562 = vmatpush1.bf16.msra.mxu0 %v515
        %563 = vmatprep.subr.bf16.mxu0 0
        %564 = vmatpush2.bf16.msra.mxu0 %v530
        %565 = vmatprep.subr.bf16.mxu0 0
        %566 = vmatpush2.bf16.msra.mxu0 %v529
        %567 = vmatprep.subr.bf16.mxu0 0
        %568 = vmatpush2.bf16.msra.mxu0 %v528
        %569 = vmatprep.subr.bf16.mxu0 0
        %570 = vmatpush2.bf16.msra.mxu0 %v527
        %571 = vmatprep.subr.bf16.mxu0 0
        %572 = vmatpush2.bf16.msra.mxu0 %v526
        %573 = vmatprep.subr.bf16.mxu0 0
        %574 = vmatpush2.bf16.msra.mxu0 %v525
        %575 = vmatprep.subr.bf16.mxu0 0
        %576 = vmatpush2.bf16.msra.mxu0 %v524
        %577 = vmatprep.subr.bf16.mxu0 0
        %578 = vmatpush2.bf16.msra.mxu0 %v523
        %579 = vmatprep.mubr.bf16.mxu0 %v448
        %580 = vmatmul.mubr.bf16.gmra.mxu0 %v447
        %v581 = vpop.f32.mrf.mxu0
        %v582 = vadd.f32 0.0, %v581
        %v583 = vpop.f32.mrf.mxu0
        %v584 = vpop.f32.mrf.mxu0
        %v585 = vadd.f32 0.0, %v584
        %v586 = vpop.f32.mrf.mxu0
        %587 = vmatprep.mubr.bf16.mxu0 %v450
        %588 = vmatmul.mubr.bf16.gmra.mxu0 %v449
        %v589 = vpop.f32.mrf.mxu0
        %v590 = vadd.f32 0.0, %v589
        %v591 = vpop.f32.mrf.mxu0
        %v592 = vpop.f32.mrf.mxu0
        %v593 = vpop.f32.mrf.mxu0
        %594 = vdwg.mxu0
        %595 = vmatprep.subr.bf16.mxu0 0
        %596 = vmatpush1.bf16.msra.mxu0 %v522
        %597 = vmatprep.subr.bf16.mxu0 0
        %598 = vmatpush1.bf16.msra.mxu0 %v521
        %599 = vmatprep.subr.bf16.mxu0 0
        %600 = vmatpush1.bf16.msra.mxu0 %v520
        %601 = vmatprep.subr.bf16.mxu0 0
        %602 = vmatpush1.bf16.msra.mxu0 %v519
        %603 = vmatprep.subr.bf16.mxu0 0
        %604 = vmatpush1.bf16.msra.mxu0 %v518
        %605 = vmatprep.subr.bf16.mxu0 0
        %606 = vmatpush1.bf16.msra.mxu0 %v517
        %607 = vmatprep.subr.bf16.mxu0 0
        %608 = vmatpush1.bf16.msra.mxu0 %v516
        %609 = vmatprep.subr.bf16.mxu0 0
        %610 = vmatpush1.bf16.msra.mxu0 %v515
        %611 = vmatprep.subr.bf16.mxu0 0
        %612 = vmatpush2.bf16.msra.mxu0 %v530
        %613 = vmatprep.subr.bf16.mxu0 0
        %614 = vmatpush2.bf16.msra.mxu0 %v529
        %615 = vmatprep.subr.bf16.mxu0 0
        %616 = vmatpush2.bf16.msra.mxu0 %v528
        %617 = vmatprep.subr.bf16.mxu0 0
        %618 = vmatpush2.bf16.msra.mxu0 %v527
        %619 = vmatprep.subr.bf16.mxu0 0
        %620 = vmatpush2.bf16.msra.mxu0 %v526
        %621 = vmatprep.subr.bf16.mxu0 0
        %622 = vmatpush2.bf16.msra.mxu0 %v525
        %623 = vmatprep.subr.bf16.mxu0 0
        %624 = vmatpush2.bf16.msra.mxu0 %v524
        %625 = vmatprep.subr.bf16.mxu0 0
        %626 = vmatpush2.bf16.msra.mxu0 %v523
        %627 = vmatprep.mubr.bf16.mxu0 %v432
        %628 = vmatmul.mubr.bf16.gmra.mxu0 %v431
        %v629 = vpop.f32.mrf.mxu0
        %v630 = vadd.f32 %v582, %v629
        %v631 = vpop.f32.mrf.mxu0
        %v632 = vpop.f32.mrf.mxu0
        %v633 = vadd.f32 %v585, %v632
        %v634 = vpop.f32.mrf.mxu0
        %635 = vmatprep.mubr.bf16.mxu0 %v434
        %636 = vmatmul.mubr.bf16.gmra.mxu0 %v433
        %v637 = vpop.f32.mrf.mxu0
        %v638 = vadd.f32 %v590, %v637
        %v639 = vpop.f32.mrf.mxu0
        %v640 = vpop.f32.mrf.mxu0
        %v641 = vpop.f32.mrf.mxu0
        %642 = vdwg.mxu0
        %vm646 = vcmask 1046528
        %v647 = vrot.slane %v630, 1
        %v648 = vrot.slane %v633, 1
        %v649 = vsel %vm646, %v647, %v648
        %v650 = vrot.slane %v638, 1
        %v651 = vsel %vm646, %v648, %v650
        %v654 = vadd.f32 %v630, %v649
        %v655 = vadd.f32 %v633, %v651
        %vm656 = vcmask 1045504
        %v657 = vrot.slane %v630, 2
        %v658 = vrot.slane %v633, 2
        %v659 = vsel %vm656, %v657, %v658
        %v660 = vrot.slane %v638, 2
        %v661 = vsel %vm656, %v658, %v660
        %v664 = vadd.f32 %v654, %v659
        %v665 = vadd.f32 %v655, %v661
        %v666 = vpack.c.bf16 %v423, %v421
        %v667 = vpack.c.bf16 %v424, %v422
        %v668 = vpack.c.bf16 %v427, %v425
        %v669 = vpack.c.bf16 %v428, %v426
        %v670 = vpack.c.bf16 %v429, %v429
        %v671 = vpack.c.bf16 %v430, %v430
        %v672 = vunpack.c.l.bf16 %v666
        %v673 = vunpack.c.l.bf16 %v667
        %v674 = vunpack.c.h.bf16 %v666
        %v675 = vunpack.c.h.bf16 %v667
        %v676 = vunpack.c.l.bf16 %v668
        %v677 = vunpack.c.l.bf16 %v669
        %v678 = vunpack.c.h.bf16 %v668
        %v679 = vunpack.c.h.bf16 %v669
        %v680 = vunpack.c.l.bf16 %v670
        %v681 = vunpack.c.l.bf16 %v671
        %v682 = vsub.f32 %v421, %v672
        %v683 = vsub.f32 %v422, %v673
        %v684 = vsub.f32 %v423, %v674
        %v685 = vsub.f32 %v424, %v675
        %v686 = vsub.f32 %v425, %v676
        %v687 = vsub.f32 %v426, %v677
        %v688 = vsub.f32 %v427, %v678
        %v689 = vsub.f32 %v428, %v679
        %v690 = vsub.f32 %v429, %v680
        %v691 = vsub.f32 %v430, %v681
        %v692 = vpack.c.bf16 %v684, %v682
        %v693 = vpack.c.bf16 %v685, %v683
        %v694 = vpack.c.bf16 %v688, %v686
        %v695 = vpack.c.bf16 %v689, %v687
        %v696 = vpack.c.bf16 %v690, %v690
        %v697 = vpack.c.bf16 %v691, %v691
        %698 = vmatprep.subr.bf16.mxu0 0
        %699 = vmatpush1.bf16.msra.mxu0 %v522
        %700 = vmatprep.subr.bf16.mxu0 0
        %701 = vmatpush1.bf16.msra.mxu0 %v521
        %702 = vmatprep.subr.bf16.mxu0 0
        %703 = vmatpush1.bf16.msra.mxu0 %v520
        %704 = vmatprep.subr.bf16.mxu0 0
        %705 = vmatpush1.bf16.msra.mxu0 %v519
        %706 = vmatprep.subr.bf16.mxu0 0
        %707 = vmatpush1.bf16.msra.mxu0 %v518
        %708 = vmatprep.subr.bf16.mxu0 0
        %709 = vmatpush1.bf16.msra.mxu0 %v517
        %710 = vmatprep.subr.bf16.mxu0 0
        %711 = vmatpush1.bf16.msra.mxu0 %v516
        %712 = vmatprep.subr.bf16.mxu0 0
        %713 = vmatpush1.bf16.msra.mxu0 %v515
        %714 = vmatprep.subr.bf16.mxu0 0
        %715 = vmatpush2.bf16.msra.mxu0 %v530
        %716 = vmatprep.subr.bf16.mxu0 0
        %717 = vmatpush2.bf16.msra.mxu0 %v529
        %718 = vmatprep.subr.bf16.mxu0 0
        %719 = vmatpush2.bf16.msra.mxu0 %v528
        %720 = vmatprep.subr.bf16.mxu0 0
        %721 = vmatpush2.bf16.msra.mxu0 %v527
        %722 = vmatprep.subr.bf16.mxu0 0
        %723 = vmatpush2.bf16.msra.mxu0 %v526
        %724 = vmatprep.subr.bf16.mxu0 0
        %725 = vmatpush2.bf16.msra.mxu0 %v525
        %726 = vmatprep.subr.bf16.mxu0 0
        %727 = vmatpush2.bf16.msra.mxu0 %v524
        %728 = vmatprep.subr.bf16.mxu0 0
        %729 = vmatpush2.bf16.msra.mxu0 %v523
        %730 = vmatprep.mubr.bf16.mxu0 %v693
        %731 = vmatmul.mubr.bf16.gmra.mxu0 %v692
        %v732 = vpop.f32.mrf.mxu0
        %v733 = vadd.f32 0.0, %v732
        %v734 = vpop.f32.mrf.mxu0
        %v735 = vpop.f32.mrf.mxu0
        %v736 = vadd.f32 0.0, %v735
        %v737 = vpop.f32.mrf.mxu0
        %738 = vmatprep.mubr.bf16.mxu0 %v695
        %739 = vmatmul.mubr.bf16.gmra.mxu0 %v694
        %v740 = vpop.f32.mrf.mxu0
        %v741 = vadd.f32 0.0, %v740
        %v742 = vpop.f32.mrf.mxu0
        %v743 = vpop.f32.mrf.mxu0
        %v744 = vadd.f32 0.0, %v743
        %v745 = vpop.f32.mrf.mxu0
        %746 = vmatprep.mubr.bf16.mxu0 %v697
        %747 = vmatmul.mubr.bf16.gmra.mxu0 %v696
        %v748 = vpop.f32.mrf.mxu0
        %v749 = vadd.f32 0.0, %v748
        %v750 = vpop.f32.mrf.mxu0
        %v751 = vpop.f32.mrf.mxu0
        %v752 = vpop.f32.mrf.mxu0
        %753 = vdwg.mxu0
        %754 = vmatprep.subr.bf16.mxu0 0
        %755 = vmatpush1.bf16.msra.mxu0 %v522
        %756 = vmatprep.subr.bf16.mxu0 0
        %757 = vmatpush1.bf16.msra.mxu0 %v521
        %758 = vmatprep.subr.bf16.mxu0 0
        %759 = vmatpush1.bf16.msra.mxu0 %v520
        %760 = vmatprep.subr.bf16.mxu0 0
        %761 = vmatpush1.bf16.msra.mxu0 %v519
        %762 = vmatprep.subr.bf16.mxu0 0
        %763 = vmatpush1.bf16.msra.mxu0 %v518
        %764 = vmatprep.subr.bf16.mxu0 0
        %765 = vmatpush1.bf16.msra.mxu0 %v517
        %766 = vmatprep.subr.bf16.mxu0 0
        %767 = vmatpush1.bf16.msra.mxu0 %v516
        %768 = vmatprep.subr.bf16.mxu0 0
        %769 = vmatpush1.bf16.msra.mxu0 %v515
        %770 = vmatprep.subr.bf16.mxu0 0
        %771 = vmatpush2.bf16.msra.mxu0 %v530
        %772 = vmatprep.subr.bf16.mxu0 0
        %773 = vmatpush2.bf16.msra.mxu0 %v529
        %774 = vmatprep.subr.bf16.mxu0 0
        %775 = vmatpush2.bf16.msra.mxu0 %v528
        %776 = vmatprep.subr.bf16.mxu0 0
        %777 = vmatpush2.bf16.msra.mxu0 %v527
        %778 = vmatprep.subr.bf16.mxu0 0
        %779 = vmatpush2.bf16.msra.mxu0 %v526
        %780 = vmatprep.subr.bf16.mxu0 0
        %781 = vmatpush2.bf16.msra.mxu0 %v525
        %782 = vmatprep.subr.bf16.mxu0 0
        %783 = vmatpush2.bf16.msra.mxu0 %v524
        %784 = vmatprep.subr.bf16.mxu0 0
        %785 = vmatpush2.bf16.msra.mxu0 %v523
        %786 = vmatprep.mubr.bf16.mxu0 %v667
        %787 = vmatmul.mubr.bf16.gmra.mxu0 %v666
        %v788 = vpop.f32.mrf.mxu0
        %v789 = vadd.f32 %v733, %v788
        %v790 = vpop.f32.mrf.mxu0
        %v791 = vpop.f32.mrf.mxu0
        %v792 = vadd.f32 %v736, %v791
        %v793 = vpop.f32.mrf.mxu0
        %794 = vmatprep.mubr.bf16.mxu0 %v669
        %795 = vmatmul.mubr.bf16.gmra.mxu0 %v668
        %v796 = vpop.f32.mrf.mxu0
        %v797 = vadd.f32 %v741, %v796
        %v798 = vpop.f32.mrf.mxu0
        %v799 = vpop.f32.mrf.mxu0
        %v800 = vadd.f32 %v744, %v799
        %v801 = vpop.f32.mrf.mxu0
        %802 = vmatprep.mubr.bf16.mxu0 %v671
        %803 = vmatmul.mubr.bf16.gmra.mxu0 %v670
        %v804 = vpop.f32.mrf.mxu0
        %v805 = vadd.f32 %v749, %v804
        %v806 = vpop.f32.mrf.mxu0
        %v807 = vpop.f32.mrf.mxu0
        %v808 = vpop.f32.mrf.mxu0
        %809 = vdwg.mxu0
        %v815 = vrot.slane %v789, 1
        %v816 = vrot.slane %v792, 1
        %v817 = vsel %vm646, %v815, %v816
        %v818 = vrot.slane %v797, 1
        %v819 = vsel %vm646, %v816, %v818
        %v820 = vrot.slane %v800, 1
        %v821 = vsel %vm646, %v818, %v820
        %v822 = vrot.slane %v805, 1
        %v823 = vsel %vm646, %v820, %v822
        %v828 = vadd.f32 %v789, %v817
        %v829 = vadd.f32 %v792, %v819
        %v830 = vadd.f32 %v797, %v821
        %v831 = vadd.f32 %v800, %v823
        %v832 = vrot.slane %v789, 2
        %v833 = vrot.slane %v792, 2
        %v834 = vsel %vm656, %v832, %v833
        %v835 = vrot.slane %v797, 2
        %v836 = vsel %vm656, %v833, %v835
        %v837 = vrot.slane %v800, 2
        %v838 = vsel %vm656, %v835, %v837
        %v839 = vrot.slane %v805, 2
        %v840 = vsel %vm656, %v837, %v839
        %v845 = vadd.f32 %v828, %v834
        %v846 = vadd.f32 %v829, %v836
        %v847 = vadd.f32 %v830, %v838
        %v848 = vadd.f32 %v831, %v840
        %v849 = vmul.f32 %v270, %v238
        %v850 = vmul.f32 %v271, %v239
        %v851 = vmul.f32 %v272, %v240
        %v852 = vmul.f32 %v273, %v241
        %v853 = vmul.f32 %v274, %v242
        %v854 = vmul.f32 %v275, %v243
        %v855 = vmul.f32 %v283, %v245
        %v856 = vmul.f32 %v284, %v246
        %v857 = vmul.f32 %v285, %v247
        %v858 = vmul.f32 %v286, %v248
        %v859 = vmul.f32 %v287, %v249
        %v860 = vmul.f32 %v288, %v250
        %v861 = vadd.f32 %v849, %v855
        %v862 = vadd.f32 %v850, %v856
        %v863 = vadd.f32 %v851, %v857
        %v864 = vadd.f32 %v852, %v858
        %v865 = vadd.f32 %v853, %v859
        %v866 = vadd.f32 %v854, %v860
        %v867 = vmul.f32 %v296, %v252
        %v868 = vmul.f32 %v297, %v253
        %v869 = vmul.f32 %v298, %v254
        %v870 = vmul.f32 %v299, %v255
        %v871 = vmul.f32 %v300, %v256
        %v872 = vmul.f32 %v301, %v257
        %v873 = vadd.f32 %v861, %v867
        %v874 = vadd.f32 %v862, %v868
        %v875 = vadd.f32 %v863, %v869
        %v876 = vadd.f32 %v864, %v870
        %v877 = vadd.f32 %v865, %v871
        %v878 = vadd.f32 %v866, %v872
        %v879 = vmul.f32 %v309, %v259
        %v880 = vmul.f32 %v310, %v260
        %v881 = vmul.f32 %v311, %v261
        %v882 = vmul.f32 %v312, %v262
        %v883 = vmul.f32 %v313, %v263
        %v884 = vmul.f32 %v314, %v264
        %v885 = vadd.f32 %v873, %v879
        %v886 = vadd.f32 %v874, %v880
        %v887 = vadd.f32 %v875, %v881
        %v888 = vadd.f32 %v876, %v882
        %v889 = vadd.f32 %v877, %v883
        %v890 = vadd.f32 %v878, %v884
        %v891 = vadd.f32 %v845, %v664
        %v892 = vadd.f32 %v846, %v665
        %v893 = vpack.c.bf16 %v887, %v885
        %v894 = vpack.c.bf16 %v888, %v886
        %v895 = vpack.c.bf16 %v889, %v889
        %v896 = vpack.c.bf16 %v890, %v890
        %v897 = vunpack.c.l.bf16 %v893
        %v898 = vunpack.c.l.bf16 %v894
        %v899 = vunpack.c.h.bf16 %v893
        %v900 = vunpack.c.h.bf16 %v894
        %v901 = vunpack.c.l.bf16 %v895
        %v902 = vunpack.c.l.bf16 %v896
        %v903 = vsub.f32 %v885, %v897
        %v904 = vsub.f32 %v886, %v898
        %v905 = vsub.f32 %v887, %v899
        %v906 = vsub.f32 %v888, %v900
        %v907 = vsub.f32 %v889, %v901
        %v908 = vsub.f32 %v890, %v902
        %v909 = vpack.c.bf16 %v905, %v903
        %v910 = vpack.c.bf16 %v906, %v904
        %v911 = vpack.c.bf16 %v907, %v907
        %v912 = vpack.c.bf16 %v908, %v908
        %913 = vmatprep.subr.bf16.mxu0 0
        %914 = vmatpush1.bf16.msra.mxu0 %v522
        %915 = vmatprep.subr.bf16.mxu0 0
        %916 = vmatpush1.bf16.msra.mxu0 %v521
        %917 = vmatprep.subr.bf16.mxu0 0
        %918 = vmatpush1.bf16.msra.mxu0 %v520
        %919 = vmatprep.subr.bf16.mxu0 0
        %920 = vmatpush1.bf16.msra.mxu0 %v519
        %921 = vmatprep.subr.bf16.mxu0 0
        %922 = vmatpush1.bf16.msra.mxu0 %v518
        %923 = vmatprep.subr.bf16.mxu0 0
        %924 = vmatpush1.bf16.msra.mxu0 %v517
        %925 = vmatprep.subr.bf16.mxu0 0
        %926 = vmatpush1.bf16.msra.mxu0 %v516
        %927 = vmatprep.subr.bf16.mxu0 0
        %928 = vmatpush1.bf16.msra.mxu0 %v515
        %929 = vmatprep.subr.bf16.mxu0 0
        %930 = vmatpush2.bf16.msra.mxu0 %v530
        %931 = vmatprep.subr.bf16.mxu0 0
        %932 = vmatpush2.bf16.msra.mxu0 %v529
        %933 = vmatprep.subr.bf16.mxu0 0
        %934 = vmatpush2.bf16.msra.mxu0 %v528
        %935 = vmatprep.subr.bf16.mxu0 0
        %936 = vmatpush2.bf16.msra.mxu0 %v527
        %937 = vmatprep.subr.bf16.mxu0 0
        %938 = vmatpush2.bf16.msra.mxu0 %v526
        %939 = vmatprep.subr.bf16.mxu0 0
        %940 = vmatpush2.bf16.msra.mxu0 %v525
        %941 = vmatprep.subr.bf16.mxu0 0
        %942 = vmatpush2.bf16.msra.mxu0 %v524
        %943 = vmatprep.subr.bf16.mxu0 0
        %944 = vmatpush2.bf16.msra.mxu0 %v523
        %945 = vmatprep.mubr.bf16.mxu0 %v910
        %946 = vmatmul.mubr.bf16.gmra.mxu0 %v909
        %v947 = vpop.f32.mrf.mxu0
        %v948 = vadd.f32 0.0, %v947
        %v949 = vpop.f32.mrf.mxu0
        %v950 = vpop.f32.mrf.mxu0
        %v951 = vadd.f32 0.0, %v950
        %v952 = vpop.f32.mrf.mxu0
        %953 = vmatprep.mubr.bf16.mxu0 %v912
        %954 = vmatmul.mubr.bf16.gmra.mxu0 %v911
        %v955 = vpop.f32.mrf.mxu0
        %v956 = vadd.f32 0.0, %v955
        %v957 = vpop.f32.mrf.mxu0
        %v958 = vpop.f32.mrf.mxu0
        %v959 = vpop.f32.mrf.mxu0
        %960 = vdwg.mxu0
        %961 = vmatprep.subr.bf16.mxu0 0
        %962 = vmatpush1.bf16.msra.mxu0 %v522
        %963 = vmatprep.subr.bf16.mxu0 0
        %964 = vmatpush1.bf16.msra.mxu0 %v521
        %965 = vmatprep.subr.bf16.mxu0 0
        %966 = vmatpush1.bf16.msra.mxu0 %v520
        %967 = vmatprep.subr.bf16.mxu0 0
        %968 = vmatpush1.bf16.msra.mxu0 %v519
        %969 = vmatprep.subr.bf16.mxu0 0
        %970 = vmatpush1.bf16.msra.mxu0 %v518
        %971 = vmatprep.subr.bf16.mxu0 0
        %972 = vmatpush1.bf16.msra.mxu0 %v517
        %973 = vmatprep.subr.bf16.mxu0 0
        %974 = vmatpush1.bf16.msra.mxu0 %v516
        %975 = vmatprep.subr.bf16.mxu0 0
        %976 = vmatpush1.bf16.msra.mxu0 %v515
        %977 = vmatprep.subr.bf16.mxu0 0
        %978 = vmatpush2.bf16.msra.mxu0 %v530
        %979 = vmatprep.subr.bf16.mxu0 0
        %980 = vmatpush2.bf16.msra.mxu0 %v529
        %981 = vmatprep.subr.bf16.mxu0 0
        %982 = vmatpush2.bf16.msra.mxu0 %v528
        %983 = vmatprep.subr.bf16.mxu0 0
        %984 = vmatpush2.bf16.msra.mxu0 %v527
        %985 = vmatprep.subr.bf16.mxu0 0
        %986 = vmatpush2.bf16.msra.mxu0 %v526
        %987 = vmatprep.subr.bf16.mxu0 0
        %988 = vmatpush2.bf16.msra.mxu0 %v525
        %989 = vmatprep.subr.bf16.mxu0 0
        %990 = vmatpush2.bf16.msra.mxu0 %v524
        %991 = vmatprep.subr.bf16.mxu0 0
        %992 = vmatpush2.bf16.msra.mxu0 %v523
        %993 = vmatprep.mubr.bf16.mxu0 %v894
        %994 = vmatmul.mubr.bf16.gmra.mxu0 %v893
        %v995 = vpop.f32.mrf.mxu0
        %v996 = vadd.f32 %v948, %v995
        %v997 = vpop.f32.mrf.mxu0
        %v998 = vpop.f32.mrf.mxu0
        %v999 = vadd.f32 %v951, %v998
        %v1000 = vpop.f32.mrf.mxu0
        %1001 = vmatprep.mubr.bf16.mxu0 %v896
        %1002 = vmatmul.mubr.bf16.gmra.mxu0 %v895
        %v1003 = vpop.f32.mrf.mxu0
        %v1004 = vadd.f32 %v956, %v1003
        %v1005 = vpop.f32.mrf.mxu0
        %v1006 = vpop.f32.mrf.mxu0
        %v1007 = vpop.f32.mrf.mxu0
        %1008 = vdwg.mxu0
        %v1012 = vrot.slane %v996, 1
        %v1013 = vrot.slane %v999, 1
        %v1014 = vsel %vm646, %v1012, %v1013
        %v1015 = vrot.slane %v1004, 1
        %v1016 = vsel %vm646, %v1013, %v1015
        %v1019 = vadd.f32 %v996, %v1014
        %v1020 = vadd.f32 %v999, %v1016
        %v1021 = vrot.slane %v996, 2
        %v1022 = vrot.slane %v999, 2
        %v1023 = vsel %vm656, %v1021, %v1022
        %v1024 = vrot.slane %v1004, 2
        %v1025 = vsel %vm656, %v1022, %v1024
        %v1028 = vadd.f32 %v1019, %v1023
        %v1029 = vadd.f32 %v1020, %v1025
        %v1030 = vmul.f32 %v1028, 2.0
        %v1031 = vmul.f32 %v1029, 2.0
        %v1032 = vsub.f32 %v891, %v1030
        %v1033 = vsub.f32 %v892, %v1031
        %v1034 = vmax.f32 %v1032, 0.0
        %v1035 = vmax.f32 %v1033, 0.0
        %1036 = vst [vmem:[%s192] sm:$0xff] %v1034
        %1037 = vst [vmem:[%s192 + $0x8] sm:$0xff] %v1035
        %v1038 = vmul.f32 %v272, %v238
        %v1039 = vmul.f32 %v273, %v239
        %v1040 = vmul.f32 %v274, %v240
        %v1041 = vmul.f32 %v275, %v241
        %v1042 = vmul.f32 %v276, %v242
        %v1043 = vmul.f32 %v277, %v243
        %v1044 = vmul.f32 %v285, %v245
        %v1045 = vmul.f32 %v286, %v246
        %v1046 = vmul.f32 %v287, %v247
        %v1047 = vmul.f32 %v288, %v248
        %v1048 = vmul.f32 %v289, %v249
        %v1049 = vmul.f32 %v290, %v250
        %v1050 = vadd.f32 %v1038, %v1044
        %v1051 = vadd.f32 %v1039, %v1045
        %v1052 = vadd.f32 %v1040, %v1046
        %v1053 = vadd.f32 %v1041, %v1047
        %v1054 = vadd.f32 %v1042, %v1048
        %v1055 = vadd.f32 %v1043, %v1049
        %v1056 = vmul.f32 %v298, %v252
        %v1057 = vmul.f32 %v299, %v253
        %v1058 = vmul.f32 %v300, %v254
        %v1059 = vmul.f32 %v301, %v255
        %v1060 = vmul.f32 %v302, %v256
        %v1061 = vmul.f32 %v303, %v257
        %v1062 = vadd.f32 %v1050, %v1056
        %v1063 = vadd.f32 %v1051, %v1057
        %v1064 = vadd.f32 %v1052, %v1058
        %v1065 = vadd.f32 %v1053, %v1059
        %v1066 = vadd.f32 %v1054, %v1060
        %v1067 = vadd.f32 %v1055, %v1061
        %v1068 = vmul.f32 %v311, %v259
        %v1069 = vmul.f32 %v312, %v260
        %v1070 = vmul.f32 %v313, %v261
        %v1071 = vmul.f32 %v314, %v262
        %v1072 = vmul.f32 %v315, %v263
        %v1073 = vmul.f32 %v316, %v264
        %v1074 = vadd.f32 %v1062, %v1068
        %v1075 = vadd.f32 %v1063, %v1069
        %v1076 = vadd.f32 %v1064, %v1070
        %v1077 = vadd.f32 %v1065, %v1071
        %v1078 = vadd.f32 %v1066, %v1072
        %v1079 = vadd.f32 %v1067, %v1073
        %v1080 = vadd.f32 %v846, %v664
        %v1081 = vadd.f32 %v847, %v665
        %v1082 = vpack.c.bf16 %v1076, %v1074
        %v1083 = vpack.c.bf16 %v1077, %v1075
        %v1084 = vpack.c.bf16 %v1078, %v1078
        %v1085 = vpack.c.bf16 %v1079, %v1079
        %v1086 = vunpack.c.l.bf16 %v1082
        %v1087 = vunpack.c.l.bf16 %v1083
        %v1088 = vunpack.c.h.bf16 %v1082
        %v1089 = vunpack.c.h.bf16 %v1083
        %v1090 = vunpack.c.l.bf16 %v1084
        %v1091 = vunpack.c.l.bf16 %v1085
        %v1092 = vsub.f32 %v1074, %v1086
        %v1093 = vsub.f32 %v1075, %v1087
        %v1094 = vsub.f32 %v1076, %v1088
        %v1095 = vsub.f32 %v1077, %v1089
        %v1096 = vsub.f32 %v1078, %v1090
        %v1097 = vsub.f32 %v1079, %v1091
        %v1098 = vpack.c.bf16 %v1094, %v1092
        %v1099 = vpack.c.bf16 %v1095, %v1093
        %v1100 = vpack.c.bf16 %v1096, %v1096
        %v1101 = vpack.c.bf16 %v1097, %v1097
        %1102 = vmatprep.subr.bf16.mxu0 0
        %1103 = vmatpush1.bf16.msra.mxu0 %v522
        %1104 = vmatprep.subr.bf16.mxu0 0
        %1105 = vmatpush1.bf16.msra.mxu0 %v521
        %1106 = vmatprep.subr.bf16.mxu0 0
        %1107 = vmatpush1.bf16.msra.mxu0 %v520
        %1108 = vmatprep.subr.bf16.mxu0 0
        %1109 = vmatpush1.bf16.msra.mxu0 %v519
        %1110 = vmatprep.subr.bf16.mxu0 0
        %1111 = vmatpush1.bf16.msra.mxu0 %v518
        %1112 = vmatprep.subr.bf16.mxu0 0
        %1113 = vmatpush1.bf16.msra.mxu0 %v517
        %1114 = vmatprep.subr.bf16.mxu0 0
        %1115 = vmatpush1.bf16.msra.mxu0 %v516
        %1116 = vmatprep.subr.bf16.mxu0 0
        %1117 = vmatpush1.bf16.msra.mxu0 %v515
        %1118 = vmatprep.subr.bf16.mxu0 0
        %1119 = vmatpush2.bf16.msra.mxu0 %v530
        %1120 = vmatprep.subr.bf16.mxu0 0
        %1121 = vmatpush2.bf16.msra.mxu0 %v529
        %1122 = vmatprep.subr.bf16.mxu0 0
        %1123 = vmatpush2.bf16.msra.mxu0 %v528
        %1124 = vmatprep.subr.bf16.mxu0 0
        %1125 = vmatpush2.bf16.msra.mxu0 %v527
        %1126 = vmatprep.subr.bf16.mxu0 0
        %1127 = vmatpush2.bf16.msra.mxu0 %v526
        %1128 = vmatprep.subr.bf16.mxu0 0
        %1129 = vmatpush2.bf16.msra.mxu0 %v525
        %1130 = vmatprep.subr.bf16.mxu0 0
        %1131 = vmatpush2.bf16.msra.mxu0 %v524
        %1132 = vmatprep.subr.bf16.mxu0 0
        %1133 = vmatpush2.bf16.msra.mxu0 %v523
        %1134 = vmatprep.mubr.bf16.mxu0 %v1099
        %1135 = vmatmul.mubr.bf16.gmra.mxu0 %v1098
        %v1136 = vpop.f32.mrf.mxu0
        %v1137 = vadd.f32 0.0, %v1136
        %v1138 = vpop.f32.mrf.mxu0
        %v1139 = vpop.f32.mrf.mxu0
        %v1140 = vadd.f32 0.0, %v1139
        %v1141 = vpop.f32.mrf.mxu0
        %1142 = vmatprep.mubr.bf16.mxu0 %v1101
        %1143 = vmatmul.mubr.bf16.gmra.mxu0 %v1100
        %v1144 = vpop.f32.mrf.mxu0
        %v1145 = vadd.f32 0.0, %v1144
        %v1146 = vpop.f32.mrf.mxu0
        %v1147 = vpop.f32.mrf.mxu0
        %v1148 = vpop.f32.mrf.mxu0
        %1149 = vdwg.mxu0
        %1150 = vmatprep.subr.bf16.mxu0 0
        %1151 = vmatpush1.bf16.msra.mxu0 %v522
        %1152 = vmatprep.subr.bf16.mxu0 0
        %1153 = vmatpush1.bf16.msra.mxu0 %v521
        %1154 = vmatprep.subr.bf16.mxu0 0
        %1155 = vmatpush1.bf16.msra.mxu0 %v520
        %1156 = vmatprep.subr.bf16.mxu0 0
        %1157 = vmatpush1.bf16.msra.mxu0 %v519
        %1158 = vmatprep.subr.bf16.mxu0 0
        %1159 = vmatpush1.bf16.msra.mxu0 %v518
        %1160 = vmatprep.subr.bf16.mxu0 0
        %1161 = vmatpush1.bf16.msra.mxu0 %v517
        %1162 = vmatprep.subr.bf16.mxu0 0
        %1163 = vmatpush1.bf16.msra.mxu0 %v516
        %1164 = vmatprep.subr.bf16.mxu0 0
        %1165 = vmatpush1.bf16.msra.mxu0 %v515
        %1166 = vmatprep.subr.bf16.mxu0 0
        %1167 = vmatpush2.bf16.msra.mxu0 %v530
        %1168 = vmatprep.subr.bf16.mxu0 0
        %1169 = vmatpush2.bf16.msra.mxu0 %v529
        %1170 = vmatprep.subr.bf16.mxu0 0
        %1171 = vmatpush2.bf16.msra.mxu0 %v528
        %1172 = vmatprep.subr.bf16.mxu0 0
        %1173 = vmatpush2.bf16.msra.mxu0 %v527
        %1174 = vmatprep.subr.bf16.mxu0 0
        %1175 = vmatpush2.bf16.msra.mxu0 %v526
        %1176 = vmatprep.subr.bf16.mxu0 0
        %1177 = vmatpush2.bf16.msra.mxu0 %v525
        %1178 = vmatprep.subr.bf16.mxu0 0
        %1179 = vmatpush2.bf16.msra.mxu0 %v524
        %1180 = vmatprep.subr.bf16.mxu0 0
        %1181 = vmatpush2.bf16.msra.mxu0 %v523
        %1182 = vmatprep.mubr.bf16.mxu0 %v1083
        %1183 = vmatmul.mubr.bf16.gmra.mxu0 %v1082
        %v1184 = vpop.f32.mrf.mxu0
        %v1185 = vadd.f32 %v1137, %v1184
        %v1186 = vpop.f32.mrf.mxu0
        %v1187 = vpop.f32.mrf.mxu0
        %v1188 = vadd.f32 %v1140, %v1187
        %v1189 = vpop.f32.mrf.mxu0
        %1190 = vmatprep.mubr.bf16.mxu0 %v1085
        %1191 = vmatmul.mubr.bf16.gmra.mxu0 %v1084
        %v1192 = vpop.f32.mrf.mxu0
        %v1193 = vadd.f32 %v1145, %v1192
        %v1194 = vpop.f32.mrf.mxu0
        %v1195 = vpop.f32.mrf.mxu0
        %v1196 = vpop.f32.mrf.mxu0
        %1197 = vdwg.mxu0
        %v1201 = vrot.slane %v1185, 1
        %v1202 = vrot.slane %v1188, 1
        %v1203 = vsel %vm646, %v1201, %v1202
        %v1204 = vrot.slane %v1193, 1
        %v1205 = vsel %vm646, %v1202, %v1204
        %v1208 = vadd.f32 %v1185, %v1203
        %v1209 = vadd.f32 %v1188, %v1205
        %v1210 = vrot.slane %v1185, 2
        %v1211 = vrot.slane %v1188, 2
        %v1212 = vsel %vm656, %v1210, %v1211
        %v1213 = vrot.slane %v1193, 2
        %v1214 = vsel %vm656, %v1211, %v1213
        %v1217 = vadd.f32 %v1208, %v1212
        %v1218 = vadd.f32 %v1209, %v1214
        %v1219 = vmul.f32 %v1217, 2.0
        %v1220 = vmul.f32 %v1218, 2.0
        %v1221 = vsub.f32 %v1080, %v1219
        %v1222 = vsub.f32 %v1081, %v1220
        %v1223 = vmax.f32 %v1221, 0.0
        %v1224 = vmax.f32 %v1222, 0.0
        %s1225 = scalar_lea.vmem %s192, 128 [#allocation2]
        %1226 = vst [vmem:[%s1225] sm:$0xff] %v1223
        %1227 = vst [vmem:[%s1225 + $0x8] sm:$0xff] %v1224
        %vm1234 = vcmask 1040384
        %v1235 = vrot.slane %v238, 7
        %v1236 = vrot.slane %v239, 7
        %v1237 = vrot.slane %v240, 7
        %v1238 = vsel %vm1234, %v1235, %v1237
        %v1239 = vrot.slane %v241, 7
        %v1240 = vsel %vm1234, %v1236, %v1239
        %v1241 = vrot.slane %v242, 7
        %v1242 = vsel %vm1234, %v1237, %v1241
        %v1243 = vrot.slane %v243, 7
        %v1244 = vsel %vm1234, %v1239, %v1243
        %v1251 = vmul.f32 %v270, %v1235
        %v1252 = vmul.f32 %v271, %v1236
        %v1253 = vmul.f32 %v272, %v1238
        %v1254 = vmul.f32 %v273, %v1240
        %v1255 = vmul.f32 %v274, %v1242
        %v1256 = vmul.f32 %v275, %v1244
        %v1263 = vrot.slane %v245, 7
        %v1264 = vrot.slane %v246, 7
        %v1265 = vrot.slane %v247, 7
        %v1266 = vsel %vm1234, %v1263, %v1265
        %v1267 = vrot.slane %v248, 7
        %v1268 = vsel %vm1234, %v1264, %v1267
        %v1269 = vrot.slane %v249, 7
        %v1270 = vsel %vm1234, %v1265, %v1269
        %v1271 = vrot.slane %v250, 7
        %v1272 = vsel %vm1234, %v1267, %v1271
        %v1279 = vmul.f32 %v283, %v1263
        %v1280 = vmul.f32 %v284, %v1264
        %v1281 = vmul.f32 %v285, %v1266
        %v1282 = vmul.f32 %v286, %v1268
        %v1283 = vmul.f32 %v287, %v1270
        %v1284 = vmul.f32 %v288, %v1272
        %v1285 = vadd.f32 %v1251, %v1279
        %v1286 = vadd.f32 %v1252, %v1280
        %v1287 = vadd.f32 %v1253, %v1281
        %v1288 = vadd.f32 %v1254, %v1282
        %v1289 = vadd.f32 %v1255, %v1283
        %v1290 = vadd.f32 %v1256, %v1284
        %v1297 = vrot.slane %v252, 7
        %v1298 = vrot.slane %v253, 7
        %v1299 = vrot.slane %v254, 7
        %v1300 = vsel %vm1234, %v1297, %v1299
        %v1301 = vrot.slane %v255, 7
        %v1302 = vsel %vm1234, %v1298, %v1301
        %v1303 = vrot.slane %v256, 7
        %v1304 = vsel %vm1234, %v1299, %v1303
        %v1305 = vrot.slane %v257, 7
        %v1306 = vsel %vm1234, %v1301, %v1305
        %v1313 = vmul.f32 %v296, %v1297
        %v1314 = vmul.f32 %v297, %v1298
        %v1315 = vmul.f32 %v298, %v1300
        %v1316 = vmul.f32 %v299, %v1302
        %v1317 = vmul.f32 %v300, %v1304
        %v1318 = vmul.f32 %v301, %v1306
        %v1319 = vadd.f32 %v1285, %v1313
        %v1320 = vadd.f32 %v1286, %v1314
        %v1321 = vadd.f32 %v1287, %v1315
        %v1322 = vadd.f32 %v1288, %v1316
        %v1323 = vadd.f32 %v1289, %v1317
        %v1324 = vadd.f32 %v1290, %v1318
        %v1331 = vrot.slane %v259, 7
        %v1332 = vrot.slane %v260, 7
        %v1333 = vrot.slane %v261, 7
        %v1334 = vsel %vm1234, %v1331, %v1333
        %v1335 = vrot.slane %v262, 7
        %v1336 = vsel %vm1234, %v1332, %v1335
        %v1337 = vrot.slane %v263, 7
        %v1338 = vsel %vm1234, %v1333, %v1337
        %v1339 = vrot.slane %v264, 7
        %v1340 = vsel %vm1234, %v1335, %v1339
        %v1347 = vmul.f32 %v309, %v1331
        %v1348 = vmul.f32 %v310, %v1332
        %v1349 = vmul.f32 %v311, %v1334
        %v1350 = vmul.f32 %v312, %v1336
        %v1351 = vmul.f32 %v313, %v1338
        %v1352 = vmul.f32 %v314, %v1340
        %v1353 = vadd.f32 %v1319, %v1347
        %v1354 = vadd.f32 %v1320, %v1348
        %v1355 = vadd.f32 %v1321, %v1349
        %v1356 = vadd.f32 %v1322, %v1350
        %v1357 = vadd.f32 %v1323, %v1351
        %v1358 = vadd.f32 %v1324, %v1352
        %v1361 = vrot.slane %v664, 7
        %v1362 = vrot.slane %v665, 7
        %v1363 = vsel %vm1234, %v1361, %v1362
        %v1367 = vadd.f32 %v845, %v1361
        %v1368 = vadd.f32 %v846, %v1363
        %v1369 = vadd.f32 %v847, %v1362
        %v1370 = vpack.c.bf16 %v1355, %v1353
        %v1371 = vpack.c.bf16 %v1356, %v1354
        %v1372 = vpack.c.bf16 %v1357, %v1357
        %v1373 = vpack.c.bf16 %v1358, %v1358
        %v1374 = vunpack.c.l.bf16 %v1370
        %v1375 = vunpack.c.l.bf16 %v1371
        %v1376 = vunpack.c.h.bf16 %v1370
        %v1377 = vunpack.c.h.bf16 %v1371
        %v1378 = vunpack.c.l.bf16 %v1372
        %v1379 = vunpack.c.l.bf16 %v1373
        %v1380 = vsub.f32 %v1353, %v1374
        %v1381 = vsub.f32 %v1354, %v1375
        %v1382 = vsub.f32 %v1355, %v1376
        %v1383 = vsub.f32 %v1356, %v1377
        %v1384 = vsub.f32 %v1357, %v1378
        %v1385 = vsub.f32 %v1358, %v1379
        %v1386 = vpack.c.bf16 %v1382, %v1380
        %v1387 = vpack.c.bf16 %v1383, %v1381
        %v1388 = vpack.c.bf16 %v1384, %v1384
        %v1389 = vpack.c.bf16 %v1385, %v1385
        %vm1390 = vsmask.f32 7424
        %v1392 = vshrl.u32 %v1386, 16
        %v1394 = vshll.u32 %v1386, 16
        %v1396 = vrot.slane %v1394, 1
        %v1397 = vor.u32 %v1392, %v1396
        %v1399 = vshll.u32 %v1388, 16
        %v1401 = vrot.slane %v1399, 1
        %v1402 = vsel %vm1390, %v1397, %v1401
        %v1404 = vshrl.u32 %v1387, 16
        %v1406 = vshll.u32 %v1387, 16
        %v1408 = vrot.slane %v1406, 1
        %v1409 = vor.u32 %v1404, %v1408
        %v1411 = vshll.u32 %v1389, 16
        %v1413 = vrot.slane %v1411, 1
        %v1414 = vsel %vm1390, %v1409, %v1413
        %v1415 = vshrl.u32 %v1388, 16
        %v1417 = vor.u32 %v1415, %v1401
        %v1418 = vshrl.u32 %v1389, 16
        %v1420 = vor.u32 %v1418, %v1413
        %1425 = vmatprep.subr.bf16.mxu0 0
        %1426 = vmatpush1.bf16.msra.mxu0 %v522
        %1427 = vmatprep.subr.bf16.mxu0 0
        %1428 = vmatpush1.bf16.msra.mxu0 %v521
        %1429 = vmatprep.subr.bf16.mxu0 0
        %1430 = vmatpush1.bf16.msra.mxu0 %v520
        %1431 = vmatprep.subr.bf16.mxu0 0
        %1432 = vmatpush1.bf16.msra.mxu0 %v519
        %1433 = vmatprep.subr.bf16.mxu0 0
        %1434 = vmatpush1.bf16.msra.mxu0 %v518
        %1435 = vmatprep.subr.bf16.mxu0 0
        %1436 = vmatpush1.bf16.msra.mxu0 %v517
        %1437 = vmatprep.subr.bf16.mxu0 0
        %1438 = vmatpush1.bf16.msra.mxu0 %v516
        %1439 = vmatprep.subr.bf16.mxu0 0
        %1440 = vmatpush1.bf16.msra.mxu0 %v515
        %1441 = vmatprep.subr.bf16.mxu0 0
        %1442 = vmatpush2.bf16.msra.mxu0 %v530
        %1443 = vmatprep.subr.bf16.mxu0 0
        %1444 = vmatpush2.bf16.msra.mxu0 %v529
        %1445 = vmatprep.subr.bf16.mxu0 0
        %1446 = vmatpush2.bf16.msra.mxu0 %v528
        %1447 = vmatprep.subr.bf16.mxu0 0
        %1448 = vmatpush2.bf16.msra.mxu0 %v527
        %1449 = vmatprep.subr.bf16.mxu0 0
        %1450 = vmatpush2.bf16.msra.mxu0 %v526
        %1451 = vmatprep.subr.bf16.mxu0 0
        %1452 = vmatpush2.bf16.msra.mxu0 %v525
        %1453 = vmatprep.subr.bf16.mxu0 0
        %1454 = vmatpush2.bf16.msra.mxu0 %v524
        %1455 = vmatprep.subr.bf16.mxu0 0
        %1456 = vmatpush2.bf16.msra.mxu0 %v523
        %1457 = vmatprep.mubr.bf16.mxu0 %v1414
        %1458 = vmatmul.mubr.bf16.gmra.mxu0 %v1402
        %v1459 = vpop.f32.mrf.mxu0
        %v1460 = vadd.f32 0.0, %v1459
        %v1461 = vpop.f32.mrf.mxu0
        %v1462 = vpop.f32.mrf.mxu0
        %v1463 = vadd.f32 0.0, %v1462
        %v1464 = vpop.f32.mrf.mxu0
        %1465 = vmatprep.mubr.bf16.mxu0 %v1420
        %1466 = vmatmul.mubr.bf16.gmra.mxu0 %v1417
        %v1467 = vpop.f32.mrf.mxu0
        %v1468 = vadd.f32 0.0, %v1467
        %v1469 = vpop.f32.mrf.mxu0
        %v1470 = vpop.f32.mrf.mxu0
        %v1471 = vpop.f32.mrf.mxu0
        %1472 = vdwg.mxu0
        %v1474 = vshrl.u32 %v1370, 16
        %v1476 = vshll.u32 %v1370, 16
        %v1478 = vrot.slane %v1476, 1
        %v1479 = vor.u32 %v1474, %v1478
        %v1481 = vshll.u32 %v1372, 16
        %v1483 = vrot.slane %v1481, 1
        %v1484 = vsel %vm1390, %v1479, %v1483
        %v1486 = vshrl.u32 %v1371, 16
        %v1488 = vshll.u32 %v1371, 16
        %v1490 = vrot.slane %v1488, 1
        %v1491 = vor.u32 %v1486, %v1490
        %v1493 = vshll.u32 %v1373, 16
        %v1495 = vrot.slane %v1493, 1
        %v1496 = vsel %vm1390, %v1491, %v1495
        %v1497 = vshrl.u32 %v1372, 16
        %v1499 = vor.u32 %v1497, %v1483
        %v1500 = vshrl.u32 %v1373, 16
        %v1502 = vor.u32 %v1500, %v1495
        %1507 = vmatprep.subr.bf16.mxu0 0
        %1508 = vmatpush1.bf16.msra.mxu0 %v522
        %1509 = vmatprep.subr.bf16.mxu0 0
        %1510 = vmatpush1.bf16.msra.mxu0 %v521
        %1511 = vmatprep.subr.bf16.mxu0 0
        %1512 = vmatpush1.bf16.msra.mxu0 %v520
        %1513 = vmatprep.subr.bf16.mxu0 0
        %1514 = vmatpush1.bf16.msra.mxu0 %v519
        %1515 = vmatprep.subr.bf16.mxu0 0
        %1516 = vmatpush1.bf16.msra.mxu0 %v518
        %1517 = vmatprep.subr.bf16.mxu0 0
        %1518 = vmatpush1.bf16.msra.mxu0 %v517
        %1519 = vmatprep.subr.bf16.mxu0 0
        %1520 = vmatpush1.bf16.msra.mxu0 %v516
        %1521 = vmatprep.subr.bf16.mxu0 0
        %1522 = vmatpush1.bf16.msra.mxu0 %v515
        %1523 = vmatprep.subr.bf16.mxu0 0
        %1524 = vmatpush2.bf16.msra.mxu0 %v530
        %1525 = vmatprep.subr.bf16.mxu0 0
        %1526 = vmatpush2.bf16.msra.mxu0 %v529
        %1527 = vmatprep.subr.bf16.mxu0 0
        %1528 = vmatpush2.bf16.msra.mxu0 %v528
        %1529 = vmatprep.subr.bf16.mxu0 0
        %1530 = vmatpush2.bf16.msra.mxu0 %v527
        %1531 = vmatprep.subr.bf16.mxu0 0
        %1532 = vmatpush2.bf16.msra.mxu0 %v526
        %1533 = vmatprep.subr.bf16.mxu0 0
        %1534 = vmatpush2.bf16.msra.mxu0 %v525
        %1535 = vmatprep.subr.bf16.mxu0 0
        %1536 = vmatpush2.bf16.msra.mxu0 %v524
        %1537 = vmatprep.subr.bf16.mxu0 0
        %1538 = vmatpush2.bf16.msra.mxu0 %v523
        %1539 = vmatprep.mubr.bf16.mxu0 %v1496
        %1540 = vmatmul.mubr.bf16.gmra.mxu0 %v1484
        %v1541 = vpop.f32.mrf.mxu0
        %v1542 = vadd.f32 %v1460, %v1541
        %v1543 = vpop.f32.mrf.mxu0
        %v1544 = vpop.f32.mrf.mxu0
        %v1545 = vadd.f32 %v1463, %v1544
        %v1546 = vpop.f32.mrf.mxu0
        %1547 = vmatprep.mubr.bf16.mxu0 %v1502
        %1548 = vmatmul.mubr.bf16.gmra.mxu0 %v1499
        %v1549 = vpop.f32.mrf.mxu0
        %v1550 = vadd.f32 %v1468, %v1549
        %v1551 = vpop.f32.mrf.mxu0
        %v1552 = vpop.f32.mrf.mxu0
        %v1553 = vpop.f32.mrf.mxu0
        %1554 = vdwg.mxu0
        %v1558 = vrot.slane %v1542, 1
        %v1559 = vrot.slane %v1545, 1
        %v1560 = vsel %vm646, %v1558, %v1559
        %v1561 = vrot.slane %v1550, 1
        %v1562 = vsel %vm646, %v1559, %v1561
        %v1565 = vadd.f32 %v1542, %v1560
        %v1566 = vadd.f32 %v1545, %v1562
        %v1567 = vrot.slane %v1542, 2
        %v1568 = vrot.slane %v1545, 2
        %v1569 = vsel %vm656, %v1567, %v1568
        %v1570 = vrot.slane %v1550, 2
        %v1571 = vsel %vm656, %v1568, %v1570
        %v1574 = vadd.f32 %v1565, %v1569
        %v1575 = vadd.f32 %v1566, %v1571
        %v1576 = vmul.f32 %v1574, 2.0
        %v1577 = vmul.f32 %v1575, 2.0
        %v1580 = vrot.slane %v1576, 7
        %v1581 = vrot.slane %v1577, 7
        %v1582 = vsel %vm1234, %v1580, %v1581
        %v1586 = vsub.f32 %v1367, %v1580
        %v1587 = vsub.f32 %v1368, %v1582
        %v1588 = vsub.f32 %v1369, %v1581
        %v1589 = vmax.f32 %v1586, 0.0
        %v1590 = vmax.f32 %v1587, 0.0
        %v1591 = vmax.f32 %v1588, 0.0
        %s1592 = scalar_lea.vmem %s192, 16 [#allocation2]
        %1593 = vst [vmem:[%s1592 - $0x1] sm:$0xfe] %v1589
        %1594 = vst [vmem:[%s1592 + $0x7] sm:$0xff] %v1590
        %1595 = vst [vmem:[%s1592 + $0xf] sm:$0x1] %v1591
        %v1596 = vmul.f32 %v272, %v1235
        %v1597 = vmul.f32 %v273, %v1236
        %v1598 = vmul.f32 %v274, %v1238
        %v1599 = vmul.f32 %v275, %v1240
        %v1600 = vmul.f32 %v276, %v1242
        %v1601 = vmul.f32 %v277, %v1244
        %v1602 = vmul.f32 %v285, %v1263
        %v1603 = vmul.f32 %v286, %v1264
        %v1604 = vmul.f32 %v287, %v1266
        %v1605 = vmul.f32 %v288, %v1268
        %v1606 = vmul.f32 %v289, %v1270
        %v1607 = vmul.f32 %v290, %v1272
        %v1608 = vadd.f32 %v1596, %v1602
        %v1609 = vadd.f32 %v1597, %v1603
        %v1610 = vadd.f32 %v1598, %v1604
        %v1611 = vadd.f32 %v1599, %v1605
        %v1612 = vadd.f32 %v1600, %v1606
        %v1613 = vadd.f32 %v1601, %v1607
        %v1614 = vmul.f32 %v298, %v1297
        %v1615 = vmul.f32 %v299, %v1298
        %v1616 = vmul.f32 %v300, %v1300
        %v1617 = vmul.f32 %v301, %v1302
        %v1618 = vmul.f32 %v302, %v1304
        %v1619 = vmul.f32 %v303, %v1306
        %v1620 = vadd.f32 %v1608, %v1614
        %v1621 = vadd.f32 %v1609, %v1615
        %v1622 = vadd.f32 %v1610, %v1616
        %v1623 = vadd.f32 %v1611, %v1617
        %v1624 = vadd.f32 %v1612, %v1618
        %v1625 = vadd.f32 %v1613, %v1619
        %v1626 = vmul.f32 %v311, %v1331
        %v1627 = vmul.f32 %v312, %v1332
        %v1628 = vmul.f32 %v313, %v1334
        %v1629 = vmul.f32 %v314, %v1336
        %v1630 = vmul.f32 %v315, %v1338
        %v1631 = vmul.f32 %v316, %v1340
        %v1632 = vadd.f32 %v1620, %v1626
        %v1633 = vadd.f32 %v1621, %v1627
        %v1634 = vadd.f32 %v1622, %v1628
        %v1635 = vadd.f32 %v1623, %v1629
        %v1636 = vadd.f32 %v1624, %v1630
        %v1637 = vadd.f32 %v1625, %v1631
        %v1638 = vadd.f32 %v846, %v1361
        %v1639 = vadd.f32 %v847, %v1363
        %v1640 = vadd.f32 %v848, %v1362
        %v1641 = vpack.c.bf16 %v1634, %v1632
        %v1642 = vpack.c.bf16 %v1635, %v1633
        %v1643 = vpack.c.bf16 %v1636, %v1636
        %v1644 = vpack.c.bf16 %v1637, %v1637
        %v1645 = vunpack.c.l.bf16 %v1641
        %v1646 = vunpack.c.l.bf16 %v1642
        %v1647 = vunpack.c.h.bf16 %v1641
        %v1648 = vunpack.c.h.bf16 %v1642
        %v1649 = vunpack.c.l.bf16 %v1643
        %v1650 = vunpack.c.l.bf16 %v1644
        %v1651 = vsub.f32 %v1632, %v1645
        %v1652 = vsub.f32 %v1633, %v1646
        %v1653 = vsub.f32 %v1634, %v1647
        %v1654 = vsub.f32 %v1635, %v1648
        %v1655 = vsub.f32 %v1636, %v1649
        %v1656 = vsub.f32 %v1637, %v1650
        %v1657 = vpack.c.bf16 %v1653, %v1651
        %v1658 = vpack.c.bf16 %v1654, %v1652
        %v1659 = vpack.c.bf16 %v1655, %v1655
        %v1660 = vpack.c.bf16 %v1656, %v1656
        %v1662 = vshrl.u32 %v1657, 16
        %v1664 = vshll.u32 %v1657, 16
        %v1666 = vrot.slane %v1664, 1
        %v1667 = vor.u32 %v1662, %v1666
        %v1669 = vshll.u32 %v1659, 16
        %v1671 = vrot.slane %v1669, 1
        %v1672 = vsel %vm1390, %v1667, %v1671
        %v1674 = vshrl.u32 %v1658, 16
        %v1676 = vshll.u32 %v1658, 16
        %v1678 = vrot.slane %v1676, 1
        %v1679 = vor.u32 %v1674, %v1678
        %v1681 = vshll.u32 %v1660, 16
        %v1683 = vrot.slane %v1681, 1
        %v1684 = vsel %vm1390, %v1679, %v1683
        %v1685 = vshrl.u32 %v1659, 16
        %v1687 = vor.u32 %v1685, %v1671
        %v1688 = vshrl.u32 %v1660, 16
        %v1690 = vor.u32 %v1688, %v1683
        %1695 = vmatprep.subr.bf16.mxu0 0
        %1696 = vmatpush1.bf16.msra.mxu0 %v522
        %1697 = vmatprep.subr.bf16.mxu0 0
        %1698 = vmatpush1.bf16.msra.mxu0 %v521
        %1699 = vmatprep.subr.bf16.mxu0 0
        %1700 = vmatpush1.bf16.msra.mxu0 %v520
        %1701 = vmatprep.subr.bf16.mxu0 0
        %1702 = vmatpush1.bf16.msra.mxu0 %v519
        %1703 = vmatprep.subr.bf16.mxu0 0
        %1704 = vmatpush1.bf16.msra.mxu0 %v518
        %1705 = vmatprep.subr.bf16.mxu0 0
        %1706 = vmatpush1.bf16.msra.mxu0 %v517
        %1707 = vmatprep.subr.bf16.mxu0 0
        %1708 = vmatpush1.bf16.msra.mxu0 %v516
        %1709 = vmatprep.subr.bf16.mxu0 0
        %1710 = vmatpush1.bf16.msra.mxu0 %v515
        %1711 = vmatprep.subr.bf16.mxu0 0
        %1712 = vmatpush2.bf16.msra.mxu0 %v530
        %1713 = vmatprep.subr.bf16.mxu0 0
        %1714 = vmatpush2.bf16.msra.mxu0 %v529
        %1715 = vmatprep.subr.bf16.mxu0 0
        %1716 = vmatpush2.bf16.msra.mxu0 %v528
        %1717 = vmatprep.subr.bf16.mxu0 0
        %1718 = vmatpush2.bf16.msra.mxu0 %v527
        %1719 = vmatprep.subr.bf16.mxu0 0
        %1720 = vmatpush2.bf16.msra.mxu0 %v526
        %1721 = vmatprep.subr.bf16.mxu0 0
        %1722 = vmatpush2.bf16.msra.mxu0 %v525
        %1723 = vmatprep.subr.bf16.mxu0 0
        %1724 = vmatpush2.bf16.msra.mxu0 %v524
        %1725 = vmatprep.subr.bf16.mxu0 0
        %1726 = vmatpush2.bf16.msra.mxu0 %v523
        %1727 = vmatprep.mubr.bf16.mxu0 %v1684
        %1728 = vmatmul.mubr.bf16.gmra.mxu0 %v1672
        %v1729 = vpop.f32.mrf.mxu0
        %v1730 = vadd.f32 0.0, %v1729
        %v1731 = vpop.f32.mrf.mxu0
        %v1732 = vpop.f32.mrf.mxu0
        %v1733 = vadd.f32 0.0, %v1732
        %v1734 = vpop.f32.mrf.mxu0
        %1735 = vmatprep.mubr.bf16.mxu0 %v1690
        %1736 = vmatmul.mubr.bf16.gmra.mxu0 %v1687
        %v1737 = vpop.f32.mrf.mxu0
        %v1738 = vadd.f32 0.0, %v1737
        %v1739 = vpop.f32.mrf.mxu0
        %v1740 = vpop.f32.mrf.mxu0
        %v1741 = vpop.f32.mrf.mxu0
        %1742 = vdwg.mxu0
        %v1744 = vshrl.u32 %v1641, 16
        %v1746 = vshll.u32 %v1641, 16
        %v1748 = vrot.slane %v1746, 1
        %v1749 = vor.u32 %v1744, %v1748
        %v1751 = vshll.u32 %v1643, 16
        %v1753 = vrot.slane %v1751, 1
        %v1754 = vsel %vm1390, %v1749, %v1753
        %v1756 = vshrl.u32 %v1642, 16
        %v1758 = vshll.u32 %v1642, 16
        %v1760 = vrot.slane %v1758, 1
        %v1761 = vor.u32 %v1756, %v1760
        %v1763 = vshll.u32 %v1644, 16
        %v1765 = vrot.slane %v1763, 1
        %v1766 = vsel %vm1390, %v1761, %v1765
        %v1767 = vshrl.u32 %v1643, 16
        %v1769 = vor.u32 %v1767, %v1753
        %v1770 = vshrl.u32 %v1644, 16
        %v1772 = vor.u32 %v1770, %v1765
        %1777 = vmatprep.subr.bf16.mxu0 0
        %1778 = vmatpush1.bf16.msra.mxu0 %v522
        %1779 = vmatprep.subr.bf16.mxu0 0
        %1780 = vmatpush1.bf16.msra.mxu0 %v521
        %1781 = vmatprep.subr.bf16.mxu0 0
        %1782 = vmatpush1.bf16.msra.mxu0 %v520
        %1783 = vmatprep.subr.bf16.mxu0 0
        %1784 = vmatpush1.bf16.msra.mxu0 %v519
        %1785 = vmatprep.subr.bf16.mxu0 0
        %1786 = vmatpush1.bf16.msra.mxu0 %v518
        %1787 = vmatprep.subr.bf16.mxu0 0
        %1788 = vmatpush1.bf16.msra.mxu0 %v517
        %1789 = vmatprep.subr.bf16.mxu0 0
        %1790 = vmatpush1.bf16.msra.mxu0 %v516
        %1791 = vmatprep.subr.bf16.mxu0 0
        %1792 = vmatpush1.bf16.msra.mxu0 %v515
        %1793 = vmatprep.subr.bf16.mxu0 0
        %1794 = vmatpush2.bf16.msra.mxu0 %v530
        %1795 = vmatprep.subr.bf16.mxu0 0
        %1796 = vmatpush2.bf16.msra.mxu0 %v529
        %1797 = vmatprep.subr.bf16.mxu0 0
        %1798 = vmatpush2.bf16.msra.mxu0 %v528
        %1799 = vmatprep.subr.bf16.mxu0 0
        %1800 = vmatpush2.bf16.msra.mxu0 %v527
        %1801 = vmatprep.subr.bf16.mxu0 0
        %1802 = vmatpush2.bf16.msra.mxu0 %v526
        %1803 = vmatprep.subr.bf16.mxu0 0
        %1804 = vmatpush2.bf16.msra.mxu0 %v525
        %1805 = vmatprep.subr.bf16.mxu0 0
        %1806 = vmatpush2.bf16.msra.mxu0 %v524
        %1807 = vmatprep.subr.bf16.mxu0 0
        %1808 = vmatpush2.bf16.msra.mxu0 %v523
        %1809 = vmatprep.mubr.bf16.mxu0 %v1766
        %1810 = vmatmul.mubr.bf16.gmra.mxu0 %v1754
        %v1811 = vpop.f32.mrf.mxu0
        %v1812 = vadd.f32 %v1730, %v1811
        %v1813 = vpop.f32.mrf.mxu0
        %v1814 = vpop.f32.mrf.mxu0
        %v1815 = vadd.f32 %v1733, %v1814
        %v1816 = vpop.f32.mrf.mxu0
        %1817 = vmatprep.mubr.bf16.mxu0 %v1772
        %1818 = vmatmul.mubr.bf16.gmra.mxu0 %v1769
        %v1819 = vpop.f32.mrf.mxu0
        %v1820 = vadd.f32 %v1738, %v1819
        %v1821 = vpop.f32.mrf.mxu0
        %v1822 = vpop.f32.mrf.mxu0
        %v1823 = vpop.f32.mrf.mxu0
        %1824 = vdwg.mxu0
        %v1828 = vrot.slane %v1812, 1
        %v1829 = vrot.slane %v1815, 1
        %v1830 = vsel %vm646, %v1828, %v1829
        %v1831 = vrot.slane %v1820, 1
        %v1832 = vsel %vm646, %v1829, %v1831
        %v1835 = vadd.f32 %v1812, %v1830
        %v1836 = vadd.f32 %v1815, %v1832
        %v1837 = vrot.slane %v1812, 2
        %v1838 = vrot.slane %v1815, 2
        %v1839 = vsel %vm656, %v1837, %v1838
        %v1840 = vrot.slane %v1820, 2
        %v1841 = vsel %vm656, %v1838, %v1840
        %v1844 = vadd.f32 %v1835, %v1839
        %v1845 = vadd.f32 %v1836, %v1841
        %v1846 = vmul.f32 %v1844, 2.0
        %v1847 = vmul.f32 %v1845, 2.0
        %v1850 = vrot.slane %v1846, 7
        %v1851 = vrot.slane %v1847, 7
        %v1852 = vsel %vm1234, %v1850, %v1851
        %v1856 = vsub.f32 %v1638, %v1850
        %v1857 = vsub.f32 %v1639, %v1852
        %v1858 = vsub.f32 %v1640, %v1851
        %v1859 = vmax.f32 %v1856, 0.0
        %v1860 = vmax.f32 %v1857, 0.0
        %v1861 = vmax.f32 %v1858, 0.0
        %s1862 = scalar_lea.vmem %s192, 144 [#allocation2]
        %1863 = vst [vmem:[%s1862 - $0x1] sm:$0xfe] %v1859
        %1864 = vst [vmem:[%s1862 + $0x7] sm:$0xff] %v1860
        %1865 = vst [vmem:[%s1862 + $0xf] sm:$0x1] %v1861
        %vm1866 = vcmask 1041408
        %v1867 = vrot.slane %v238, 6
        %v1868 = vrot.slane %v239, 6
        %v1869 = vrot.slane %v240, 6
        %v1870 = vsel %vm1866, %v1867, %v1869
        %v1871 = vrot.slane %v241, 6
        %v1872 = vsel %vm1866, %v1868, %v1871
        %v1873 = vrot.slane %v242, 6
        %v1874 = vsel %vm1866, %v1869, %v1873
        %v1875 = vrot.slane %v243, 6
        %v1876 = vsel %vm1866, %v1871, %v1875
        %v1883 = vmul.f32 %v270, %v1867
        %v1884 = vmul.f32 %v271, %v1868
        %v1885 = vmul.f32 %v272, %v1870
        %v1886 = vmul.f32 %v273, %v1872
        %v1887 = vmul.f32 %v274, %v1874
        %v1888 = vmul.f32 %v275, %v1876
        %v1889 = vrot.slane %v245, 6
        %v1890 = vrot.slane %v246, 6
        %v1891 = vrot.slane %v247, 6
        %v1892 = vsel %vm1866, %v1889, %v1891
        %v1893 = vrot.slane %v248, 6
        %v1894 = vsel %vm1866, %v1890, %v1893
        %v1895 = vrot.slane %v249, 6
        %v1896 = vsel %vm1866, %v1891, %v1895
        %v1897 = vrot.slane %v250, 6
        %v1898 = vsel %vm1866, %v1893, %v1897
        %v1905 = vmul.f32 %v283, %v1889
        %v1906 = vmul.f32 %v284, %v1890
        %v1907 = vmul.f32 %v285, %v1892
        %v1908 = vmul.f32 %v286, %v1894
        %v1909 = vmul.f32 %v287, %v1896
        %v1910 = vmul.f32 %v288, %v1898
        %v1911 = vadd.f32 %v1883, %v1905
        %v1912 = vadd.f32 %v1884, %v1906
        %v1913 = vadd.f32 %v1885, %v1907
        %v1914 = vadd.f32 %v1886, %v1908
        %v1915 = vadd.f32 %v1887, %v1909
        %v1916 = vadd.f32 %v1888, %v1910
        %v1917 = vrot.slane %v252, 6
        %v1918 = vrot.slane %v253, 6
        %v1919 = vrot.slane %v254, 6
        %v1920 = vsel %vm1866, %v1917, %v1919
        %v1921 = vrot.slane %v255, 6
        %v1922 = vsel %vm1866, %v1918, %v1921
        %v1923 = vrot.slane %v256, 6
        %v1924 = vsel %vm1866, %v1919, %v1923
        %v1925 = vrot.slane %v257, 6
        %v1926 = vsel %vm1866, %v1921, %v1925
        %v1933 = vmul.f32 %v296, %v1917
        %v1934 = vmul.f32 %v297, %v1918
        %v1935 = vmul.f32 %v298, %v1920
        %v1936 = vmul.f32 %v299, %v1922
        %v1937 = vmul.f32 %v300, %v1924
        %v1938 = vmul.f32 %v301, %v1926
        %v1939 = vadd.f32 %v1911, %v1933
        %v1940 = vadd.f32 %v1912, %v1934
        %v1941 = vadd.f32 %v1913, %v1935
        %v1942 = vadd.f32 %v1914, %v1936
        %v1943 = vadd.f32 %v1915, %v1937
        %v1944 = vadd.f32 %v1916, %v1938
        %v1945 = vrot.slane %v259, 6
        %v1946 = vrot.slane %v260, 6
        %v1947 = vrot.slane %v261, 6
        %v1948 = vsel %vm1866, %v1945, %v1947
        %v1949 = vrot.slane %v262, 6
        %v1950 = vsel %vm1866, %v1946, %v1949
        %v1951 = vrot.slane %v263, 6
        %v1952 = vsel %vm1866, %v1947, %v1951
        %v1953 = vrot.slane %v264, 6
        %v1954 = vsel %vm1866, %v1949, %v1953
        %v1961 = vmul.f32 %v309, %v1945
        %v1962 = vmul.f32 %v310, %v1946
        %v1963 = vmul.f32 %v311, %v1948
        %v1964 = vmul.f32 %v312, %v1950
        %v1965 = vmul.f32 %v313, %v1952
        %v1966 = vmul.f32 %v314, %v1954
        %v1967 = vadd.f32 %v1939, %v1961
        %v1968 = vadd.f32 %v1940, %v1962
        %v1969 = vadd.f32 %v1941, %v1963
        %v1970 = vadd.f32 %v1942, %v1964
        %v1971 = vadd.f32 %v1943, %v1965
        %v1972 = vadd.f32 %v1944, %v1966
        %v1973 = vrot.slane %v664, 6
        %v1974 = vrot.slane %v665, 6
        %v1975 = vsel %vm1866, %v1973, %v1974
        %v1979 = vadd.f32 %v845, %v1973
        %v1980 = vadd.f32 %v846, %v1975
        %v1981 = vadd.f32 %v847, %v1974
        %v1982 = vpack.c.bf16 %v1969, %v1967
        %v1983 = vpack.c.bf16 %v1970, %v1968
        %v1984 = vpack.c.bf16 %v1971, %v1971
        %v1985 = vpack.c.bf16 %v1972, %v1972
        %v1986 = vunpack.c.l.bf16 %v1982
        %v1987 = vunpack.c.l.bf16 %v1983
        %v1988 = vunpack.c.h.bf16 %v1982
        %v1989 = vunpack.c.h.bf16 %v1983
        %v1990 = vunpack.c.l.bf16 %v1984
        %v1991 = vunpack.c.l.bf16 %v1985
        %v1992 = vsub.f32 %v1967, %v1986
        %v1993 = vsub.f32 %v1968, %v1987
        %v1994 = vsub.f32 %v1969, %v1988
        %v1995 = vsub.f32 %v1970, %v1989
        %v1996 = vsub.f32 %v1971, %v1990
        %v1997 = vsub.f32 %v1972, %v1991
        %v1998 = vpack.c.bf16 %v1994, %v1992
        %v1999 = vpack.c.bf16 %v1995, %v1993
        %v2000 = vpack.c.bf16 %v1996, %v1996
        %v2001 = vpack.c.bf16 %v1997, %v1997
        %vm2006 = vcmask 1046528
        %v2007 = vrot.slane %v1998, 1
        %v2008 = vrot.slane %v2000, 1
        %v2009 = vsel %vm2006, %v2007, %v2008
        %v2010 = vrot.slane %v1999, 1
        %v2011 = vrot.slane %v2001, 1
        %v2012 = vsel %vm2006, %v2010, %v2011
        %2017 = vmatprep.subr.bf16.mxu0 0
        %2018 = vmatpush1.bf16.msra.mxu0 %v522
        %2019 = vmatprep.subr.bf16.mxu0 0
        %2020 = vmatpush1.bf16.msra.mxu0 %v521
        %2021 = vmatprep.subr.bf16.mxu0 0
        %2022 = vmatpush1.bf16.msra.mxu0 %v520
        %2023 = vmatprep.subr.bf16.mxu0 0
        %2024 = vmatpush1.bf16.msra.mxu0 %v519
        %2025 = vmatprep.subr.bf16.mxu0 0
        %2026 = vmatpush1.bf16.msra.mxu0 %v518
        %2027 = vmatprep.subr.bf16.mxu0 0
        %2028 = vmatpush1.bf16.msra.mxu0 %v517
        %2029 = vmatprep.subr.bf16.mxu0 0
        %2030 = vmatpush1.bf16.msra.mxu0 %v516
        %2031 = vmatprep.subr.bf16.mxu0 0
        %2032 = vmatpush1.bf16.msra.mxu0 %v515
        %2033 = vmatprep.subr.bf16.mxu0 0
        %2034 = vmatpush2.bf16.msra.mxu0 %v530
        %2035 = vmatprep.subr.bf16.mxu0 0
        %2036 = vmatpush2.bf16.msra.mxu0 %v529
        %2037 = vmatprep.subr.bf16.mxu0 0
        %2038 = vmatpush2.bf16.msra.mxu0 %v528
        %2039 = vmatprep.subr.bf16.mxu0 0
        %2040 = vmatpush2.bf16.msra.mxu0 %v527
        %2041 = vmatprep.subr.bf16.mxu0 0
        %2042 = vmatpush2.bf16.msra.mxu0 %v526
        %2043 = vmatprep.subr.bf16.mxu0 0
        %2044 = vmatpush2.bf16.msra.mxu0 %v525
        %2045 = vmatprep.subr.bf16.mxu0 0
        %2046 = vmatpush2.bf16.msra.mxu0 %v524
        %2047 = vmatprep.subr.bf16.mxu0 0
        %2048 = vmatpush2.bf16.msra.mxu0 %v523
        %2049 = vmatprep.mubr.bf16.mxu0 %v2012
        %2050 = vmatmul.mubr.bf16.gmra.mxu0 %v2009
        %v2051 = vpop.f32.mrf.mxu0
        %v2052 = vadd.f32 0.0, %v2051
        %v2053 = vpop.f32.mrf.mxu0
        %v2054 = vpop.f32.mrf.mxu0
        %v2055 = vadd.f32 0.0, %v2054
        %v2056 = vpop.f32.mrf.mxu0
        %2057 = vmatprep.mubr.bf16.mxu0 %v2011
        %2058 = vmatmul.mubr.bf16.gmra.mxu0 %v2008
        %v2059 = vpop.f32.mrf.mxu0
        %v2060 = vadd.f32 0.0, %v2059
        %v2061 = vpop.f32.mrf.mxu0
        %v2062 = vpop.f32.mrf.mxu0
        %v2063 = vpop.f32.mrf.mxu0
        %2064 = vdwg.mxu0
        %v2069 = vrot.slane %v1982, 1
        %v2070 = vrot.slane %v1984, 1
        %v2071 = vsel %vm2006, %v2069, %v2070
        %v2072 = vrot.slane %v1983, 1
        %v2073 = vrot.slane %v1985, 1
        %v2074 = vsel %vm2006, %v2072, %v2073
        %2079 = vmatprep.subr.bf16.mxu0 0
        %2080 = vmatpush1.bf16.msra.mxu0 %v522
        %2081 = vmatprep.subr.bf16.mxu0 0
        %2082 = vmatpush1.bf16.msra.mxu0 %v521
        %2083 = vmatprep.subr.bf16.mxu0 0
        %2084 = vmatpush1.bf16.msra.mxu0 %v520
        %2085 = vmatprep.subr.bf16.mxu0 0
        %2086 = vmatpush1.bf16.msra.mxu0 %v519
        %2087 = vmatprep.subr.bf16.mxu0 0
        %2088 = vmatpush1.bf16.msra.mxu0 %v518
        %2089 = vmatprep.subr.bf16.mxu0 0
        %2090 = vmatpush1.bf16.msra.mxu0 %v517
        %2091 = vmatprep.subr.bf16.mxu0 0
        %2092 = vmatpush1.bf16.msra.mxu0 %v516
        %2093 = vmatprep.subr.bf16.mxu0 0
        %2094 = vmatpush1.bf16.msra.mxu0 %v515
        %2095 = vmatprep.subr.bf16.mxu0 0
        %2096 = vmatpush2.bf16.msra.mxu0 %v530
        %2097 = vmatprep.subr.bf16.mxu0 0
        %2098 = vmatpush2.bf16.msra.mxu0 %v529
        %2099 = vmatprep.subr.bf16.mxu0 0
        %2100 = vmatpush2.bf16.msra.mxu0 %v528
        %2101 = vmatprep.subr.bf16.mxu0 0
        %2102 = vmatpush2.bf16.msra.mxu0 %v527
        %2103 = vmatprep.subr.bf16.mxu0 0
        %2104 = vmatpush2.bf16.msra.mxu0 %v526
        %2105 = vmatprep.subr.bf16.mxu0 0
        %2106 = vmatpush2.bf16.msra.mxu0 %v525
        %2107 = vmatprep.subr.bf16.mxu0 0
        %2108 = vmatpush2.bf16.msra.mxu0 %v524
        %2109 = vmatprep.subr.bf16.mxu0 0
        %2110 = vmatpush2.bf16.msra.mxu0 %v523
        %2111 = vmatprep.mubr.bf16.mxu0 %v2074
        %2112 = vmatmul.mubr.bf16.gmra.mxu0 %v2071
        %v2113 = vpop.f32.mrf.mxu0
        %v2114 = vadd.f32 %v2052, %v2113
        %v2115 = vpop.f32.mrf.mxu0
        %v2116 = vpop.f32.mrf.mxu0
        %v2117 = vadd.f32 %v2055, %v2116
        %v2118 = vpop.f32.mrf.mxu0
        %2119 = vmatprep.mubr.bf16.mxu0 %v2073
        %2120 = vmatmul.mubr.bf16.gmra.mxu0 %v2070
        %v2121 = vpop.f32.mrf.mxu0
        %v2122 = vadd.f32 %v2060, %v2121
        %v2123 = vpop.f32.mrf.mxu0
        %v2124 = vpop.f32.mrf.mxu0
        %v2125 = vpop.f32.mrf.mxu0
        %2126 = vdwg.mxu0
        %v2130 = vrot.slane %v2114, 1
        %v2131 = vrot.slane %v2117, 1
        %v2132 = vsel %vm646, %v2130, %v2131
        %v2133 = vrot.slane %v2122, 1
        %v2134 = vsel %vm646, %v2131, %v2133
        %v2137 = vadd.f32 %v2114, %v2132
        %v2138 = vadd.f32 %v2117, %v2134
        %v2139 = vrot.slane %v2114, 2
        %v2140 = vrot.slane %v2117, 2
        %v2141 = vsel %vm656, %v2139, %v2140
        %v2142 = vrot.slane %v2122, 2
        %v2143 = vsel %vm656, %v2140, %v2142
        %v2146 = vadd.f32 %v2137, %v2141
        %v2147 = vadd.f32 %v2138, %v2143
        %v2148 = vmul.f32 %v2146, 2.0
        %v2149 = vmul.f32 %v2147, 2.0
        %v2152 = vrot.slane %v2148, 6
        %v2153 = vrot.slane %v2149, 6
        %v2154 = vsel %vm1866, %v2152, %v2153
        %v2158 = vsub.f32 %v1979, %v2152
        %v2159 = vsub.f32 %v1980, %v2154
        %v2160 = vsub.f32 %v1981, %v2153
        %v2161 = vmax.f32 %v2158, 0.0
        %v2162 = vmax.f32 %v2159, 0.0
        %v2163 = vmax.f32 %v2160, 0.0
        %s2164 = scalar_lea.vmem %s192, 32 [#allocation2]
        %2165 = vst [vmem:[%s2164 - $0x2] sm:$0xfc] %v2161
        %2166 = vst [vmem:[%s2164 + $0x6] sm:$0xff] %v2162
        %2167 = vst [vmem:[%s2164 + $0xe] sm:$0x3] %v2163
        %v2168 = vmul.f32 %v272, %v1867
        %v2169 = vmul.f32 %v273, %v1868
        %v2170 = vmul.f32 %v274, %v1870
        %v2171 = vmul.f32 %v275, %v1872
        %v2172 = vmul.f32 %v276, %v1874
        %v2173 = vmul.f32 %v277, %v1876
        %v2174 = vmul.f32 %v285, %v1889
        %v2175 = vmul.f32 %v286, %v1890
        %v2176 = vmul.f32 %v287, %v1892
        %v2177 = vmul.f32 %v288, %v1894
        %v2178 = vmul.f32 %v289, %v1896
        %v2179 = vmul.f32 %v290, %v1898
        %v2180 = vadd.f32 %v2168, %v2174
        %v2181 = vadd.f32 %v2169, %v2175
        %v2182 = vadd.f32 %v2170, %v2176
        %v2183 = vadd.f32 %v2171, %v2177
        %v2184 = vadd.f32 %v2172, %v2178
        %v2185 = vadd.f32 %v2173, %v2179
        %v2186 = vmul.f32 %v298, %v1917
        %v2187 = vmul.f32 %v299, %v1918
        %v2188 = vmul.f32 %v300, %v1920
        %v2189 = vmul.f32 %v301, %v1922
        %v2190 = vmul.f32 %v302, %v1924
        %v2191 = vmul.f32 %v303, %v1926
        %v2192 = vadd.f32 %v2180, %v2186
        %v2193 = vadd.f32 %v2181, %v2187
        %v2194 = vadd.f32 %v2182, %v2188
        %v2195 = vadd.f32 %v2183, %v2189
        %v2196 = vadd.f32 %v2184, %v2190
        %v2197 = vadd.f32 %v2185, %v2191
        %v2198 = vmul.f32 %v311, %v1945
        %v2199 = vmul.f32 %v312, %v1946
        %v2200 = vmul.f32 %v313, %v1948
        %v2201 = vmul.f32 %v314, %v1950
        %v2202 = vmul.f32 %v315, %v1952
        %v2203 = vmul.f32 %v316, %v1954
        %v2204 = vadd.f32 %v2192, %v2198
        %v2205 = vadd.f32 %v2193, %v2199
        %v2206 = vadd.f32 %v2194, %v2200
        %v2207 = vadd.f32 %v2195, %v2201
        %v2208 = vadd.f32 %v2196, %v2202
        %v2209 = vadd.f32 %v2197, %v2203
        %v2210 = vadd.f32 %v846, %v1973
        %v2211 = vadd.f32 %v847, %v1975
        %v2212 = vadd.f32 %v848, %v1974
        %v2213 = vpack.c.bf16 %v2206, %v2204
        %v2214 = vpack.c.bf16 %v2207, %v2205
        %v2215 = vpack.c.bf16 %v2208, %v2208
        %v2216 = vpack.c.bf16 %v2209, %v2209
        %v2217 = vunpack.c.l.bf16 %v2213
        %v2218 = vunpack.c.l.bf16 %v2214
        %v2219 = vunpack.c.h.bf16 %v2213
        %v2220 = vunpack.c.h.bf16 %v2214
        %v2221 = vunpack.c.l.bf16 %v2215
        %v2222 = vunpack.c.l.bf16 %v2216
        %v2223 = vsub.f32 %v2204, %v2217
        %v2224 = vsub.f32 %v2205, %v2218
        %v2225 = vsub.f32 %v2206, %v2219
        %v2226 = vsub.f32 %v2207, %v2220
        %v2227 = vsub.f32 %v2208, %v2221
        %v2228 = vsub.f32 %v2209, %v2222
        %v2229 = vpack.c.bf16 %v2225, %v2223
        %v2230 = vpack.c.bf16 %v2226, %v2224
        %v2231 = vpack.c.bf16 %v2227, %v2227
        %v2232 = vpack.c.bf16 %v2228, %v2228
        %v2237 = vrot.slane %v2229, 1
        %v2238 = vrot.slane %v2231, 1
        %v2239 = vsel %vm2006, %v2237, %v2238
        %v2240 = vrot.slane %v2230, 1
        %v2241 = vrot.slane %v2232, 1
        %v2242 = vsel %vm2006, %v2240, %v2241
        %2247 = vmatprep.subr.bf16.mxu0 0
        %2248 = vmatpush1.bf16.msra.mxu0 %v522
        %2249 = vmatprep.subr.bf16.mxu0 0
        %2250 = vmatpush1.bf16.msra.mxu0 %v521
        %2251 = vmatprep.subr.bf16.mxu0 0
        %2252 = vmatpush1.bf16.msra.mxu0 %v520
        %2253 = vmatprep.subr.bf16.mxu0 0
        %2254 = vmatpush1.bf16.msra.mxu0 %v519
        %2255 = vmatprep.subr.bf16.mxu0 0
        %2256 = vmatpush1.bf16.msra.mxu0 %v518
        %2257 = vmatprep.subr.bf16.mxu0 0
        %2258 = vmatpush1.bf16.msra.mxu0 %v517
        %2259 = vmatprep.subr.bf16.mxu0 0
        %2260 = vmatpush1.bf16.msra.mxu0 %v516
        %2261 = vmatprep.subr.bf16.mxu0 0
        %2262 = vmatpush1.bf16.msra.mxu0 %v515
        %2263 = vmatprep.subr.bf16.mxu0 0
        %2264 = vmatpush2.bf16.msra.mxu0 %v530
        %2265 = vmatprep.subr.bf16.mxu0 0
        %2266 = vmatpush2.bf16.msra.mxu0 %v529
        %2267 = vmatprep.subr.bf16.mxu0 0
        %2268 = vmatpush2.bf16.msra.mxu0 %v528
        %2269 = vmatprep.subr.bf16.mxu0 0
        %2270 = vmatpush2.bf16.msra.mxu0 %v527
        %2271 = vmatprep.subr.bf16.mxu0 0
        %2272 = vmatpush2.bf16.msra.mxu0 %v526
        %2273 = vmatprep.subr.bf16.mxu0 0
        %2274 = vmatpush2.bf16.msra.mxu0 %v525
        %2275 = vmatprep.subr.bf16.mxu0 0
        %2276 = vmatpush2.bf16.msra.mxu0 %v524
        %2277 = vmatprep.subr.bf16.mxu0 0
        %2278 = vmatpush2.bf16.msra.mxu0 %v523
        %2279 = vmatprep.mubr.bf16.mxu0 %v2242
        %2280 = vmatmul.mubr.bf16.gmra.mxu0 %v2239
        %v2281 = vpop.f32.mrf.mxu0
        %v2282 = vadd.f32 0.0, %v2281
        %v2283 = vpop.f32.mrf.mxu0
        %v2284 = vpop.f32.mrf.mxu0
        %v2285 = vadd.f32 0.0, %v2284
        %v2286 = vpop.f32.mrf.mxu0
        %2287 = vmatprep.mubr.bf16.mxu0 %v2241
        %2288 = vmatmul.mubr.bf16.gmra.mxu0 %v2238
        %v2289 = vpop.f32.mrf.mxu0
        %v2290 = vadd.f32 0.0, %v2289
        %v2291 = vpop.f32.mrf.mxu0
        %v2292 = vpop.f32.mrf.mxu0
        %v2293 = vpop.f32.mrf.mxu0
        %2294 = vdwg.mxu0
        %v2299 = vrot.slane %v2213, 1
        %v2300 = vrot.slane %v2215, 1
        %v2301 = vsel %vm2006, %v2299, %v2300
        %v2302 = vrot.slane %v2214, 1
        %v2303 = vrot.slane %v2216, 1
        %v2304 = vsel %vm2006, %v2302, %v2303
        %2309 = vmatprep.subr.bf16.mxu0 0
        %2310 = vmatpush1.bf16.msra.mxu0 %v522
        %2311 = vmatprep.subr.bf16.mxu0 0
        %2312 = vmatpush1.bf16.msra.mxu0 %v521
        %2313 = vmatprep.subr.bf16.mxu0 0
        %2314 = vmatpush1.bf16.msra.mxu0 %v520
        %2315 = vmatprep.subr.bf16.mxu0 0
        %2316 = vmatpush1.bf16.msra.mxu0 %v519
        %2317 = vmatprep.subr.bf16.mxu0 0
        %2318 = vmatpush1.bf16.msra.mxu0 %v518
        %2319 = vmatprep.subr.bf16.mxu0 0
        %2320 = vmatpush1.bf16.msra.mxu0 %v517
        %2321 = vmatprep.subr.bf16.mxu0 0
        %2322 = vmatpush1.bf16.msra.mxu0 %v516
        %2323 = vmatprep.subr.bf16.mxu0 0
        %2324 = vmatpush1.bf16.msra.mxu0 %v515
        %2325 = vmatprep.subr.bf16.mxu0 0
        %2326 = vmatpush2.bf16.msra.mxu0 %v530
        %2327 = vmatprep.subr.bf16.mxu0 0
        %2328 = vmatpush2.bf16.msra.mxu0 %v529
        %2329 = vmatprep.subr.bf16.mxu0 0
        %2330 = vmatpush2.bf16.msra.mxu0 %v528
        %2331 = vmatprep.subr.bf16.mxu0 0
        %2332 = vmatpush2.bf16.msra.mxu0 %v527
        %2333 = vmatprep.subr.bf16.mxu0 0
        %2334 = vmatpush2.bf16.msra.mxu0 %v526
        %2335 = vmatprep.subr.bf16.mxu0 0
        %2336 = vmatpush2.bf16.msra.mxu0 %v525
        %2337 = vmatprep.subr.bf16.mxu0 0
        %2338 = vmatpush2.bf16.msra.mxu0 %v524
        %2339 = vmatprep.subr.bf16.mxu0 0
        %2340 = vmatpush2.bf16.msra.mxu0 %v523
        %2341 = vmatprep.mubr.bf16.mxu0 %v2304
        %2342 = vmatmul.mubr.bf16.gmra.mxu0 %v2301
        %v2343 = vpop.f32.mrf.mxu0
        %v2344 = vadd.f32 %v2282, %v2343
        %v2345 = vpop.f32.mrf.mxu0
        %v2346 = vpop.f32.mrf.mxu0
        %v2347 = vadd.f32 %v2285, %v2346
        %v2348 = vpop.f32.mrf.mxu0
        %2349 = vmatprep.mubr.bf16.mxu0 %v2303
        %2350 = vmatmul.mubr.bf16.gmra.mxu0 %v2300
        %v2351 = vpop.f32.mrf.mxu0
        %v2352 = vadd.f32 %v2290, %v2351
        %v2353 = vpop.f32.mrf.mxu0
        %v2354 = vpop.f32.mrf.mxu0
        %v2355 = vpop.f32.mrf.mxu0
        %2356 = vdwg.mxu0
        %v2360 = vrot.slane %v2344, 1
        %v2361 = vrot.slane %v2347, 1
        %v2362 = vsel %vm646, %v2360, %v2361
        %v2363 = vrot.slane %v2352, 1
        %v2364 = vsel %vm646, %v2361, %v2363
        %v2367 = vadd.f32 %v2344, %v2362
        %v2368 = vadd.f32 %v2347, %v2364
        %v2369 = vrot.slane %v2344, 2
        %v2370 = vrot.slane %v2347, 2
        %v2371 = vsel %vm656, %v2369, %v2370
        %v2372 = vrot.slane %v2352, 2
        %v2373 = vsel %vm656, %v2370, %v2372
        %v2376 = vadd.f32 %v2367, %v2371
        %v2377 = vadd.f32 %v2368, %v2373
        %v2378 = vmul.f32 %v2376, 2.0
        %v2379 = vmul.f32 %v2377, 2.0
        %v2382 = vrot.slane %v2378, 6
        %v2383 = vrot.slane %v2379, 6
        %v2384 = vsel %vm1866, %v2382, %v2383
        %v2388 = vsub.f32 %v2210, %v2382
        %v2389 = vsub.f32 %v2211, %v2384
        %v2390 = vsub.f32 %v2212, %v2383
        %v2391 = vmax.f32 %v2388, 0.0
        %v2392 = vmax.f32 %v2389, 0.0
        %v2393 = vmax.f32 %v2390, 0.0
        %s2394 = scalar_lea.vmem %s192, 160 [#allocation2]
        %2395 = vst [vmem:[%s2394 - $0x2] sm:$0xfc] %v2391
        %2396 = vst [vmem:[%s2394 + $0x6] sm:$0xff] %v2392
        %2397 = vst [vmem:[%s2394 + $0xe] sm:$0x3] %v2393
        %vm2398 = vcmask 1042432
        %v2399 = vrot.slane %v238, 5
        %v2400 = vrot.slane %v239, 5
        %v2401 = vrot.slane %v240, 5
        %v2402 = vsel %vm2398, %v2399, %v2401
        %v2403 = vrot.slane %v241, 5
        %v2404 = vsel %vm2398, %v2400, %v2403
        %v2405 = vrot.slane %v242, 5
        %v2406 = vsel %vm2398, %v2401, %v2405
        %v2407 = vrot.slane %v243, 5
        %v2408 = vsel %vm2398, %v2403, %v2407
        %v2415 = vmul.f32 %v270, %v2399
        %v2416 = vmul.f32 %v271, %v2400
        %v2417 = vmul.f32 %v272, %v2402
        %v2418 = vmul.f32 %v273, %v2404
        %v2419 = vmul.f32 %v274, %v2406
        %v2420 = vmul.f32 %v275, %v2408
        %v2421 = vrot.slane %v245, 5
        %v2422 = vrot.slane %v246, 5
        %v2423 = vrot.slane %v247, 5
        %v2424 = vsel %vm2398, %v2421, %v2423
        %v2425 = vrot.slane %v248, 5
        %v2426 = vsel %vm2398, %v2422, %v2425
        %v2427 = vrot.slane %v249, 5
        %v2428 = vsel %vm2398, %v2423, %v2427
        %v2429 = vrot.slane %v250, 5
        %v2430 = vsel %vm2398, %v2425, %v2429
        %v2437 = vmul.f32 %v283, %v2421
        %v2438 = vmul.f32 %v284, %v2422
        %v2439 = vmul.f32 %v285, %v2424
        %v2440 = vmul.f32 %v286, %v2426
        %v2441 = vmul.f32 %v287, %v2428
        %v2442 = vmul.f32 %v288, %v2430
        %v2443 = vadd.f32 %v2415, %v2437
        %v2444 = vadd.f32 %v2416, %v2438
        %v2445 = vadd.f32 %v2417, %v2439
        %v2446 = vadd.f32 %v2418, %v2440
        %v2447 = vadd.f32 %v2419, %v2441
        %v2448 = vadd.f32 %v2420, %v2442
        %v2449 = vrot.slane %v252, 5
        %v2450 = vrot.slane %v253, 5
        %v2451 = vrot.slane %v254, 5
        %v2452 = vsel %vm2398, %v2449, %v2451
        %v2453 = vrot.slane %v255, 5
        %v2454 = vsel %vm2398, %v2450, %v2453
        %v2455 = vrot.slane %v256, 5
        %v2456 = vsel %vm2398, %v2451, %v2455
        %v2457 = vrot.slane %v257, 5
        %v2458 = vsel %vm2398, %v2453, %v2457
        %v2465 = vmul.f32 %v296, %v2449
        %v2466 = vmul.f32 %v297, %v2450
        %v2467 = vmul.f32 %v298, %v2452
        %v2468 = vmul.f32 %v299, %v2454
        %v2469 = vmul.f32 %v300, %v2456
        %v2470 = vmul.f32 %v301, %v2458
        %v2471 = vadd.f32 %v2443, %v2465
        %v2472 = vadd.f32 %v2444, %v2466
        %v2473 = vadd.f32 %v2445, %v2467
        %v2474 = vadd.f32 %v2446, %v2468
        %v2475 = vadd.f32 %v2447, %v2469
        %v2476 = vadd.f32 %v2448, %v2470
        %v2477 = vrot.slane %v259, 5
        %v2478 = vrot.slane %v260, 5
        %v2479 = vrot.slane %v261, 5
        %v2480 = vsel %vm2398, %v2477, %v2479
        %v2481 = vrot.slane %v262, 5
        %v2482 = vsel %vm2398, %v2478, %v2481
        %v2483 = vrot.slane %v263, 5
        %v2484 = vsel %vm2398, %v2479, %v2483
        %v2485 = vrot.slane %v264, 5
        %v2486 = vsel %vm2398, %v2481, %v2485
        %v2493 = vmul.f32 %v309, %v2477
        %v2494 = vmul.f32 %v310, %v2478
        %v2495 = vmul.f32 %v311, %v2480
        %v2496 = vmul.f32 %v312, %v2482
        %v2497 = vmul.f32 %v313, %v2484
        %v2498 = vmul.f32 %v314, %v2486
        %v2499 = vadd.f32 %v2471, %v2493
        %v2500 = vadd.f32 %v2472, %v2494
        %v2501 = vadd.f32 %v2473, %v2495
        %v2502 = vadd.f32 %v2474, %v2496
        %v2503 = vadd.f32 %v2475, %v2497
        %v2504 = vadd.f32 %v2476, %v2498
        %v2505 = vrot.slane %v664, 5
        %v2506 = vrot.slane %v665, 5
        %v2507 = vsel %vm2398, %v2505, %v2506
        %v2511 = vadd.f32 %v845, %v2505
        %v2512 = vadd.f32 %v846, %v2507
        %v2513 = vadd.f32 %v847, %v2506
        %v2514 = vpack.c.bf16 %v2501, %v2499
        %v2515 = vpack.c.bf16 %v2502, %v2500
        %v2516 = vpack.c.bf16 %v2503, %v2503
        %v2517 = vpack.c.bf16 %v2504, %v2504
        %v2518 = vunpack.c.l.bf16 %v2514
        %v2519 = vunpack.c.l.bf16 %v2515
        %v2520 = vunpack.c.h.bf16 %v2514
        %v2521 = vunpack.c.h.bf16 %v2515
        %v2522 = vunpack.c.l.bf16 %v2516
        %v2523 = vunpack.c.l.bf16 %v2517
        %v2524 = vsub.f32 %v2499, %v2518
        %v2525 = vsub.f32 %v2500, %v2519
        %v2526 = vsub.f32 %v2501, %v2520
        %v2527 = vsub.f32 %v2502, %v2521
        %v2528 = vsub.f32 %v2503, %v2522
        %v2529 = vsub.f32 %v2504, %v2523
        %v2530 = vpack.c.bf16 %v2526, %v2524
        %v2531 = vpack.c.bf16 %v2527, %v2525
        %v2532 = vpack.c.bf16 %v2528, %v2528
        %v2533 = vpack.c.bf16 %v2529, %v2529
        %vm2534 = vsmask.f32 6400
        %v2536 = vshrl.u32 %v2530, 16
        %v2538 = vrot.slane %v2536, 1
        %v2539 = vshll.u32 %v2530, 16
        %v2541 = vrot.slane %v2539, 2
        %v2542 = vor.u32 %v2538, %v2541
        %v2544 = vshrl.u32 %v2532, 16
        %v2546 = vrot.slane %v2544, 1
        %v2547 = vshll.u32 %v2532, 16
        %v2549 = vrot.slane %v2547, 2
        %v2550 = vor.u32 %v2546, %v2549
        %v2551 = vsel %vm2534, %v2542, %v2550
        %v2553 = vshrl.u32 %v2531, 16
        %v2555 = vrot.slane %v2553, 1
        %v2556 = vshll.u32 %v2531, 16
        %v2558 = vrot.slane %v2556, 2
        %v2559 = vor.u32 %v2555, %v2558
        %v2561 = vshrl.u32 %v2533, 16
        %v2563 = vrot.slane %v2561, 1
        %v2564 = vshll.u32 %v2533, 16
        %v2566 = vrot.slane %v2564, 2
        %v2567 = vor.u32 %v2563, %v2566
        %v2568 = vsel %vm2534, %v2559, %v2567
        %2573 = vmatprep.subr.bf16.mxu0 0
        %2574 = vmatpush1.bf16.msra.mxu0 %v522
        %2575 = vmatprep.subr.bf16.mxu0 0
        %2576 = vmatpush1.bf16.msra.mxu0 %v521
        %2577 = vmatprep.subr.bf16.mxu0 0
        %2578 = vmatpush1.bf16.msra.mxu0 %v520
        %2579 = vmatprep.subr.bf16.mxu0 0
        %2580 = vmatpush1.bf16.msra.mxu0 %v519
        %2581 = vmatprep.subr.bf16.mxu0 0
        %2582 = vmatpush1.bf16.msra.mxu0 %v518
        %2583 = vmatprep.subr.bf16.mxu0 0
        %2584 = vmatpush1.bf16.msra.mxu0 %v517
        %2585 = vmatprep.subr.bf16.mxu0 0
        %2586 = vmatpush1.bf16.msra.mxu0 %v516
        %2587 = vmatprep.subr.bf16.mxu0 0
        %2588 = vmatpush1.bf16.msra.mxu0 %v515
        %2589 = vmatprep.subr.bf16.mxu0 0
        %2590 = vmatpush2.bf16.msra.mxu0 %v530
        %2591 = vmatprep.subr.bf16.mxu0 0
        %2592 = vmatpush2.bf16.msra.mxu0 %v529
        %2593 = vmatprep.subr.bf16.mxu0 0
        %2594 = vmatpush2.bf16.msra.mxu0 %v528
        %2595 = vmatprep.subr.bf16.mxu0 0
        %2596 = vmatpush2.bf16.msra.mxu0 %v527
        %2597 = vmatprep.subr.bf16.mxu0 0
        %2598 = vmatpush2.bf16.msra.mxu0 %v526
        %2599 = vmatprep.subr.bf16.mxu0 0
        %2600 = vmatpush2.bf16.msra.mxu0 %v525
        %2601 = vmatprep.subr.bf16.mxu0 0
        %2602 = vmatpush2.bf16.msra.mxu0 %v524
        %2603 = vmatprep.subr.bf16.mxu0 0
        %2604 = vmatpush2.bf16.msra.mxu0 %v523
        %2605 = vmatprep.mubr.bf16.mxu0 %v2568
        %2606 = vmatmul.mubr.bf16.gmra.mxu0 %v2551
        %v2607 = vpop.f32.mrf.mxu0
        %v2608 = vadd.f32 0.0, %v2607
        %v2609 = vpop.f32.mrf.mxu0
        %v2610 = vpop.f32.mrf.mxu0
        %v2611 = vadd.f32 0.0, %v2610
        %v2612 = vpop.f32.mrf.mxu0
        %2613 = vmatprep.mubr.bf16.mxu0 %v2567
        %2614 = vmatmul.mubr.bf16.gmra.mxu0 %v2550
        %v2615 = vpop.f32.mrf.mxu0
        %v2616 = vadd.f32 0.0, %v2615
        %v2617 = vpop.f32.mrf.mxu0
        %v2618 = vpop.f32.mrf.mxu0
        %v2619 = vpop.f32.mrf.mxu0
        %2620 = vdwg.mxu0
        %v2622 = vshrl.u32 %v2514, 16
        %v2624 = vrot.slane %v2622, 1
        %v2625 = vshll.u32 %v2514, 16
        %v2627 = vrot.slane %v2625, 2
        %v2628 = vor.u32 %v2624, %v2627
        %v2630 = vshrl.u32 %v2516, 16
        %v2632 = vrot.slane %v2630, 1
        %v2633 = vshll.u32 %v2516, 16
        %v2635 = vrot.slane %v2633, 2
        %v2636 = vor.u32 %v2632, %v2635
        %v2637 = vsel %vm2534, %v2628, %v2636
        %v2639 = vshrl.u32 %v2515, 16
        %v2641 = vrot.slane %v2639, 1
        %v2642 = vshll.u32 %v2515, 16
        %v2644 = vrot.slane %v2642, 2
        %v2645 = vor.u32 %v2641, %v2644
        %v2647 = vshrl.u32 %v2517, 16
        %v2649 = vrot.slane %v2647, 1
        %v2650 = vshll.u32 %v2517, 16
        %v2652 = vrot.slane %v2650, 2
        %v2653 = vor.u32 %v2649, %v2652
        %v2654 = vsel %vm2534, %v2645, %v2653
        %2659 = vmatprep.subr.bf16.mxu0 0
        %2660 = vmatpush1.bf16.msra.mxu0 %v522
        %2661 = vmatprep.subr.bf16.mxu0 0
        %2662 = vmatpush1.bf16.msra.mxu0 %v521
        %2663 = vmatprep.subr.bf16.mxu0 0
        %2664 = vmatpush1.bf16.msra.mxu0 %v520
        %2665 = vmatprep.subr.bf16.mxu0 0
        %2666 = vmatpush1.bf16.msra.mxu0 %v519
        %2667 = vmatprep.subr.bf16.mxu0 0
        %2668 = vmatpush1.bf16.msra.mxu0 %v518
        %2669 = vmatprep.subr.bf16.mxu0 0
        %2670 = vmatpush1.bf16.msra.mxu0 %v517
        %2671 = vmatprep.subr.bf16.mxu0 0
        %2672 = vmatpush1.bf16.msra.mxu0 %v516
        %2673 = vmatprep.subr.bf16.mxu0 0
        %2674 = vmatpush1.bf16.msra.mxu0 %v515
        %2675 = vmatprep.subr.bf16.mxu0 0
        %2676 = vmatpush2.bf16.msra.mxu0 %v530
        %2677 = vmatprep.subr.bf16.mxu0 0
        %2678 = vmatpush2.bf16.msra.mxu0 %v529
        %2679 = vmatprep.subr.bf16.mxu0 0
        %2680 = vmatpush2.bf16.msra.mxu0 %v528
        %2681 = vmatprep.subr.bf16.mxu0 0
        %2682 = vmatpush2.bf16.msra.mxu0 %v527
        %2683 = vmatprep.subr.bf16.mxu0 0
        %2684 = vmatpush2.bf16.msra.mxu0 %v526
        %2685 = vmatprep.subr.bf16.mxu0 0
        %2686 = vmatpush2.bf16.msra.mxu0 %v525
        %2687 = vmatprep.subr.bf16.mxu0 0
        %2688 = vmatpush2.bf16.msra.mxu0 %v524
        %2689 = vmatprep.subr.bf16.mxu0 0
        %2690 = vmatpush2.bf16.msra.mxu0 %v523
        %2691 = vmatprep.mubr.bf16.mxu0 %v2654
        %2692 = vmatmul.mubr.bf16.gmra.mxu0 %v2637
        %v2693 = vpop.f32.mrf.mxu0
        %v2694 = vadd.f32 %v2608, %v2693
        %v2695 = vpop.f32.mrf.mxu0
        %v2696 = vpop.f32.mrf.mxu0
        %v2697 = vadd.f32 %v2611, %v2696
        %v2698 = vpop.f32.mrf.mxu0
        %2699 = vmatprep.mubr.bf16.mxu0 %v2653
        %2700 = vmatmul.mubr.bf16.gmra.mxu0 %v2636
        %v2701 = vpop.f32.mrf.mxu0
        %v2702 = vadd.f32 %v2616, %v2701
        %v2703 = vpop.f32.mrf.mxu0
        %v2704 = vpop.f32.mrf.mxu0
        %v2705 = vpop.f32.mrf.mxu0
        %2706 = vdwg.mxu0
        %v2710 = vrot.slane %v2694, 1
        %v2711 = vrot.slane %v2697, 1
        %v2712 = vsel %vm646, %v2710, %v2711
        %v2713 = vrot.slane %v2702, 1
        %v2714 = vsel %vm646, %v2711, %v2713
        %v2717 = vadd.f32 %v2694, %v2712
        %v2718 = vadd.f32 %v2697, %v2714
        %v2719 = vrot.slane %v2694, 2
        %v2720 = vrot.slane %v2697, 2
        %v2721 = vsel %vm656, %v2719, %v2720
        %v2722 = vrot.slane %v2702, 2
        %v2723 = vsel %vm656, %v2720, %v2722
        %v2726 = vadd.f32 %v2717, %v2721
        %v2727 = vadd.f32 %v2718, %v2723
        %v2728 = vmul.f32 %v2726, 2.0
        %v2729 = vmul.f32 %v2727, 2.0
        %v2732 = vrot.slane %v2728, 5
        %v2733 = vrot.slane %v2729, 5
        %v2734 = vsel %vm2398, %v2732, %v2733
        %v2738 = vsub.f32 %v2511, %v2732
        %v2739 = vsub.f32 %v2512, %v2734
        %v2740 = vsub.f32 %v2513, %v2733
        %v2741 = vmax.f32 %v2738, 0.0
        %v2742 = vmax.f32 %v2739, 0.0
        %v2743 = vmax.f32 %v2740, 0.0
        %s2744 = scalar_lea.vmem %s192, 48 [#allocation2]
        %2745 = vst [vmem:[%s2744 - $0x3] sm:$0xf8] %v2741
        %2746 = vst [vmem:[%s2744 + $0x5] sm:$0xff] %v2742
        %2747 = vst [vmem:[%s2744 + $0xd] sm:$0x7] %v2743
        %v2748 = vmul.f32 %v272, %v2399
        %v2749 = vmul.f32 %v273, %v2400
        %v2750 = vmul.f32 %v274, %v2402
        %v2751 = vmul.f32 %v275, %v2404
        %v2752 = vmul.f32 %v276, %v2406
        %v2753 = vmul.f32 %v277, %v2408
        %v2754 = vmul.f32 %v285, %v2421
        %v2755 = vmul.f32 %v286, %v2422
        %v2756 = vmul.f32 %v287, %v2424
        %v2757 = vmul.f32 %v288, %v2426
        %v2758 = vmul.f32 %v289, %v2428
        %v2759 = vmul.f32 %v290, %v2430
        %v2760 = vadd.f32 %v2748, %v2754
        %v2761 = vadd.f32 %v2749, %v2755
        %v2762 = vadd.f32 %v2750, %v2756
        %v2763 = vadd.f32 %v2751, %v2757
        %v2764 = vadd.f32 %v2752, %v2758
        %v2765 = vadd.f32 %v2753, %v2759
        %v2766 = vmul.f32 %v298, %v2449
        %v2767 = vmul.f32 %v299, %v2450
        %v2768 = vmul.f32 %v300, %v2452
        %v2769 = vmul.f32 %v301, %v2454
        %v2770 = vmul.f32 %v302, %v2456
        %v2771 = vmul.f32 %v303, %v2458
        %v2772 = vadd.f32 %v2760, %v2766
        %v2773 = vadd.f32 %v2761, %v2767
        %v2774 = vadd.f32 %v2762, %v2768
        %v2775 = vadd.f32 %v2763, %v2769
        %v2776 = vadd.f32 %v2764, %v2770
        %v2777 = vadd.f32 %v2765, %v2771
        %v2778 = vmul.f32 %v311, %v2477
        %v2779 = vmul.f32 %v312, %v2478
        %v2780 = vmul.f32 %v313, %v2480
        %v2781 = vmul.f32 %v314, %v2482
        %v2782 = vmul.f32 %v315, %v2484
        %v2783 = vmul.f32 %v316, %v2486
        %v2784 = vadd.f32 %v2772, %v2778
        %v2785 = vadd.f32 %v2773, %v2779
        %v2786 = vadd.f32 %v2774, %v2780
        %v2787 = vadd.f32 %v2775, %v2781
        %v2788 = vadd.f32 %v2776, %v2782
        %v2789 = vadd.f32 %v2777, %v2783
        %v2790 = vadd.f32 %v846, %v2505
        %v2791 = vadd.f32 %v847, %v2507
        %v2792 = vadd.f32 %v848, %v2506
        %v2793 = vpack.c.bf16 %v2786, %v2784
        %v2794 = vpack.c.bf16 %v2787, %v2785
        %v2795 = vpack.c.bf16 %v2788, %v2788
        %v2796 = vpack.c.bf16 %v2789, %v2789
        %v2797 = vunpack.c.l.bf16 %v2793
        %v2798 = vunpack.c.l.bf16 %v2794
        %v2799 = vunpack.c.h.bf16 %v2793
        %v2800 = vunpack.c.h.bf16 %v2794
        %v2801 = vunpack.c.l.bf16 %v2795
        %v2802 = vunpack.c.l.bf16 %v2796
        %v2803 = vsub.f32 %v2784, %v2797
        %v2804 = vsub.f32 %v2785, %v2798
        %v2805 = vsub.f32 %v2786, %v2799
        %v2806 = vsub.f32 %v2787, %v2800
        %v2807 = vsub.f32 %v2788, %v2801
        %v2808 = vsub.f32 %v2789, %v2802
        %v2809 = vpack.c.bf16 %v2805, %v2803
        %v2810 = vpack.c.bf16 %v2806, %v2804
        %v2811 = vpack.c.bf16 %v2807, %v2807
        %v2812 = vpack.c.bf16 %v2808, %v2808
        %v2814 = vshrl.u32 %v2809, 16
        %v2816 = vrot.slane %v2814, 1
        %v2817 = vshll.u32 %v2809, 16
        %v2819 = vrot.slane %v2817, 2
        %v2820 = vor.u32 %v2816, %v2819
        %v2822 = vshrl.u32 %v2811, 16
        %v2824 = vrot.slane %v2822, 1
        %v2825 = vshll.u32 %v2811, 16
        %v2827 = vrot.slane %v2825, 2
        %v2828 = vor.u32 %v2824, %v2827
        %v2829 = vsel %vm2534, %v2820, %v2828
        %v2831 = vshrl.u32 %v2810, 16
        %v2833 = vrot.slane %v2831, 1
        %v2834 = vshll.u32 %v2810, 16
        %v2836 = vrot.slane %v2834, 2
        %v2837 = vor.u32 %v2833, %v2836
        %v2839 = vshrl.u32 %v2812, 16
        %v2841 = vrot.slane %v2839, 1
        %v2842 = vshll.u32 %v2812, 16
        %v2844 = vrot.slane %v2842, 2
        %v2845 = vor.u32 %v2841, %v2844
        %v2846 = vsel %vm2534, %v2837, %v2845
        %2851 = vmatprep.subr.bf16.mxu0 0
        %2852 = vmatpush1.bf16.msra.mxu0 %v522
        %2853 = vmatprep.subr.bf16.mxu0 0
        %2854 = vmatpush1.bf16.msra.mxu0 %v521
        %2855 = vmatprep.subr.bf16.mxu0 0
        %2856 = vmatpush1.bf16.msra.mxu0 %v520
        %2857 = vmatprep.subr.bf16.mxu0 0
        %2858 = vmatpush1.bf16.msra.mxu0 %v519
        %2859 = vmatprep.subr.bf16.mxu0 0
        %2860 = vmatpush1.bf16.msra.mxu0 %v518
        %2861 = vmatprep.subr.bf16.mxu0 0
        %2862 = vmatpush1.bf16.msra.mxu0 %v517
        %2863 = vmatprep.subr.bf16.mxu0 0
        %2864 = vmatpush1.bf16.msra.mxu0 %v516
        %2865 = vmatprep.subr.bf16.mxu0 0
        %2866 = vmatpush1.bf16.msra.mxu0 %v515
        %2867 = vmatprep.subr.bf16.mxu0 0
        %2868 = vmatpush2.bf16.msra.mxu0 %v530
        %2869 = vmatprep.subr.bf16.mxu0 0
        %2870 = vmatpush2.bf16.msra.mxu0 %v529
        %2871 = vmatprep.subr.bf16.mxu0 0
        %2872 = vmatpush2.bf16.msra.mxu0 %v528
        %2873 = vmatprep.subr.bf16.mxu0 0
        %2874 = vmatpush2.bf16.msra.mxu0 %v527
        %2875 = vmatprep.subr.bf16.mxu0 0
        %2876 = vmatpush2.bf16.msra.mxu0 %v526
        %2877 = vmatprep.subr.bf16.mxu0 0
        %2878 = vmatpush2.bf16.msra.mxu0 %v525
        %2879 = vmatprep.subr.bf16.mxu0 0
        %2880 = vmatpush2.bf16.msra.mxu0 %v524
        %2881 = vmatprep.subr.bf16.mxu0 0
        %2882 = vmatpush2.bf16.msra.mxu0 %v523
        %2883 = vmatprep.mubr.bf16.mxu0 %v2846
        %2884 = vmatmul.mubr.bf16.gmra.mxu0 %v2829
        %v2885 = vpop.f32.mrf.mxu0
        %v2886 = vadd.f32 0.0, %v2885
        %v2887 = vpop.f32.mrf.mxu0
        %v2888 = vpop.f32.mrf.mxu0
        %v2889 = vadd.f32 0.0, %v2888
        %v2890 = vpop.f32.mrf.mxu0
        %2891 = vmatprep.mubr.bf16.mxu0 %v2845
        %2892 = vmatmul.mubr.bf16.gmra.mxu0 %v2828
        %v2893 = vpop.f32.mrf.mxu0
        %v2894 = vadd.f32 0.0, %v2893
        %v2895 = vpop.f32.mrf.mxu0
        %v2896 = vpop.f32.mrf.mxu0
        %v2897 = vpop.f32.mrf.mxu0
        %2898 = vdwg.mxu0
        %v2900 = vshrl.u32 %v2793, 16
        %v2902 = vrot.slane %v2900, 1
        %v2903 = vshll.u32 %v2793, 16
        %v2905 = vrot.slane %v2903, 2
        %v2906 = vor.u32 %v2902, %v2905
        %v2908 = vshrl.u32 %v2795, 16
        %v2910 = vrot.slane %v2908, 1
        %v2911 = vshll.u32 %v2795, 16
        %v2913 = vrot.slane %v2911, 2
        %v2914 = vor.u32 %v2910, %v2913
        %v2915 = vsel %vm2534, %v2906, %v2914
        %v2917 = vshrl.u32 %v2794, 16
        %v2919 = vrot.slane %v2917, 1
        %v2920 = vshll.u32 %v2794, 16
        %v2922 = vrot.slane %v2920, 2
        %v2923 = vor.u32 %v2919, %v2922
        %v2925 = vshrl.u32 %v2796, 16
        %v2927 = vrot.slane %v2925, 1
        %v2928 = vshll.u32 %v2796, 16
        %v2930 = vrot.slane %v2928, 2
        %v2931 = vor.u32 %v2927, %v2930
        %v2932 = vsel %vm2534, %v2923, %v2931
        %2937 = vmatprep.subr.bf16.mxu0 0
        %2938 = vmatpush1.bf16.msra.mxu0 %v522
        %2939 = vmatprep.subr.bf16.mxu0 0
        %2940 = vmatpush1.bf16.msra.mxu0 %v521
        %2941 = vmatprep.subr.bf16.mxu0 0
        %2942 = vmatpush1.bf16.msra.mxu0 %v520
        %2943 = vmatprep.subr.bf16.mxu0 0
        %2944 = vmatpush1.bf16.msra.mxu0 %v519
        %2945 = vmatprep.subr.bf16.mxu0 0
        %2946 = vmatpush1.bf16.msra.mxu0 %v518
        %2947 = vmatprep.subr.bf16.mxu0 0
        %2948 = vmatpush1.bf16.msra.mxu0 %v517
        %2949 = vmatprep.subr.bf16.mxu0 0
        %2950 = vmatpush1.bf16.msra.mxu0 %v516
        %2951 = vmatprep.subr.bf16.mxu0 0
        %2952 = vmatpush1.bf16.msra.mxu0 %v515
        %2953 = vmatprep.subr.bf16.mxu0 0
        %2954 = vmatpush2.bf16.msra.mxu0 %v530
        %2955 = vmatprep.subr.bf16.mxu0 0
        %2956 = vmatpush2.bf16.msra.mxu0 %v529
        %2957 = vmatprep.subr.bf16.mxu0 0
        %2958 = vmatpush2.bf16.msra.mxu0 %v528
        %2959 = vmatprep.subr.bf16.mxu0 0
        %2960 = vmatpush2.bf16.msra.mxu0 %v527
        %2961 = vmatprep.subr.bf16.mxu0 0
        %2962 = vmatpush2.bf16.msra.mxu0 %v526
        %2963 = vmatprep.subr.bf16.mxu0 0
        %2964 = vmatpush2.bf16.msra.mxu0 %v525
        %2965 = vmatprep.subr.bf16.mxu0 0
        %2966 = vmatpush2.bf16.msra.mxu0 %v524
        %2967 = vmatprep.subr.bf16.mxu0 0
        %2968 = vmatpush2.bf16.msra.mxu0 %v523
        %2969 = vmatprep.mubr.bf16.mxu0 %v2932
        %2970 = vmatmul.mubr.bf16.gmra.mxu0 %v2915
        %v2971 = vpop.f32.mrf.mxu0
        %v2972 = vadd.f32 %v2886, %v2971
        %v2973 = vpop.f32.mrf.mxu0
        %v2974 = vpop.f32.mrf.mxu0
        %v2975 = vadd.f32 %v2889, %v2974
        %v2976 = vpop.f32.mrf.mxu0
        %2977 = vmatprep.mubr.bf16.mxu0 %v2931
        %2978 = vmatmul.mubr.bf16.gmra.mxu0 %v2914
        %v2979 = vpop.f32.mrf.mxu0
        %v2980 = vadd.f32 %v2894, %v2979
        %v2981 = vpop.f32.mrf.mxu0
        %v2982 = vpop.f32.mrf.mxu0
        %v2983 = vpop.f32.mrf.mxu0
        %2984 = vdwg.mxu0
        %v2988 = vrot.slane %v2972, 1
        %v2989 = vrot.slane %v2975, 1
        %v2990 = vsel %vm646, %v2988, %v2989
        %v2991 = vrot.slane %v2980, 1
        %v2992 = vsel %vm646, %v2989, %v2991
        %v2995 = vadd.f32 %v2972, %v2990
        %v2996 = vadd.f32 %v2975, %v2992
        %v2997 = vrot.slane %v2972, 2
        %v2998 = vrot.slane %v2975, 2
        %v2999 = vsel %vm656, %v2997, %v2998
        %v3000 = vrot.slane %v2980, 2
        %v3001 = vsel %vm656, %v2998, %v3000
        %v3004 = vadd.f32 %v2995, %v2999
        %v3005 = vadd.f32 %v2996, %v3001
        %v3006 = vmul.f32 %v3004, 2.0
        %v3007 = vmul.f32 %v3005, 2.0
        %v3010 = vrot.slane %v3006, 5
        %v3011 = vrot.slane %v3007, 5
        %v3012 = vsel %vm2398, %v3010, %v3011
        %v3016 = vsub.f32 %v2790, %v3010
        %v3017 = vsub.f32 %v2791, %v3012
        %v3018 = vsub.f32 %v2792, %v3011
        %v3019 = vmax.f32 %v3016, 0.0
        %v3020 = vmax.f32 %v3017, 0.0
        %v3021 = vmax.f32 %v3018, 0.0
        %s3022 = scalar_lea.vmem %s192, 176 [#allocation2]
        %3023 = vst [vmem:[%s3022 - $0x3] sm:$0xf8] %v3019
        %3024 = vst [vmem:[%s3022 + $0x5] sm:$0xff] %v3020
        %3025 = vst [vmem:[%s3022 + $0xd] sm:$0x7] %v3021
        %vm3026 = vcmask 1043456
        %v3027 = vrot.slane %v238, 4
        %v3028 = vrot.slane %v239, 4
        %v3029 = vrot.slane %v240, 4
        %v3030 = vsel %vm3026, %v3027, %v3029
        %v3031 = vrot.slane %v241, 4
        %v3032 = vsel %vm3026, %v3028, %v3031
        %v3033 = vrot.slane %v242, 4
        %v3034 = vsel %vm3026, %v3029, %v3033
        %v3035 = vrot.slane %v243, 4
        %v3036 = vsel %vm3026, %v3031, %v3035
        %v3043 = vmul.f32 %v270, %v3027
        %v3044 = vmul.f32 %v271, %v3028
        %v3045 = vmul.f32 %v272, %v3030
        %v3046 = vmul.f32 %v273, %v3032
        %v3047 = vmul.f32 %v274, %v3034
        %v3048 = vmul.f32 %v275, %v3036
        %v3049 = vrot.slane %v245, 4
        %v3050 = vrot.slane %v246, 4
        %v3051 = vrot.slane %v247, 4
        %v3052 = vsel %vm3026, %v3049, %v3051
        %v3053 = vrot.slane %v248, 4
        %v3054 = vsel %vm3026, %v3050, %v3053
        %v3055 = vrot.slane %v249, 4
        %v3056 = vsel %vm3026, %v3051, %v3055
        %v3057 = vrot.slane %v250, 4
        %v3058 = vsel %vm3026, %v3053, %v3057
        %v3065 = vmul.f32 %v283, %v3049
        %v3066 = vmul.f32 %v284, %v3050
        %v3067 = vmul.f32 %v285, %v3052
        %v3068 = vmul.f32 %v286, %v3054
        %v3069 = vmul.f32 %v287, %v3056
        %v3070 = vmul.f32 %v288, %v3058
        %v3071 = vadd.f32 %v3043, %v3065
        %v3072 = vadd.f32 %v3044, %v3066
        %v3073 = vadd.f32 %v3045, %v3067
        %v3074 = vadd.f32 %v3046, %v3068
        %v3075 = vadd.f32 %v3047, %v3069
        %v3076 = vadd.f32 %v3048, %v3070
        %v3077 = vrot.slane %v252, 4
        %v3078 = vrot.slane %v253, 4
        %v3079 = vrot.slane %v254, 4
        %v3080 = vsel %vm3026, %v3077, %v3079
        %v3081 = vrot.slane %v255, 4
        %v3082 = vsel %vm3026, %v3078, %v3081
        %v3083 = vrot.slane %v256, 4
        %v3084 = vsel %vm3026, %v3079, %v3083
        %v3085 = vrot.slane %v257, 4
        %v3086 = vsel %vm3026, %v3081, %v3085
        %v3093 = vmul.f32 %v296, %v3077
        %v3094 = vmul.f32 %v297, %v3078
        %v3095 = vmul.f32 %v298, %v3080
        %v3096 = vmul.f32 %v299, %v3082
        %v3097 = vmul.f32 %v300, %v3084
        %v3098 = vmul.f32 %v301, %v3086
        %v3099 = vadd.f32 %v3071, %v3093
        %v3100 = vadd.f32 %v3072, %v3094
        %v3101 = vadd.f32 %v3073, %v3095
        %v3102 = vadd.f32 %v3074, %v3096
        %v3103 = vadd.f32 %v3075, %v3097
        %v3104 = vadd.f32 %v3076, %v3098
        %v3105 = vrot.slane %v259, 4
        %v3106 = vrot.slane %v260, 4
        %v3107 = vrot.slane %v261, 4
        %v3108 = vsel %vm3026, %v3105, %v3107
        %v3109 = vrot.slane %v262, 4
        %v3110 = vsel %vm3026, %v3106, %v3109
        %v3111 = vrot.slane %v263, 4
        %v3112 = vsel %vm3026, %v3107, %v3111
        %v3113 = vrot.slane %v264, 4
        %v3114 = vsel %vm3026, %v3109, %v3113
        %v3121 = vmul.f32 %v309, %v3105
        %v3122 = vmul.f32 %v310, %v3106
        %v3123 = vmul.f32 %v311, %v3108
        %v3124 = vmul.f32 %v312, %v3110
        %v3125 = vmul.f32 %v313, %v3112
        %v3126 = vmul.f32 %v314, %v3114
        %v3127 = vadd.f32 %v3099, %v3121
        %v3128 = vadd.f32 %v3100, %v3122
        %v3129 = vadd.f32 %v3101, %v3123
        %v3130 = vadd.f32 %v3102, %v3124
        %v3131 = vadd.f32 %v3103, %v3125
        %v3132 = vadd.f32 %v3104, %v3126
        %v3133 = vrot.slane %v664, 4
        %v3134 = vrot.slane %v665, 4
        %v3135 = vsel %vm3026, %v3133, %v3134
        %v3139 = vadd.f32 %v845, %v3133
        %v3140 = vadd.f32 %v846, %v3135
        %v3141 = vadd.f32 %v847, %v3134
        %v3142 = vpack.c.bf16 %v3129, %v3127
        %v3143 = vpack.c.bf16 %v3130, %v3128
        %v3144 = vpack.c.bf16 %v3131, %v3131
        %v3145 = vpack.c.bf16 %v3132, %v3132
        %v3146 = vunpack.c.l.bf16 %v3142
        %v3147 = vunpack.c.l.bf16 %v3143
        %v3148 = vunpack.c.h.bf16 %v3142
        %v3149 = vunpack.c.h.bf16 %v3143
        %v3150 = vunpack.c.l.bf16 %v3144
        %v3151 = vunpack.c.l.bf16 %v3145
        %v3152 = vsub.f32 %v3127, %v3146
        %v3153 = vsub.f32 %v3128, %v3147
        %v3154 = vsub.f32 %v3129, %v3148
        %v3155 = vsub.f32 %v3130, %v3149
        %v3156 = vsub.f32 %v3131, %v3150
        %v3157 = vsub.f32 %v3132, %v3151
        %v3158 = vpack.c.bf16 %v3154, %v3152
        %v3159 = vpack.c.bf16 %v3155, %v3153
        %v3160 = vpack.c.bf16 %v3156, %v3156
        %v3161 = vpack.c.bf16 %v3157, %v3157
        %vm3166 = vcmask 1045504
        %v3167 = vrot.slane %v3158, 2
        %v3168 = vrot.slane %v3160, 2
        %v3169 = vsel %vm3166, %v3167, %v3168
        %v3170 = vrot.slane %v3159, 2
        %v3171 = vrot.slane %v3161, 2
        %v3172 = vsel %vm3166, %v3170, %v3171
        %3177 = vmatprep.subr.bf16.mxu0 0
        %3178 = vmatpush1.bf16.msra.mxu0 %v522
        %3179 = vmatprep.subr.bf16.mxu0 0
        %3180 = vmatpush1.bf16.msra.mxu0 %v521
        %3181 = vmatprep.subr.bf16.mxu0 0
        %3182 = vmatpush1.bf16.msra.mxu0 %v520
        %3183 = vmatprep.subr.bf16.mxu0 0
        %3184 = vmatpush1.bf16.msra.mxu0 %v519
        %3185 = vmatprep.subr.bf16.mxu0 0
        %3186 = vmatpush1.bf16.msra.mxu0 %v518
        %3187 = vmatprep.subr.bf16.mxu0 0
        %3188 = vmatpush1.bf16.msra.mxu0 %v517
        %3189 = vmatprep.subr.bf16.mxu0 0
        %3190 = vmatpush1.bf16.msra.mxu0 %v516
        %3191 = vmatprep.subr.bf16.mxu0 0
        %3192 = vmatpush1.bf16.msra.mxu0 %v515
        %3193 = vmatprep.subr.bf16.mxu0 0
        %3194 = vmatpush2.bf16.msra.mxu0 %v530
        %3195 = vmatprep.subr.bf16.mxu0 0
        %3196 = vmatpush2.bf16.msra.mxu0 %v529
        %3197 = vmatprep.subr.bf16.mxu0 0
        %3198 = vmatpush2.bf16.msra.mxu0 %v528
        %3199 = vmatprep.subr.bf16.mxu0 0
        %3200 = vmatpush2.bf16.msra.mxu0 %v527
        %3201 = vmatprep.subr.bf16.mxu0 0
        %3202 = vmatpush2.bf16.msra.mxu0 %v526
        %3203 = vmatprep.subr.bf16.mxu0 0
        %3204 = vmatpush2.bf16.msra.mxu0 %v525
        %3205 = vmatprep.subr.bf16.mxu0 0
        %3206 = vmatpush2.bf16.msra.mxu0 %v524
        %3207 = vmatprep.subr.bf16.mxu0 0
        %3208 = vmatpush2.bf16.msra.mxu0 %v523
        %3209 = vmatprep.mubr.bf16.mxu0 %v3172
        %3210 = vmatmul.mubr.bf16.gmra.mxu0 %v3169
        %v3211 = vpop.f32.mrf.mxu0
        %v3212 = vadd.f32 0.0, %v3211
        %v3213 = vpop.f32.mrf.mxu0
        %v3214 = vpop.f32.mrf.mxu0
        %v3215 = vadd.f32 0.0, %v3214
        %v3216 = vpop.f32.mrf.mxu0
        %3217 = vmatprep.mubr.bf16.mxu0 %v3171
        %3218 = vmatmul.mubr.bf16.gmra.mxu0 %v3168
        %v3219 = vpop.f32.mrf.mxu0
        %v3220 = vadd.f32 0.0, %v3219
        %v3221 = vpop.f32.mrf.mxu0
        %v3222 = vpop.f32.mrf.mxu0
        %v3223 = vpop.f32.mrf.mxu0
        %3224 = vdwg.mxu0
        %v3229 = vrot.slane %v3142, 2
        %v3230 = vrot.slane %v3144, 2
        %v3231 = vsel %vm3166, %v3229, %v3230
        %v3232 = vrot.slane %v3143, 2
        %v3233 = vrot.slane %v3145, 2
        %v3234 = vsel %vm3166, %v3232, %v3233
        %3239 = vmatprep.subr.bf16.mxu0 0
        %3240 = vmatpush1.bf16.msra.mxu0 %v522
        %3241 = vmatprep.subr.bf16.mxu0 0
        %3242 = vmatpush1.bf16.msra.mxu0 %v521
        %3243 = vmatprep.subr.bf16.mxu0 0
        %3244 = vmatpush1.bf16.msra.mxu0 %v520
        %3245 = vmatprep.subr.bf16.mxu0 0
        %3246 = vmatpush1.bf16.msra.mxu0 %v519
        %3247 = vmatprep.subr.bf16.mxu0 0
        %3248 = vmatpush1.bf16.msra.mxu0 %v518
        %3249 = vmatprep.subr.bf16.mxu0 0
        %3250 = vmatpush1.bf16.msra.mxu0 %v517
        %3251 = vmatprep.subr.bf16.mxu0 0
        %3252 = vmatpush1.bf16.msra.mxu0 %v516
        %3253 = vmatprep.subr.bf16.mxu0 0
        %3254 = vmatpush1.bf16.msra.mxu0 %v515
        %3255 = vmatprep.subr.bf16.mxu0 0
        %3256 = vmatpush2.bf16.msra.mxu0 %v530
        %3257 = vmatprep.subr.bf16.mxu0 0
        %3258 = vmatpush2.bf16.msra.mxu0 %v529
        %3259 = vmatprep.subr.bf16.mxu0 0
        %3260 = vmatpush2.bf16.msra.mxu0 %v528
        %3261 = vmatprep.subr.bf16.mxu0 0
        %3262 = vmatpush2.bf16.msra.mxu0 %v527
        %3263 = vmatprep.subr.bf16.mxu0 0
        %3264 = vmatpush2.bf16.msra.mxu0 %v526
        %3265 = vmatprep.subr.bf16.mxu0 0
        %3266 = vmatpush2.bf16.msra.mxu0 %v525
        %3267 = vmatprep.subr.bf16.mxu0 0
        %3268 = vmatpush2.bf16.msra.mxu0 %v524
        %3269 = vmatprep.subr.bf16.mxu0 0
        %3270 = vmatpush2.bf16.msra.mxu0 %v523
        %3271 = vmatprep.mubr.bf16.mxu0 %v3234
        %3272 = vmatmul.mubr.bf16.gmra.mxu0 %v3231
        %v3273 = vpop.f32.mrf.mxu0
        %v3274 = vadd.f32 %v3212, %v3273
        %v3275 = vpop.f32.mrf.mxu0
        %v3276 = vpop.f32.mrf.mxu0
        %v3277 = vadd.f32 %v3215, %v3276
        %v3278 = vpop.f32.mrf.mxu0
        %3279 = vmatprep.mubr.bf16.mxu0 %v3233
        %3280 = vmatmul.mubr.bf16.gmra.mxu0 %v3230
        %v3281 = vpop.f32.mrf.mxu0
        %v3282 = vadd.f32 %v3220, %v3281
        %v3283 = vpop.f32.mrf.mxu0
        %v3284 = vpop.f32.mrf.mxu0
        %v3285 = vpop.f32.mrf.mxu0
        %3286 = vdwg.mxu0
        %v3290 = vrot.slane %v3274, 1
        %v3291 = vrot.slane %v3277, 1
        %v3292 = vsel %vm646, %v3290, %v3291
        %v3293 = vrot.slane %v3282, 1
        %v3294 = vsel %vm646, %v3291, %v3293
        %v3297 = vadd.f32 %v3274, %v3292
        %v3298 = vadd.f32 %v3277, %v3294
        %v3299 = vrot.slane %v3274, 2
        %v3300 = vrot.slane %v3277, 2
        %v3301 = vsel %vm656, %v3299, %v3300
        %v3302 = vrot.slane %v3282, 2
        %v3303 = vsel %vm656, %v3300, %v3302
        %v3306 = vadd.f32 %v3297, %v3301
        %v3307 = vadd.f32 %v3298, %v3303
        %v3308 = vmul.f32 %v3306, 2.0
        %v3309 = vmul.f32 %v3307, 2.0
        %v3312 = vrot.slane %v3308, 4
        %v3313 = vrot.slane %v3309, 4
        %v3314 = vsel %vm3026, %v3312, %v3313
        %v3318 = vsub.f32 %v3139, %v3312
        %v3319 = vsub.f32 %v3140, %v3314
        %v3320 = vsub.f32 %v3141, %v3313
        %v3321 = vmax.f32 %v3318, 0.0
        %v3322 = vmax.f32 %v3319, 0.0
        %v3323 = vmax.f32 %v3320, 0.0
        %s3324 = scalar_lea.vmem %s192, 64 [#allocation2]
        %3325 = vst [vmem:[%s3324 - $0x4] sm:$0xf0] %v3321
        %3326 = vst [vmem:[%s3324 + $0x4] sm:$0xff] %v3322
        %3327 = vst [vmem:[%s3324 + $0xc] sm:$0xf] %v3323
        %v3328 = vmul.f32 %v272, %v3027
        %v3329 = vmul.f32 %v273, %v3028
        %v3330 = vmul.f32 %v274, %v3030
        %v3331 = vmul.f32 %v275, %v3032
        %v3332 = vmul.f32 %v276, %v3034
        %v3333 = vmul.f32 %v277, %v3036
        %v3334 = vmul.f32 %v285, %v3049
        %v3335 = vmul.f32 %v286, %v3050
        %v3336 = vmul.f32 %v287, %v3052
        %v3337 = vmul.f32 %v288, %v3054
        %v3338 = vmul.f32 %v289, %v3056
        %v3339 = vmul.f32 %v290, %v3058
        %v3340 = vadd.f32 %v3328, %v3334
        %v3341 = vadd.f32 %v3329, %v3335
        %v3342 = vadd.f32 %v3330, %v3336
        %v3343 = vadd.f32 %v3331, %v3337
        %v3344 = vadd.f32 %v3332, %v3338
        %v3345 = vadd.f32 %v3333, %v3339
        %v3346 = vmul.f32 %v298, %v3077
        %v3347 = vmul.f32 %v299, %v3078
        %v3348 = vmul.f32 %v300, %v3080
        %v3349 = vmul.f32 %v301, %v3082
        %v3350 = vmul.f32 %v302, %v3084
        %v3351 = vmul.f32 %v303, %v3086
        %v3352 = vadd.f32 %v3340, %v3346
        %v3353 = vadd.f32 %v3341, %v3347
        %v3354 = vadd.f32 %v3342, %v3348
        %v3355 = vadd.f32 %v3343, %v3349
        %v3356 = vadd.f32 %v3344, %v3350
        %v3357 = vadd.f32 %v3345, %v3351
        %v3358 = vmul.f32 %v311, %v3105
        %v3359 = vmul.f32 %v312, %v3106
        %v3360 = vmul.f32 %v313, %v3108
        %v3361 = vmul.f32 %v314, %v3110
        %v3362 = vmul.f32 %v315, %v3112
        %v3363 = vmul.f32 %v316, %v3114
        %v3364 = vadd.f32 %v3352, %v3358
        %v3365 = vadd.f32 %v3353, %v3359
        %v3366 = vadd.f32 %v3354, %v3360
        %v3367 = vadd.f32 %v3355, %v3361
        %v3368 = vadd.f32 %v3356, %v3362
        %v3369 = vadd.f32 %v3357, %v3363
        %v3370 = vadd.f32 %v846, %v3133
        %v3371 = vadd.f32 %v847, %v3135
        %v3372 = vadd.f32 %v848, %v3134
        %v3373 = vpack.c.bf16 %v3366, %v3364
        %v3374 = vpack.c.bf16 %v3367, %v3365
        %v3375 = vpack.c.bf16 %v3368, %v3368
        %v3376 = vpack.c.bf16 %v3369, %v3369
        %v3377 = vunpack.c.l.bf16 %v3373
        %v3378 = vunpack.c.l.bf16 %v3374
        %v3379 = vunpack.c.h.bf16 %v3373
        %v3380 = vunpack.c.h.bf16 %v3374
        %v3381 = vunpack.c.l.bf16 %v3375
        %v3382 = vunpack.c.l.bf16 %v3376
        %v3383 = vsub.f32 %v3364, %v3377
        %v3384 = vsub.f32 %v3365, %v3378
        %v3385 = vsub.f32 %v3366, %v3379
        %v3386 = vsub.f32 %v3367, %v3380
        %v3387 = vsub.f32 %v3368, %v3381
        %v3388 = vsub.f32 %v3369, %v3382
        %v3389 = vpack.c.bf16 %v3385, %v3383
        %v3390 = vpack.c.bf16 %v3386, %v3384
        %v3391 = vpack.c.bf16 %v3387, %v3387
        %v3392 = vpack.c.bf16 %v3388, %v3388
        %v3397 = vrot.slane %v3389, 2
        %v3398 = vrot.slane %v3391, 2
        %v3399 = vsel %vm3166, %v3397, %v3398
        %v3400 = vrot.slane %v3390, 2
        %v3401 = vrot.slane %v3392, 2
        %v3402 = vsel %vm3166, %v3400, %v3401
        %3407 = vmatprep.subr.bf16.mxu0 0
        %3408 = vmatpush1.bf16.msra.mxu0 %v522
        %3409 = vmatprep.subr.bf16.mxu0 0
        %3410 = vmatpush1.bf16.msra.mxu0 %v521
        %3411 = vmatprep.subr.bf16.mxu0 0
        %3412 = vmatpush1.bf16.msra.mxu0 %v520
        %3413 = vmatprep.subr.bf16.mxu0 0
        %3414 = vmatpush1.bf16.msra.mxu0 %v519
        %3415 = vmatprep.subr.bf16.mxu0 0
        %3416 = vmatpush1.bf16.msra.mxu0 %v518
        %3417 = vmatprep.subr.bf16.mxu0 0
        %3418 = vmatpush1.bf16.msra.mxu0 %v517
        %3419 = vmatprep.subr.bf16.mxu0 0
        %3420 = vmatpush1.bf16.msra.mxu0 %v516
        %3421 = vmatprep.subr.bf16.mxu0 0
        %3422 = vmatpush1.bf16.msra.mxu0 %v515
        %3423 = vmatprep.subr.bf16.mxu0 0
        %3424 = vmatpush2.bf16.msra.mxu0 %v530
        %3425 = vmatprep.subr.bf16.mxu0 0
        %3426 = vmatpush2.bf16.msra.mxu0 %v529
        %3427 = vmatprep.subr.bf16.mxu0 0
        %3428 = vmatpush2.bf16.msra.mxu0 %v528
        %3429 = vmatprep.subr.bf16.mxu0 0
        %3430 = vmatpush2.bf16.msra.mxu0 %v527
        %3431 = vmatprep.subr.bf16.mxu0 0
        %3432 = vmatpush2.bf16.msra.mxu0 %v526
        %3433 = vmatprep.subr.bf16.mxu0 0
        %3434 = vmatpush2.bf16.msra.mxu0 %v525
        %3435 = vmatprep.subr.bf16.mxu0 0
        %3436 = vmatpush2.bf16.msra.mxu0 %v524
        %3437 = vmatprep.subr.bf16.mxu0 0
        %3438 = vmatpush2.bf16.msra.mxu0 %v523
        %3439 = vmatprep.mubr.bf16.mxu0 %v3402
        %3440 = vmatmul.mubr.bf16.gmra.mxu0 %v3399
        %v3441 = vpop.f32.mrf.mxu0
        %v3442 = vadd.f32 0.0, %v3441
        %v3443 = vpop.f32.mrf.mxu0
        %v3444 = vpop.f32.mrf.mxu0
        %v3445 = vadd.f32 0.0, %v3444
        %v3446 = vpop.f32.mrf.mxu0
        %3447 = vmatprep.mubr.bf16.mxu0 %v3401
        %3448 = vmatmul.mubr.bf16.gmra.mxu0 %v3398
        %v3449 = vpop.f32.mrf.mxu0
        %v3450 = vadd.f32 0.0, %v3449
        %v3451 = vpop.f32.mrf.mxu0
        %v3452 = vpop.f32.mrf.mxu0
        %v3453 = vpop.f32.mrf.mxu0
        %3454 = vdwg.mxu0
        %v3459 = vrot.slane %v3373, 2
        %v3460 = vrot.slane %v3375, 2
        %v3461 = vsel %vm3166, %v3459, %v3460
        %v3462 = vrot.slane %v3374, 2
        %v3463 = vrot.slane %v3376, 2
        %v3464 = vsel %vm3166, %v3462, %v3463
        %3469 = vmatprep.subr.bf16.mxu0 0
        %3470 = vmatpush1.bf16.msra.mxu0 %v522
        %3471 = vmatprep.subr.bf16.mxu0 0
        %3472 = vmatpush1.bf16.msra.mxu0 %v521
        %3473 = vmatprep.subr.bf16.mxu0 0
        %3474 = vmatpush1.bf16.msra.mxu0 %v520
        %3475 = vmatprep.subr.bf16.mxu0 0
        %3476 = vmatpush1.bf16.msra.mxu0 %v519
        %3477 = vmatprep.subr.bf16.mxu0 0
        %3478 = vmatpush1.bf16.msra.mxu0 %v518
        %3479 = vmatprep.subr.bf16.mxu0 0
        %3480 = vmatpush1.bf16.msra.mxu0 %v517
        %3481 = vmatprep.subr.bf16.mxu0 0
        %3482 = vmatpush1.bf16.msra.mxu0 %v516
        %3483 = vmatprep.subr.bf16.mxu0 0
        %3484 = vmatpush1.bf16.msra.mxu0 %v515
        %3485 = vmatprep.subr.bf16.mxu0 0
        %3486 = vmatpush2.bf16.msra.mxu0 %v530
        %3487 = vmatprep.subr.bf16.mxu0 0
        %3488 = vmatpush2.bf16.msra.mxu0 %v529
        %3489 = vmatprep.subr.bf16.mxu0 0
        %3490 = vmatpush2.bf16.msra.mxu0 %v528
        %3491 = vmatprep.subr.bf16.mxu0 0
        %3492 = vmatpush2.bf16.msra.mxu0 %v527
        %3493 = vmatprep.subr.bf16.mxu0 0
        %3494 = vmatpush2.bf16.msra.mxu0 %v526
        %3495 = vmatprep.subr.bf16.mxu0 0
        %3496 = vmatpush2.bf16.msra.mxu0 %v525
        %3497 = vmatprep.subr.bf16.mxu0 0
        %3498 = vmatpush2.bf16.msra.mxu0 %v524
        %3499 = vmatprep.subr.bf16.mxu0 0
        %3500 = vmatpush2.bf16.msra.mxu0 %v523
        %3501 = vmatprep.mubr.bf16.mxu0 %v3464
        %3502 = vmatmul.mubr.bf16.gmra.mxu0 %v3461
        %v3503 = vpop.f32.mrf.mxu0
        %v3504 = vadd.f32 %v3442, %v3503
        %v3505 = vpop.f32.mrf.mxu0
        %v3506 = vpop.f32.mrf.mxu0
        %v3507 = vadd.f32 %v3445, %v3506
        %v3508 = vpop.f32.mrf.mxu0
        %3509 = vmatprep.mubr.bf16.mxu0 %v3463
        %3510 = vmatmul.mubr.bf16.gmra.mxu0 %v3460
        %v3511 = vpop.f32.mrf.mxu0
        %v3512 = vadd.f32 %v3450, %v3511
        %v3513 = vpop.f32.mrf.mxu0
        %v3514 = vpop.f32.mrf.mxu0
        %v3515 = vpop.f32.mrf.mxu0
        %3516 = vdwg.mxu0
        %v3520 = vrot.slane %v3504, 1
        %v3521 = vrot.slane %v3507, 1
        %v3522 = vsel %vm646, %v3520, %v3521
        %v3523 = vrot.slane %v3512, 1
        %v3524 = vsel %vm646, %v3521, %v3523
        %v3527 = vadd.f32 %v3504, %v3522
        %v3528 = vadd.f32 %v3507, %v3524
        %v3529 = vrot.slane %v3504, 2
        %v3530 = vrot.slane %v3507, 2
        %v3531 = vsel %vm656, %v3529, %v3530
        %v3532 = vrot.slane %v3512, 2
        %v3533 = vsel %vm656, %v3530, %v3532
        %v3536 = vadd.f32 %v3527, %v3531
        %v3537 = vadd.f32 %v3528, %v3533
        %v3538 = vmul.f32 %v3536, 2.0
        %v3539 = vmul.f32 %v3537, 2.0
        %v3542 = vrot.slane %v3538, 4
        %v3543 = vrot.slane %v3539, 4
        %v3544 = vsel %vm3026, %v3542, %v3543
        %v3548 = vsub.f32 %v3370, %v3542
        %v3549 = vsub.f32 %v3371, %v3544
        %v3550 = vsub.f32 %v3372, %v3543
        %v3551 = vmax.f32 %v3548, 0.0
        %v3552 = vmax.f32 %v3549, 0.0
        %v3553 = vmax.f32 %v3550, 0.0
        %s3554 = scalar_lea.vmem %s192, 192 [#allocation2]
        %3555 = vst [vmem:[%s3554 - $0x4] sm:$0xf0] %v3551
        %3556 = vst [vmem:[%s3554 + $0x4] sm:$0xff] %v3552
        %3557 = vst [vmem:[%s3554 + $0xc] sm:$0xf] %v3553
        %vm3558 = vcmask 1044480
        %v3559 = vrot.slane %v238, 3
        %v3560 = vrot.slane %v239, 3
        %v3561 = vrot.slane %v240, 3
        %v3562 = vsel %vm3558, %v3559, %v3561
        %v3563 = vrot.slane %v241, 3
        %v3564 = vsel %vm3558, %v3560, %v3563
        %v3565 = vrot.slane %v242, 3
        %v3566 = vsel %vm3558, %v3561, %v3565
        %v3567 = vrot.slane %v243, 3
        %v3568 = vsel %vm3558, %v3563, %v3567
        %v3575 = vmul.f32 %v270, %v3559
        %v3576 = vmul.f32 %v271, %v3560
        %v3577 = vmul.f32 %v272, %v3562
        %v3578 = vmul.f32 %v273, %v3564
        %v3579 = vmul.f32 %v274, %v3566
        %v3580 = vmul.f32 %v275, %v3568
        %v3581 = vrot.slane %v245, 3
        %v3582 = vrot.slane %v246, 3
        %v3583 = vrot.slane %v247, 3
        %v3584 = vsel %vm3558, %v3581, %v3583
        %v3585 = vrot.slane %v248, 3
        %v3586 = vsel %vm3558, %v3582, %v3585
        %v3587 = vrot.slane %v249, 3
        %v3588 = vsel %vm3558, %v3583, %v3587
        %v3589 = vrot.slane %v250, 3
        %v3590 = vsel %vm3558, %v3585, %v3589
        %v3597 = vmul.f32 %v283, %v3581
        %v3598 = vmul.f32 %v284, %v3582
        %v3599 = vmul.f32 %v285, %v3584
        %v3600 = vmul.f32 %v286, %v3586
        %v3601 = vmul.f32 %v287, %v3588
        %v3602 = vmul.f32 %v288, %v3590
        %v3603 = vadd.f32 %v3575, %v3597
        %v3604 = vadd.f32 %v3576, %v3598
        %v3605 = vadd.f32 %v3577, %v3599
        %v3606 = vadd.f32 %v3578, %v3600
        %v3607 = vadd.f32 %v3579, %v3601
        %v3608 = vadd.f32 %v3580, %v3602
        %v3609 = vrot.slane %v252, 3
        %v3610 = vrot.slane %v253, 3
        %v3611 = vrot.slane %v254, 3
        %v3612 = vsel %vm3558, %v3609, %v3611
        %v3613 = vrot.slane %v255, 3
        %v3614 = vsel %vm3558, %v3610, %v3613
        %v3615 = vrot.slane %v256, 3
        %v3616 = vsel %vm3558, %v3611, %v3615
        %v3617 = vrot.slane %v257, 3
        %v3618 = vsel %vm3558, %v3613, %v3617
        %v3625 = vmul.f32 %v296, %v3609
        %v3626 = vmul.f32 %v297, %v3610
        %v3627 = vmul.f32 %v298, %v3612
        %v3628 = vmul.f32 %v299, %v3614
        %v3629 = vmul.f32 %v300, %v3616
        %v3630 = vmul.f32 %v301, %v3618
        %v3631 = vadd.f32 %v3603, %v3625
        %v3632 = vadd.f32 %v3604, %v3626
        %v3633 = vadd.f32 %v3605, %v3627
        %v3634 = vadd.f32 %v3606, %v3628
        %v3635 = vadd.f32 %v3607, %v3629
        %v3636 = vadd.f32 %v3608, %v3630
        %v3637 = vrot.slane %v259, 3
        %v3638 = vrot.slane %v260, 3
        %v3639 = vrot.slane %v261, 3
        %v3640 = vsel %vm3558, %v3637, %v3639
        %v3641 = vrot.slane %v262, 3
        %v3642 = vsel %vm3558, %v3638, %v3641
        %v3643 = vrot.slane %v263, 3
        %v3644 = vsel %vm3558, %v3639, %v3643
        %v3645 = vrot.slane %v264, 3
        %v3646 = vsel %vm3558, %v3641, %v3645
        %v3653 = vmul.f32 %v309, %v3637
        %v3654 = vmul.f32 %v310, %v3638
        %v3655 = vmul.f32 %v311, %v3640
        %v3656 = vmul.f32 %v312, %v3642
        %v3657 = vmul.f32 %v313, %v3644
        %v3658 = vmul.f32 %v314, %v3646
        %v3659 = vadd.f32 %v3631, %v3653
        %v3660 = vadd.f32 %v3632, %v3654
        %v3661 = vadd.f32 %v3633, %v3655
        %v3662 = vadd.f32 %v3634, %v3656
        %v3663 = vadd.f32 %v3635, %v3657
        %v3664 = vadd.f32 %v3636, %v3658
        %v3665 = vrot.slane %v664, 3
        %v3666 = vrot.slane %v665, 3
        %v3667 = vsel %vm3558, %v3665, %v3666
        %v3671 = vadd.f32 %v845, %v3665
        %v3672 = vadd.f32 %v846, %v3667
        %v3673 = vadd.f32 %v847, %v3666
        %v3674 = vpack.c.bf16 %v3661, %v3659
        %v3675 = vpack.c.bf16 %v3662, %v3660
        %v3676 = vpack.c.bf16 %v3663, %v3663
        %v3677 = vpack.c.bf16 %v3664, %v3664
        %v3678 = vunpack.c.l.bf16 %v3674
        %v3679 = vunpack.c.l.bf16 %v3675
        %v3680 = vunpack.c.h.bf16 %v3674
        %v3681 = vunpack.c.h.bf16 %v3675
        %v3682 = vunpack.c.l.bf16 %v3676
        %v3683 = vunpack.c.l.bf16 %v3677
        %v3684 = vsub.f32 %v3659, %v3678
        %v3685 = vsub.f32 %v3660, %v3679
        %v3686 = vsub.f32 %v3661, %v3680
        %v3687 = vsub.f32 %v3662, %v3681
        %v3688 = vsub.f32 %v3663, %v3682
        %v3689 = vsub.f32 %v3664, %v3683
        %v3690 = vpack.c.bf16 %v3686, %v3684
        %v3691 = vpack.c.bf16 %v3687, %v3685
        %v3692 = vpack.c.bf16 %v3688, %v3688
        %v3693 = vpack.c.bf16 %v3689, %v3689
        %vm3694 = vsmask.f32 5376
        %v3696 = vshrl.u32 %v3690, 16
        %v3698 = vrot.slane %v3696, 2
        %v3699 = vshll.u32 %v3690, 16
        %v3701 = vrot.slane %v3699, 3
        %v3702 = vor.u32 %v3698, %v3701
        %v3704 = vshrl.u32 %v3692, 16
        %v3706 = vrot.slane %v3704, 2
        %v3707 = vshll.u32 %v3692, 16
        %v3709 = vrot.slane %v3707, 3
        %v3710 = vor.u32 %v3706, %v3709
        %v3711 = vsel %vm3694, %v3702, %v3710
        %v3713 = vshrl.u32 %v3691, 16
        %v3715 = vrot.slane %v3713, 2
        %v3716 = vshll.u32 %v3691, 16
        %v3718 = vrot.slane %v3716, 3
        %v3719 = vor.u32 %v3715, %v3718
        %v3721 = vshrl.u32 %v3693, 16
        %v3723 = vrot.slane %v3721, 2
        %v3724 = vshll.u32 %v3693, 16
        %v3726 = vrot.slane %v3724, 3
        %v3727 = vor.u32 %v3723, %v3726
        %v3728 = vsel %vm3694, %v3719, %v3727
        %3733 = vmatprep.subr.bf16.mxu0 0
        %3734 = vmatpush1.bf16.msra.mxu0 %v522
        %3735 = vmatprep.subr.bf16.mxu0 0
        %3736 = vmatpush1.bf16.msra.mxu0 %v521
        %3737 = vmatprep.subr.bf16.mxu0 0
        %3738 = vmatpush1.bf16.msra.mxu0 %v520
        %3739 = vmatprep.subr.bf16.mxu0 0
        %3740 = vmatpush1.bf16.msra.mxu0 %v519
        %3741 = vmatprep.subr.bf16.mxu0 0
        %3742 = vmatpush1.bf16.msra.mxu0 %v518
        %3743 = vmatprep.subr.bf16.mxu0 0
        %3744 = vmatpush1.bf16.msra.mxu0 %v517
        %3745 = vmatprep.subr.bf16.mxu0 0
        %3746 = vmatpush1.bf16.msra.mxu0 %v516
        %3747 = vmatprep.subr.bf16.mxu0 0
        %3748 = vmatpush1.bf16.msra.mxu0 %v515
        %3749 = vmatprep.subr.bf16.mxu0 0
        %3750 = vmatpush2.bf16.msra.mxu0 %v530
        %3751 = vmatprep.subr.bf16.mxu0 0
        %3752 = vmatpush2.bf16.msra.mxu0 %v529
        %3753 = vmatprep.subr.bf16.mxu0 0
        %3754 = vmatpush2.bf16.msra.mxu0 %v528
        %3755 = vmatprep.subr.bf16.mxu0 0
        %3756 = vmatpush2.bf16.msra.mxu0 %v527
        %3757 = vmatprep.subr.bf16.mxu0 0
        %3758 = vmatpush2.bf16.msra.mxu0 %v526
        %3759 = vmatprep.subr.bf16.mxu0 0
        %3760 = vmatpush2.bf16.msra.mxu0 %v525
        %3761 = vmatprep.subr.bf16.mxu0 0
        %3762 = vmatpush2.bf16.msra.mxu0 %v524
        %3763 = vmatprep.subr.bf16.mxu0 0
        %3764 = vmatpush2.bf16.msra.mxu0 %v523
        %3765 = vmatprep.mubr.bf16.mxu0 %v3728
        %3766 = vmatmul.mubr.bf16.gmra.mxu0 %v3711
        %v3767 = vpop.f32.mrf.mxu0
        %v3768 = vadd.f32 0.0, %v3767
        %v3769 = vpop.f32.mrf.mxu0
        %v3770 = vpop.f32.mrf.mxu0
        %v3771 = vadd.f32 0.0, %v3770
        %v3772 = vpop.f32.mrf.mxu0
        %3773 = vmatprep.mubr.bf16.mxu0 %v3727
        %3774 = vmatmul.mubr.bf16.gmra.mxu0 %v3710
        %v3775 = vpop.f32.mrf.mxu0
        %v3776 = vadd.f32 0.0, %v3775
        %v3777 = vpop.f32.mrf.mxu0
        %v3778 = vpop.f32.mrf.mxu0
        %v3779 = vpop.f32.mrf.mxu0
        %3780 = vdwg.mxu0
        %v3782 = vshrl.u32 %v3674, 16
        %v3784 = vrot.slane %v3782, 2
        %v3785 = vshll.u32 %v3674, 16
        %v3787 = vrot.slane %v3785, 3
        %v3788 = vor.u32 %v3784, %v3787
        %v3790 = vshrl.u32 %v3676, 16
        %v3792 = vrot.slane %v3790, 2
        %v3793 = vshll.u32 %v3676, 16
        %v3795 = vrot.slane %v3793, 3
        %v3796 = vor.u32 %v3792, %v3795
        %v3797 = vsel %vm3694, %v3788, %v3796
        %v3799 = vshrl.u32 %v3675, 16
        %v3801 = vrot.slane %v3799, 2
        %v3802 = vshll.u32 %v3675, 16
        %v3804 = vrot.slane %v3802, 3
        %v3805 = vor.u32 %v3801, %v3804
        %v3807 = vshrl.u32 %v3677, 16
        %v3809 = vrot.slane %v3807, 2
        %v3810 = vshll.u32 %v3677, 16
        %v3812 = vrot.slane %v3810, 3
        %v3813 = vor.u32 %v3809, %v3812
        %v3814 = vsel %vm3694, %v3805, %v3813
        %3819 = vmatprep.subr.bf16.mxu0 0
        %3820 = vmatpush1.bf16.msra.mxu0 %v522
        %3821 = vmatprep.subr.bf16.mxu0 0
        %3822 = vmatpush1.bf16.msra.mxu0 %v521
        %3823 = vmatprep.subr.bf16.mxu0 0
        %3824 = vmatpush1.bf16.msra.mxu0 %v520
        %3825 = vmatprep.subr.bf16.mxu0 0
        %3826 = vmatpush1.bf16.msra.mxu0 %v519
        %3827 = vmatprep.subr.bf16.mxu0 0
        %3828 = vmatpush1.bf16.msra.mxu0 %v518
        %3829 = vmatprep.subr.bf16.mxu0 0
        %3830 = vmatpush1.bf16.msra.mxu0 %v517
        %3831 = vmatprep.subr.bf16.mxu0 0
        %3832 = vmatpush1.bf16.msra.mxu0 %v516
        %3833 = vmatprep.subr.bf16.mxu0 0
        %3834 = vmatpush1.bf16.msra.mxu0 %v515
        %3835 = vmatprep.subr.bf16.mxu0 0
        %3836 = vmatpush2.bf16.msra.mxu0 %v530
        %3837 = vmatprep.subr.bf16.mxu0 0
        %3838 = vmatpush2.bf16.msra.mxu0 %v529
        %3839 = vmatprep.subr.bf16.mxu0 0
        %3840 = vmatpush2.bf16.msra.mxu0 %v528
        %3841 = vmatprep.subr.bf16.mxu0 0
        %3842 = vmatpush2.bf16.msra.mxu0 %v527
        %3843 = vmatprep.subr.bf16.mxu0 0
        %3844 = vmatpush2.bf16.msra.mxu0 %v526
        %3845 = vmatprep.subr.bf16.mxu0 0
        %3846 = vmatpush2.bf16.msra.mxu0 %v525
        %3847 = vmatprep.subr.bf16.mxu0 0
        %3848 = vmatpush2.bf16.msra.mxu0 %v524
        %3849 = vmatprep.subr.bf16.mxu0 0
        %3850 = vmatpush2.bf16.msra.mxu0 %v523
        %3851 = vmatprep.mubr.bf16.mxu0 %v3814
        %3852 = vmatmul.mubr.bf16.gmra.mxu0 %v3797
        %v3853 = vpop.f32.mrf.mxu0
        %v3854 = vadd.f32 %v3768, %v3853
        %v3855 = vpop.f32.mrf.mxu0
        %v3856 = vpop.f32.mrf.mxu0
        %v3857 = vadd.f32 %v3771, %v3856
        %v3858 = vpop.f32.mrf.mxu0
        %3859 = vmatprep.mubr.bf16.mxu0 %v3813
        %3860 = vmatmul.mubr.bf16.gmra.mxu0 %v3796
        %v3861 = vpop.f32.mrf.mxu0
        %v3862 = vadd.f32 %v3776, %v3861
        %v3863 = vpop.f32.mrf.mxu0
        %v3864 = vpop.f32.mrf.mxu0
        %v3865 = vpop.f32.mrf.mxu0
        %3866 = vdwg.mxu0
        %v3870 = vrot.slane %v3854, 1
        %v3871 = vrot.slane %v3857, 1
        %v3872 = vsel %vm646, %v3870, %v3871
        %v3873 = vrot.slane %v3862, 1
        %v3874 = vsel %vm646, %v3871, %v3873
        %v3877 = vadd.f32 %v3854, %v3872
        %v3878 = vadd.f32 %v3857, %v3874
        %v3879 = vrot.slane %v3854, 2
        %v3880 = vrot.slane %v3857, 2
        %v3881 = vsel %vm656, %v3879, %v3880
        %v3882 = vrot.slane %v3862, 2
        %v3883 = vsel %vm656, %v3880, %v3882
        %v3886 = vadd.f32 %v3877, %v3881
        %v3887 = vadd.f32 %v3878, %v3883
        %v3888 = vmul.f32 %v3886, 2.0
        %v3889 = vmul.f32 %v3887, 2.0
        %v3892 = vrot.slane %v3888, 3
        %v3893 = vrot.slane %v3889, 3
        %v3894 = vsel %vm3558, %v3892, %v3893
        %v3898 = vsub.f32 %v3671, %v3892
        %v3899 = vsub.f32 %v3672, %v3894
        %v3900 = vsub.f32 %v3673, %v3893
        %v3901 = vmax.f32 %v3898, 0.0
        %v3902 = vmax.f32 %v3899, 0.0
        %v3903 = vmax.f32 %v3900, 0.0
        %s3904 = scalar_lea.vmem %s192, 80 [#allocation2]
        %3905 = vst [vmem:[%s3904 - $0x5] sm:$0xe0] %v3901
        %3906 = vst [vmem:[%s3904 + $0x3] sm:$0xff] %v3902
        %3907 = vst [vmem:[%s3904 + $0xb] sm:$0x1f] %v3903
        %v3908 = vmul.f32 %v272, %v3559
        %v3909 = vmul.f32 %v273, %v3560
        %v3910 = vmul.f32 %v274, %v3562
        %v3911 = vmul.f32 %v275, %v3564
        %v3912 = vmul.f32 %v276, %v3566
        %v3913 = vmul.f32 %v277, %v3568
        %v3914 = vmul.f32 %v285, %v3581
        %v3915 = vmul.f32 %v286, %v3582
        %v3916 = vmul.f32 %v287, %v3584
        %v3917 = vmul.f32 %v288, %v3586
        %v3918 = vmul.f32 %v289, %v3588
        %v3919 = vmul.f32 %v290, %v3590
        %v3920 = vadd.f32 %v3908, %v3914
        %v3921 = vadd.f32 %v3909, %v3915
        %v3922 = vadd.f32 %v3910, %v3916
        %v3923 = vadd.f32 %v3911, %v3917
        %v3924 = vadd.f32 %v3912, %v3918
        %v3925 = vadd.f32 %v3913, %v3919
        %v3926 = vmul.f32 %v298, %v3609
        %v3927 = vmul.f32 %v299, %v3610
        %v3928 = vmul.f32 %v300, %v3612
        %v3929 = vmul.f32 %v301, %v3614
        %v3930 = vmul.f32 %v302, %v3616
        %v3931 = vmul.f32 %v303, %v3618
        %v3932 = vadd.f32 %v3920, %v3926
        %v3933 = vadd.f32 %v3921, %v3927
        %v3934 = vadd.f32 %v3922, %v3928
        %v3935 = vadd.f32 %v3923, %v3929
        %v3936 = vadd.f32 %v3924, %v3930
        %v3937 = vadd.f32 %v3925, %v3931
        %v3938 = vmul.f32 %v311, %v3637
        %v3939 = vmul.f32 %v312, %v3638
        %v3940 = vmul.f32 %v313, %v3640
        %v3941 = vmul.f32 %v314, %v3642
        %v3942 = vmul.f32 %v315, %v3644
        %v3943 = vmul.f32 %v316, %v3646
        %v3944 = vadd.f32 %v3932, %v3938
        %v3945 = vadd.f32 %v3933, %v3939
        %v3946 = vadd.f32 %v3934, %v3940
        %v3947 = vadd.f32 %v3935, %v3941
        %v3948 = vadd.f32 %v3936, %v3942
        %v3949 = vadd.f32 %v3937, %v3943
        %v3950 = vadd.f32 %v846, %v3665
        %v3951 = vadd.f32 %v847, %v3667
        %v3952 = vadd.f32 %v848, %v3666
        %v3953 = vpack.c.bf16 %v3946, %v3944
        %v3954 = vpack.c.bf16 %v3947, %v3945
        %v3955 = vpack.c.bf16 %v3948, %v3948
        %v3956 = vpack.c.bf16 %v3949, %v3949
        %v3957 = vunpack.c.l.bf16 %v3953
        %v3958 = vunpack.c.l.bf16 %v3954
        %v3959 = vunpack.c.h.bf16 %v3953
        %v3960 = vunpack.c.h.bf16 %v3954
        %v3961 = vunpack.c.l.bf16 %v3955
        %v3962 = vunpack.c.l.bf16 %v3956
        %v3963 = vsub.f32 %v3944, %v3957
        %v3964 = vsub.f32 %v3945, %v3958
        %v3965 = vsub.f32 %v3946, %v3959
        %v3966 = vsub.f32 %v3947, %v3960
        %v3967 = vsub.f32 %v3948, %v3961
        %v3968 = vsub.f32 %v3949, %v3962
        %v3969 = vpack.c.bf16 %v3965, %v3963
        %v3970 = vpack.c.bf16 %v3966, %v3964
        %v3971 = vpack.c.bf16 %v3967, %v3967
        %v3972 = vpack.c.bf16 %v3968, %v3968
        %v3974 = vshrl.u32 %v3969, 16
        %v3976 = vrot.slane %v3974, 2
        %v3977 = vshll.u32 %v3969, 16
        %v3979 = vrot.slane %v3977, 3
        %v3980 = vor.u32 %v3976, %v3979
        %v3982 = vshrl.u32 %v3971, 16
        %v3984 = vrot.slane %v3982, 2
        %v3985 = vshll.u32 %v3971, 16
        %v3987 = vrot.slane %v3985, 3
        %v3988 = vor.u32 %v3984, %v3987
        %v3989 = vsel %vm3694, %v3980, %v3988
        %v3991 = vshrl.u32 %v3970, 16
        %v3993 = vrot.slane %v3991, 2
        %v3994 = vshll.u32 %v3970, 16
        %v3996 = vrot.slane %v3994, 3
        %v3997 = vor.u32 %v3993, %v3996
        %v3999 = vshrl.u32 %v3972, 16
        %v4001 = vrot.slane %v3999, 2
        %v4002 = vshll.u32 %v3972, 16
        %v4004 = vrot.slane %v4002, 3
        %v4005 = vor.u32 %v4001, %v4004
        %v4006 = vsel %vm3694, %v3997, %v4005
        %4011 = vmatprep.subr.bf16.mxu0 0
        %4012 = vmatpush1.bf16.msra.mxu0 %v522
        %4013 = vmatprep.subr.bf16.mxu0 0
        %4014 = vmatpush1.bf16.msra.mxu0 %v521
        %4015 = vmatprep.subr.bf16.mxu0 0
        %4016 = vmatpush1.bf16.msra.mxu0 %v520
        %4017 = vmatprep.subr.bf16.mxu0 0
        %4018 = vmatpush1.bf16.msra.mxu0 %v519
        %4019 = vmatprep.subr.bf16.mxu0 0
        %4020 = vmatpush1.bf16.msra.mxu0 %v518
        %4021 = vmatprep.subr.bf16.mxu0 0
        %4022 = vmatpush1.bf16.msra.mxu0 %v517
        %4023 = vmatprep.subr.bf16.mxu0 0
        %4024 = vmatpush1.bf16.msra.mxu0 %v516
        %4025 = vmatprep.subr.bf16.mxu0 0
        %4026 = vmatpush1.bf16.msra.mxu0 %v515
        %4027 = vmatprep.subr.bf16.mxu0 0
        %4028 = vmatpush2.bf16.msra.mxu0 %v530
        %4029 = vmatprep.subr.bf16.mxu0 0
        %4030 = vmatpush2.bf16.msra.mxu0 %v529
        %4031 = vmatprep.subr.bf16.mxu0 0
        %4032 = vmatpush2.bf16.msra.mxu0 %v528
        %4033 = vmatprep.subr.bf16.mxu0 0
        %4034 = vmatpush2.bf16.msra.mxu0 %v527
        %4035 = vmatprep.subr.bf16.mxu0 0
        %4036 = vmatpush2.bf16.msra.mxu0 %v526
        %4037 = vmatprep.subr.bf16.mxu0 0
        %4038 = vmatpush2.bf16.msra.mxu0 %v525
        %4039 = vmatprep.subr.bf16.mxu0 0
        %4040 = vmatpush2.bf16.msra.mxu0 %v524
        %4041 = vmatprep.subr.bf16.mxu0 0
        %4042 = vmatpush2.bf16.msra.mxu0 %v523
        %4043 = vmatprep.mubr.bf16.mxu0 %v4006
        %4044 = vmatmul.mubr.bf16.gmra.mxu0 %v3989
        %v4045 = vpop.f32.mrf.mxu0
        %v4046 = vadd.f32 0.0, %v4045
        %v4047 = vpop.f32.mrf.mxu0
        %v4048 = vpop.f32.mrf.mxu0
        %v4049 = vadd.f32 0.0, %v4048
        %v4050 = vpop.f32.mrf.mxu0
        %4051 = vmatprep.mubr.bf16.mxu0 %v4005
        %4052 = vmatmul.mubr.bf16.gmra.mxu0 %v3988
        %v4053 = vpop.f32.mrf.mxu0
        %v4054 = vadd.f32 0.0, %v4053
        %v4055 = vpop.f32.mrf.mxu0
        %v4056 = vpop.f32.mrf.mxu0
        %v4057 = vpop.f32.mrf.mxu0
        %4058 = vdwg.mxu0
        %v4060 = vshrl.u32 %v3953, 16
        %v4062 = vrot.slane %v4060, 2
        %v4063 = vshll.u32 %v3953, 16
        %v4065 = vrot.slane %v4063, 3
        %v4066 = vor.u32 %v4062, %v4065
        %v4068 = vshrl.u32 %v3955, 16
        %v4070 = vrot.slane %v4068, 2
        %v4071 = vshll.u32 %v3955, 16
        %v4073 = vrot.slane %v4071, 3
        %v4074 = vor.u32 %v4070, %v4073
        %v4075 = vsel %vm3694, %v4066, %v4074
        %v4077 = vshrl.u32 %v3954, 16
        %v4079 = vrot.slane %v4077, 2
        %v4080 = vshll.u32 %v3954, 16
        %v4082 = vrot.slane %v4080, 3
        %v4083 = vor.u32 %v4079, %v4082
        %v4085 = vshrl.u32 %v3956, 16
        %v4087 = vrot.slane %v4085, 2
        %v4088 = vshll.u32 %v3956, 16
        %v4090 = vrot.slane %v4088, 3
        %v4091 = vor.u32 %v4087, %v4090
        %v4092 = vsel %vm3694, %v4083, %v4091
        %4097 = vmatprep.subr.bf16.mxu0 0
        %4098 = vmatpush1.bf16.msra.mxu0 %v522
        %4099 = vmatprep.subr.bf16.mxu0 0
        %4100 = vmatpush1.bf16.msra.mxu0 %v521
        %4101 = vmatprep.subr.bf16.mxu0 0
        %4102 = vmatpush1.bf16.msra.mxu0 %v520
        %4103 = vmatprep.subr.bf16.mxu0 0
        %4104 = vmatpush1.bf16.msra.mxu0 %v519
        %4105 = vmatprep.subr.bf16.mxu0 0
        %4106 = vmatpush1.bf16.msra.mxu0 %v518
        %4107 = vmatprep.subr.bf16.mxu0 0
        %4108 = vmatpush1.bf16.msra.mxu0 %v517
        %4109 = vmatprep.subr.bf16.mxu0 0
        %4110 = vmatpush1.bf16.msra.mxu0 %v516
        %4111 = vmatprep.subr.bf16.mxu0 0
        %4112 = vmatpush1.bf16.msra.mxu0 %v515
        %4113 = vmatprep.subr.bf16.mxu0 0
        %4114 = vmatpush2.bf16.msra.mxu0 %v530
        %4115 = vmatprep.subr.bf16.mxu0 0
        %4116 = vmatpush2.bf16.msra.mxu0 %v529
        %4117 = vmatprep.subr.bf16.mxu0 0
        %4118 = vmatpush2.bf16.msra.mxu0 %v528
        %4119 = vmatprep.subr.bf16.mxu0 0
        %4120 = vmatpush2.bf16.msra.mxu0 %v527
        %4121 = vmatprep.subr.bf16.mxu0 0
        %4122 = vmatpush2.bf16.msra.mxu0 %v526
        %4123 = vmatprep.subr.bf16.mxu0 0
        %4124 = vmatpush2.bf16.msra.mxu0 %v525
        %4125 = vmatprep.subr.bf16.mxu0 0
        %4126 = vmatpush2.bf16.msra.mxu0 %v524
        %4127 = vmatprep.subr.bf16.mxu0 0
        %4128 = vmatpush2.bf16.msra.mxu0 %v523
        %4129 = vmatprep.mubr.bf16.mxu0 %v4092
        %4130 = vmatmul.mubr.bf16.gmra.mxu0 %v4075
        %v4131 = vpop.f32.mrf.mxu0
        %v4132 = vadd.f32 %v4046, %v4131
        %v4133 = vpop.f32.mrf.mxu0
        %v4134 = vpop.f32.mrf.mxu0
        %v4135 = vadd.f32 %v4049, %v4134
        %v4136 = vpop.f32.mrf.mxu0
        %4137 = vmatprep.mubr.bf16.mxu0 %v4091
        %4138 = vmatmul.mubr.bf16.gmra.mxu0 %v4074
        %v4139 = vpop.f32.mrf.mxu0
        %v4140 = vadd.f32 %v4054, %v4139
        %v4141 = vpop.f32.mrf.mxu0
        %v4142 = vpop.f32.mrf.mxu0
        %v4143 = vpop.f32.mrf.mxu0
        %4144 = vdwg.mxu0
        %v4148 = vrot.slane %v4132, 1
        %v4149 = vrot.slane %v4135, 1
        %v4150 = vsel %vm646, %v4148, %v4149
        %v4151 = vrot.slane %v4140, 1
        %v4152 = vsel %vm646, %v4149, %v4151
        %v4155 = vadd.f32 %v4132, %v4150
        %v4156 = vadd.f32 %v4135, %v4152
        %v4157 = vrot.slane %v4132, 2
        %v4158 = vrot.slane %v4135, 2
        %v4159 = vsel %vm656, %v4157, %v4158
        %v4160 = vrot.slane %v4140, 2
        %v4161 = vsel %vm656, %v4158, %v4160
        %v4164 = vadd.f32 %v4155, %v4159
        %v4165 = vadd.f32 %v4156, %v4161
        %v4166 = vmul.f32 %v4164, 2.0
        %v4167 = vmul.f32 %v4165, 2.0
        %v4170 = vrot.slane %v4166, 3
        %v4171 = vrot.slane %v4167, 3
        %v4172 = vsel %vm3558, %v4170, %v4171
        %v4176 = vsub.f32 %v3950, %v4170
        %v4177 = vsub.f32 %v3951, %v4172
        %v4178 = vsub.f32 %v3952, %v4171
        %v4179 = vmax.f32 %v4176, 0.0
        %v4180 = vmax.f32 %v4177, 0.0
        %v4181 = vmax.f32 %v4178, 0.0
        %s4182 = scalar_lea.vmem %s192, 208 [#allocation2]
        %4183 = vst [vmem:[%s4182 - $0x5] sm:$0xe0] %v4179
        %4184 = vst [vmem:[%s4182 + $0x3] sm:$0xff] %v4180
        %4185 = vst [vmem:[%s4182 + $0xb] sm:$0x1f] %v4181
        %v4186 = vrot.slane %v238, 2
        %v4187 = vrot.slane %v239, 2
        %v4188 = vrot.slane %v240, 2
        %v4189 = vsel %vm656, %v4186, %v4188
        %v4190 = vrot.slane %v241, 2
        %v4191 = vsel %vm656, %v4187, %v4190
        %v4192 = vrot.slane %v242, 2
        %v4193 = vsel %vm656, %v4188, %v4192
        %v4194 = vrot.slane %v243, 2
        %v4195 = vsel %vm656, %v4190, %v4194
        %v4202 = vmul.f32 %v270, %v4186
        %v4203 = vmul.f32 %v271, %v4187
        %v4204 = vmul.f32 %v272, %v4189
        %v4205 = vmul.f32 %v273, %v4191
        %v4206 = vmul.f32 %v274, %v4193
        %v4207 = vmul.f32 %v275, %v4195
        %v4208 = vrot.slane %v245, 2
        %v4209 = vrot.slane %v246, 2
        %v4210 = vrot.slane %v247, 2
        %v4211 = vsel %vm656, %v4208, %v4210
        %v4212 = vrot.slane %v248, 2
        %v4213 = vsel %vm656, %v4209, %v4212
        %v4214 = vrot.slane %v249, 2
        %v4215 = vsel %vm656, %v4210, %v4214
        %v4216 = vrot.slane %v250, 2
        %v4217 = vsel %vm656, %v4212, %v4216
        %v4224 = vmul.f32 %v283, %v4208
        %v4225 = vmul.f32 %v284, %v4209
        %v4226 = vmul.f32 %v285, %v4211
        %v4227 = vmul.f32 %v286, %v4213
        %v4228 = vmul.f32 %v287, %v4215
        %v4229 = vmul.f32 %v288, %v4217
        %v4230 = vadd.f32 %v4202, %v4224
        %v4231 = vadd.f32 %v4203, %v4225
        %v4232 = vadd.f32 %v4204, %v4226
        %v4233 = vadd.f32 %v4205, %v4227
        %v4234 = vadd.f32 %v4206, %v4228
        %v4235 = vadd.f32 %v4207, %v4229
        %v4236 = vrot.slane %v252, 2
        %v4237 = vrot.slane %v253, 2
        %v4238 = vrot.slane %v254, 2
        %v4239 = vsel %vm656, %v4236, %v4238
        %v4240 = vrot.slane %v255, 2
        %v4241 = vsel %vm656, %v4237, %v4240
        %v4242 = vrot.slane %v256, 2
        %v4243 = vsel %vm656, %v4238, %v4242
        %v4244 = vrot.slane %v257, 2
        %v4245 = vsel %vm656, %v4240, %v4244
        %v4252 = vmul.f32 %v296, %v4236
        %v4253 = vmul.f32 %v297, %v4237
        %v4254 = vmul.f32 %v298, %v4239
        %v4255 = vmul.f32 %v299, %v4241
        %v4256 = vmul.f32 %v300, %v4243
        %v4257 = vmul.f32 %v301, %v4245
        %v4258 = vadd.f32 %v4230, %v4252
        %v4259 = vadd.f32 %v4231, %v4253
        %v4260 = vadd.f32 %v4232, %v4254
        %v4261 = vadd.f32 %v4233, %v4255
        %v4262 = vadd.f32 %v4234, %v4256
        %v4263 = vadd.f32 %v4235, %v4257
        %v4264 = vrot.slane %v259, 2
        %v4265 = vrot.slane %v260, 2
        %v4266 = vrot.slane %v261, 2
        %v4267 = vsel %vm656, %v4264, %v4266
        %v4268 = vrot.slane %v262, 2
        %v4269 = vsel %vm656, %v4265, %v4268
        %v4270 = vrot.slane %v263, 2
        %v4271 = vsel %vm656, %v4266, %v4270
        %v4272 = vrot.slane %v264, 2
        %v4273 = vsel %vm656, %v4268, %v4272
        %v4280 = vmul.f32 %v309, %v4264
        %v4281 = vmul.f32 %v310, %v4265
        %v4282 = vmul.f32 %v311, %v4267
        %v4283 = vmul.f32 %v312, %v4269
        %v4284 = vmul.f32 %v313, %v4271
        %v4285 = vmul.f32 %v314, %v4273
        %v4286 = vadd.f32 %v4258, %v4280
        %v4287 = vadd.f32 %v4259, %v4281
        %v4288 = vadd.f32 %v4260, %v4282
        %v4289 = vadd.f32 %v4261, %v4283
        %v4290 = vadd.f32 %v4262, %v4284
        %v4291 = vadd.f32 %v4263, %v4285
        %v4292 = vrot.slane %v664, 2
        %v4293 = vrot.slane %v665, 2
        %v4294 = vsel %vm656, %v4292, %v4293
        %v4298 = vadd.f32 %v845, %v4292
        %v4299 = vadd.f32 %v846, %v4294
        %v4300 = vadd.f32 %v847, %v4293
        %v4301 = vpack.c.bf16 %v4288, %v4286
        %v4302 = vpack.c.bf16 %v4289, %v4287
        %v4303 = vpack.c.bf16 %v4290, %v4290
        %v4304 = vpack.c.bf16 %v4291, %v4291
        %v4305 = vunpack.c.l.bf16 %v4301
        %v4306 = vunpack.c.l.bf16 %v4302
        %v4307 = vunpack.c.h.bf16 %v4301
        %v4308 = vunpack.c.h.bf16 %v4302
        %v4309 = vunpack.c.l.bf16 %v4303
        %v4310 = vunpack.c.l.bf16 %v4304
        %v4311 = vsub.f32 %v4286, %v4305
        %v4312 = vsub.f32 %v4287, %v4306
        %v4313 = vsub.f32 %v4288, %v4307
        %v4314 = vsub.f32 %v4289, %v4308
        %v4315 = vsub.f32 %v4290, %v4309
        %v4316 = vsub.f32 %v4291, %v4310
        %v4317 = vpack.c.bf16 %v4313, %v4311
        %v4318 = vpack.c.bf16 %v4314, %v4312
        %v4319 = vpack.c.bf16 %v4315, %v4315
        %v4320 = vpack.c.bf16 %v4316, %v4316
        %vm4325 = vcmask 1044480
        %v4326 = vrot.slane %v4317, 3
        %v4327 = vrot.slane %v4319, 3
        %v4328 = vsel %vm4325, %v4326, %v4327
        %v4329 = vrot.slane %v4318, 3
        %v4330 = vrot.slane %v4320, 3
        %v4331 = vsel %vm4325, %v4329, %v4330
        %4336 = vmatprep.subr.bf16.mxu0 0
        %4337 = vmatpush1.bf16.msra.mxu0 %v522
        %4338 = vmatprep.subr.bf16.mxu0 0
        %4339 = vmatpush1.bf16.msra.mxu0 %v521
        %4340 = vmatprep.subr.bf16.mxu0 0
        %4341 = vmatpush1.bf16.msra.mxu0 %v520
        %4342 = vmatprep.subr.bf16.mxu0 0
        %4343 = vmatpush1.bf16.msra.mxu0 %v519
        %4344 = vmatprep.subr.bf16.mxu0 0
        %4345 = vmatpush1.bf16.msra.mxu0 %v518
        %4346 = vmatprep.subr.bf16.mxu0 0
        %4347 = vmatpush1.bf16.msra.mxu0 %v517
        %4348 = vmatprep.subr.bf16.mxu0 0
        %4349 = vmatpush1.bf16.msra.mxu0 %v516
        %4350 = vmatprep.subr.bf16.mxu0 0
        %4351 = vmatpush1.bf16.msra.mxu0 %v515
        %4352 = vmatprep.subr.bf16.mxu0 0
        %4353 = vmatpush2.bf16.msra.mxu0 %v530
        %4354 = vmatprep.subr.bf16.mxu0 0
        %4355 = vmatpush2.bf16.msra.mxu0 %v529
        %4356 = vmatprep.subr.bf16.mxu0 0
        %4357 = vmatpush2.bf16.msra.mxu0 %v528
        %4358 = vmatprep.subr.bf16.mxu0 0
        %4359 = vmatpush2.bf16.msra.mxu0 %v527
        %4360 = vmatprep.subr.bf16.mxu0 0
        %4361 = vmatpush2.bf16.msra.mxu0 %v526
        %4362 = vmatprep.subr.bf16.mxu0 0
        %4363 = vmatpush2.bf16.msra.mxu0 %v525
        %4364 = vmatprep.subr.bf16.mxu0 0
        %4365 = vmatpush2.bf16.msra.mxu0 %v524
        %4366 = vmatprep.subr.bf16.mxu0 0
        %4367 = vmatpush2.bf16.msra.mxu0 %v523
        %4368 = vmatprep.mubr.bf16.mxu0 %v4331
        %4369 = vmatmul.mubr.bf16.gmra.mxu0 %v4328
        %v4370 = vpop.f32.mrf.mxu0
        %v4371 = vadd.f32 0.0, %v4370
        %v4372 = vpop.f32.mrf.mxu0
        %v4373 = vpop.f32.mrf.mxu0
        %v4374 = vadd.f32 0.0, %v4373
        %v4375 = vpop.f32.mrf.mxu0
        %4376 = vmatprep.mubr.bf16.mxu0 %v4330
        %4377 = vmatmul.mubr.bf16.gmra.mxu0 %v4327
        %v4378 = vpop.f32.mrf.mxu0
        %v4379 = vadd.f32 0.0, %v4378
        %v4380 = vpop.f32.mrf.mxu0
        %v4381 = vpop.f32.mrf.mxu0
        %v4382 = vpop.f32.mrf.mxu0
        %4383 = vdwg.mxu0
        %v4388 = vrot.slane %v4301, 3
        %v4389 = vrot.slane %v4303, 3
        %v4390 = vsel %vm4325, %v4388, %v4389
        %v4391 = vrot.slane %v4302, 3
        %v4392 = vrot.slane %v4304, 3
        %v4393 = vsel %vm4325, %v4391, %v4392
        %4398 = vmatprep.subr.bf16.mxu0 0
        %4399 = vmatpush1.bf16.msra.mxu0 %v522
        %4400 = vmatprep.subr.bf16.mxu0 0
        %4401 = vmatpush1.bf16.msra.mxu0 %v521
        %4402 = vmatprep.subr.bf16.mxu0 0
        %4403 = vmatpush1.bf16.msra.mxu0 %v520
        %4404 = vmatprep.subr.bf16.mxu0 0
        %4405 = vmatpush1.bf16.msra.mxu0 %v519
        %4406 = vmatprep.subr.bf16.mxu0 0
        %4407 = vmatpush1.bf16.msra.mxu0 %v518
        %4408 = vmatprep.subr.bf16.mxu0 0
        %4409 = vmatpush1.bf16.msra.mxu0 %v517
        %4410 = vmatprep.subr.bf16.mxu0 0
        %4411 = vmatpush1.bf16.msra.mxu0 %v516
        %4412 = vmatprep.subr.bf16.mxu0 0
        %4413 = vmatpush1.bf16.msra.mxu0 %v515
        %4414 = vmatprep.subr.bf16.mxu0 0
        %4415 = vmatpush2.bf16.msra.mxu0 %v530
        %4416 = vmatprep.subr.bf16.mxu0 0
        %4417 = vmatpush2.bf16.msra.mxu0 %v529
        %4418 = vmatprep.subr.bf16.mxu0 0
        %4419 = vmatpush2.bf16.msra.mxu0 %v528
        %4420 = vmatprep.subr.bf16.mxu0 0
        %4421 = vmatpush2.bf16.msra.mxu0 %v527
        %4422 = vmatprep.subr.bf16.mxu0 0
        %4423 = vmatpush2.bf16.msra.mxu0 %v526
        %4424 = vmatprep.subr.bf16.mxu0 0
        %4425 = vmatpush2.bf16.msra.mxu0 %v525
        %4426 = vmatprep.subr.bf16.mxu0 0
        %4427 = vmatpush2.bf16.msra.mxu0 %v524
        %4428 = vmatprep.subr.bf16.mxu0 0
        %4429 = vmatpush2.bf16.msra.mxu0 %v523
        %4430 = vmatprep.mubr.bf16.mxu0 %v4393
        %4431 = vmatmul.mubr.bf16.gmra.mxu0 %v4390
        %v4432 = vpop.f32.mrf.mxu0
        %v4433 = vadd.f32 %v4371, %v4432
        %v4434 = vpop.f32.mrf.mxu0
        %v4435 = vpop.f32.mrf.mxu0
        %v4436 = vadd.f32 %v4374, %v4435
        %v4437 = vpop.f32.mrf.mxu0
        %4438 = vmatprep.mubr.bf16.mxu0 %v4392
        %4439 = vmatmul.mubr.bf16.gmra.mxu0 %v4389
        %v4440 = vpop.f32.mrf.mxu0
        %v4441 = vadd.f32 %v4379, %v4440
        %v4442 = vpop.f32.mrf.mxu0
        %v4443 = vpop.f32.mrf.mxu0
        %v4444 = vpop.f32.mrf.mxu0
        %4445 = vdwg.mxu0
        %v4449 = vrot.slane %v4433, 1
        %v4450 = vrot.slane %v4436, 1
        %v4451 = vsel %vm646, %v4449, %v4450
        %v4452 = vrot.slane %v4441, 1
        %v4453 = vsel %vm646, %v4450, %v4452
        %v4456 = vadd.f32 %v4433, %v4451
        %v4457 = vadd.f32 %v4436, %v4453
        %v4458 = vrot.slane %v4433, 2
        %v4459 = vrot.slane %v4436, 2
        %v4460 = vsel %vm656, %v4458, %v4459
        %v4461 = vrot.slane %v4441, 2
        %v4462 = vsel %vm656, %v4459, %v4461
        %v4465 = vadd.f32 %v4456, %v4460
        %v4466 = vadd.f32 %v4457, %v4462
        %v4467 = vmul.f32 %v4465, 2.0
        %v4468 = vmul.f32 %v4466, 2.0
        %v4471 = vrot.slane %v4467, 2
        %v4472 = vrot.slane %v4468, 2
        %v4473 = vsel %vm656, %v4471, %v4472
        %v4477 = vsub.f32 %v4298, %v4471
        %v4478 = vsub.f32 %v4299, %v4473
        %v4479 = vsub.f32 %v4300, %v4472
        %v4480 = vmax.f32 %v4477, 0.0
        %v4481 = vmax.f32 %v4478, 0.0
        %v4482 = vmax.f32 %v4479, 0.0
        %s4483 = scalar_lea.vmem %s192, 96 [#allocation2]
        %4484 = vst [vmem:[%s4483 - $0x6] sm:$0xc0] %v4480
        %4485 = vst [vmem:[%s4483 + $0x2] sm:$0xff] %v4481
        %4486 = vst [vmem:[%s4483 + $0xa] sm:$0x3f] %v4482
        %v4487 = vmul.f32 %v272, %v4186
        %v4488 = vmul.f32 %v273, %v4187
        %v4489 = vmul.f32 %v274, %v4189
        %v4490 = vmul.f32 %v275, %v4191
        %v4491 = vmul.f32 %v276, %v4193
        %v4492 = vmul.f32 %v277, %v4195
        %v4493 = vmul.f32 %v285, %v4208
        %v4494 = vmul.f32 %v286, %v4209
        %v4495 = vmul.f32 %v287, %v4211
        %v4496 = vmul.f32 %v288, %v4213
        %v4497 = vmul.f32 %v289, %v4215
        %v4498 = vmul.f32 %v290, %v4217
        %v4499 = vadd.f32 %v4487, %v4493
        %v4500 = vadd.f32 %v4488, %v4494
        %v4501 = vadd.f32 %v4489, %v4495
        %v4502 = vadd.f32 %v4490, %v4496
        %v4503 = vadd.f32 %v4491, %v4497
        %v4504 = vadd.f32 %v4492, %v4498
        %v4505 = vmul.f32 %v298, %v4236
        %v4506 = vmul.f32 %v299, %v4237
        %v4507 = vmul.f32 %v300, %v4239
        %v4508 = vmul.f32 %v301, %v4241
        %v4509 = vmul.f32 %v302, %v4243
        %v4510 = vmul.f32 %v303, %v4245
        %v4511 = vadd.f32 %v4499, %v4505
        %v4512 = vadd.f32 %v4500, %v4506
        %v4513 = vadd.f32 %v4501, %v4507
        %v4514 = vadd.f32 %v4502, %v4508
        %v4515 = vadd.f32 %v4503, %v4509
        %v4516 = vadd.f32 %v4504, %v4510
        %v4517 = vmul.f32 %v311, %v4264
        %v4518 = vmul.f32 %v312, %v4265
        %v4519 = vmul.f32 %v313, %v4267
        %v4520 = vmul.f32 %v314, %v4269
        %v4521 = vmul.f32 %v315, %v4271
        %v4522 = vmul.f32 %v316, %v4273
        %v4523 = vadd.f32 %v4511, %v4517
        %v4524 = vadd.f32 %v4512, %v4518
        %v4525 = vadd.f32 %v4513, %v4519
        %v4526 = vadd.f32 %v4514, %v4520
        %v4527 = vadd.f32 %v4515, %v4521
        %v4528 = vadd.f32 %v4516, %v4522
        %v4529 = vadd.f32 %v846, %v4292
        %v4530 = vadd.f32 %v847, %v4294
        %v4531 = vadd.f32 %v848, %v4293
        %v4532 = vpack.c.bf16 %v4525, %v4523
        %v4533 = vpack.c.bf16 %v4526, %v4524
        %v4534 = vpack.c.bf16 %v4527, %v4527
        %v4535 = vpack.c.bf16 %v4528, %v4528
        %v4536 = vunpack.c.l.bf16 %v4532
        %v4537 = vunpack.c.l.bf16 %v4533
        %v4538 = vunpack.c.h.bf16 %v4532
        %v4539 = vunpack.c.h.bf16 %v4533
        %v4540 = vunpack.c.l.bf16 %v4534
        %v4541 = vunpack.c.l.bf16 %v4535
        %v4542 = vsub.f32 %v4523, %v4536
        %v4543 = vsub.f32 %v4524, %v4537
        %v4544 = vsub.f32 %v4525, %v4538
        %v4545 = vsub.f32 %v4526, %v4539
        %v4546 = vsub.f32 %v4527, %v4540
        %v4547 = vsub.f32 %v4528, %v4541
        %v4548 = vpack.c.bf16 %v4544, %v4542
        %v4549 = vpack.c.bf16 %v4545, %v4543
        %v4550 = vpack.c.bf16 %v4546, %v4546
        %v4551 = vpack.c.bf16 %v4547, %v4547
        %v4556 = vrot.slane %v4548, 3
        %v4557 = vrot.slane %v4550, 3
        %v4558 = vsel %vm4325, %v4556, %v4557
        %v4559 = vrot.slane %v4549, 3
        %v4560 = vrot.slane %v4551, 3
        %v4561 = vsel %vm4325, %v4559, %v4560
        %4566 = vmatprep.subr.bf16.mxu0 0
        %4567 = vmatpush1.bf16.msra.mxu0 %v522
        %4568 = vmatprep.subr.bf16.mxu0 0
        %4569 = vmatpush1.bf16.msra.mxu0 %v521
        %4570 = vmatprep.subr.bf16.mxu0 0
        %4571 = vmatpush1.bf16.msra.mxu0 %v520
        %4572 = vmatprep.subr.bf16.mxu0 0
        %4573 = vmatpush1.bf16.msra.mxu0 %v519
        %4574 = vmatprep.subr.bf16.mxu0 0
        %4575 = vmatpush1.bf16.msra.mxu0 %v518
        %4576 = vmatprep.subr.bf16.mxu0 0
        %4577 = vmatpush1.bf16.msra.mxu0 %v517
        %4578 = vmatprep.subr.bf16.mxu0 0
        %4579 = vmatpush1.bf16.msra.mxu0 %v516
        %4580 = vmatprep.subr.bf16.mxu0 0
        %4581 = vmatpush1.bf16.msra.mxu0 %v515
        %4582 = vmatprep.subr.bf16.mxu0 0
        %4583 = vmatpush2.bf16.msra.mxu0 %v530
        %4584 = vmatprep.subr.bf16.mxu0 0
        %4585 = vmatpush2.bf16.msra.mxu0 %v529
        %4586 = vmatprep.subr.bf16.mxu0 0
        %4587 = vmatpush2.bf16.msra.mxu0 %v528
        %4588 = vmatprep.subr.bf16.mxu0 0
        %4589 = vmatpush2.bf16.msra.mxu0 %v527
        %4590 = vmatprep.subr.bf16.mxu0 0
        %4591 = vmatpush2.bf16.msra.mxu0 %v526
        %4592 = vmatprep.subr.bf16.mxu0 0
        %4593 = vmatpush2.bf16.msra.mxu0 %v525
        %4594 = vmatprep.subr.bf16.mxu0 0
        %4595 = vmatpush2.bf16.msra.mxu0 %v524
        %4596 = vmatprep.subr.bf16.mxu0 0
        %4597 = vmatpush2.bf16.msra.mxu0 %v523
        %4598 = vmatprep.mubr.bf16.mxu0 %v4561
        %4599 = vmatmul.mubr.bf16.gmra.mxu0 %v4558
        %v4600 = vpop.f32.mrf.mxu0
        %v4601 = vadd.f32 0.0, %v4600
        %v4602 = vpop.f32.mrf.mxu0
        %v4603 = vpop.f32.mrf.mxu0
        %v4604 = vadd.f32 0.0, %v4603
        %v4605 = vpop.f32.mrf.mxu0
        %4606 = vmatprep.mubr.bf16.mxu0 %v4560
        %4607 = vmatmul.mubr.bf16.gmra.mxu0 %v4557
        %v4608 = vpop.f32.mrf.mxu0
        %v4609 = vadd.f32 0.0, %v4608
        %v4610 = vpop.f32.mrf.mxu0
        %v4611 = vpop.f32.mrf.mxu0
        %v4612 = vpop.f32.mrf.mxu0
        %4613 = vdwg.mxu0
        %v4618 = vrot.slane %v4532, 3
        %v4619 = vrot.slane %v4534, 3
        %v4620 = vsel %vm4325, %v4618, %v4619
        %v4621 = vrot.slane %v4533, 3
        %v4622 = vrot.slane %v4535, 3
        %v4623 = vsel %vm4325, %v4621, %v4622
        %4628 = vmatprep.subr.bf16.mxu0 0
        %4629 = vmatpush1.bf16.msra.mxu0 %v522
        %4630 = vmatprep.subr.bf16.mxu0 0
        %4631 = vmatpush1.bf16.msra.mxu0 %v521
        %4632 = vmatprep.subr.bf16.mxu0 0
        %4633 = vmatpush1.bf16.msra.mxu0 %v520
        %4634 = vmatprep.subr.bf16.mxu0 0
        %4635 = vmatpush1.bf16.msra.mxu0 %v519
        %4636 = vmatprep.subr.bf16.mxu0 0
        %4637 = vmatpush1.bf16.msra.mxu0 %v518
        %4638 = vmatprep.subr.bf16.mxu0 0
        %4639 = vmatpush1.bf16.msra.mxu0 %v517
        %4640 = vmatprep.subr.bf16.mxu0 0
        %4641 = vmatpush1.bf16.msra.mxu0 %v516
        %4642 = vmatprep.subr.bf16.mxu0 0
        %4643 = vmatpush1.bf16.msra.mxu0 %v515
        %4644 = vmatprep.subr.bf16.mxu0 0
        %4645 = vmatpush2.bf16.msra.mxu0 %v530
        %4646 = vmatprep.subr.bf16.mxu0 0
        %4647 = vmatpush2.bf16.msra.mxu0 %v529
        %4648 = vmatprep.subr.bf16.mxu0 0
        %4649 = vmatpush2.bf16.msra.mxu0 %v528
        %4650 = vmatprep.subr.bf16.mxu0 0
        %4651 = vmatpush2.bf16.msra.mxu0 %v527
        %4652 = vmatprep.subr.bf16.mxu0 0
        %4653 = vmatpush2.bf16.msra.mxu0 %v526
        %4654 = vmatprep.subr.bf16.mxu0 0
        %4655 = vmatpush2.bf16.msra.mxu0 %v525
        %4656 = vmatprep.subr.bf16.mxu0 0
        %4657 = vmatpush2.bf16.msra.mxu0 %v524
        %4658 = vmatprep.subr.bf16.mxu0 0
        %4659 = vmatpush2.bf16.msra.mxu0 %v523
        %4660 = vmatprep.mubr.bf16.mxu0 %v4623
        %4661 = vmatmul.mubr.bf16.gmra.mxu0 %v4620
        %v4662 = vpop.f32.mrf.mxu0
        %v4663 = vadd.f32 %v4601, %v4662
        %v4664 = vpop.f32.mrf.mxu0
        %v4665 = vpop.f32.mrf.mxu0
        %v4666 = vadd.f32 %v4604, %v4665
        %v4667 = vpop.f32.mrf.mxu0
        %4668 = vmatprep.mubr.bf16.mxu0 %v4622
        %4669 = vmatmul.mubr.bf16.gmra.mxu0 %v4619
        %v4670 = vpop.f32.mrf.mxu0
        %v4671 = vadd.f32 %v4609, %v4670
        %v4672 = vpop.f32.mrf.mxu0
        %v4673 = vpop.f32.mrf.mxu0
        %v4674 = vpop.f32.mrf.mxu0
        %4675 = vdwg.mxu0
        %v4679 = vrot.slane %v4663, 1
        %v4680 = vrot.slane %v4666, 1
        %v4681 = vsel %vm646, %v4679, %v4680
        %v4682 = vrot.slane %v4671, 1
        %v4683 = vsel %vm646, %v4680, %v4682
        %v4686 = vadd.f32 %v4663, %v4681
        %v4687 = vadd.f32 %v4666, %v4683
        %v4688 = vrot.slane %v4663, 2
        %v4689 = vrot.slane %v4666, 2
        %v4690 = vsel %vm656, %v4688, %v4689
        %v4691 = vrot.slane %v4671, 2
        %v4692 = vsel %vm656, %v4689, %v4691
        %v4695 = vadd.f32 %v4686, %v4690
        %v4696 = vadd.f32 %v4687, %v4692
        %v4697 = vmul.f32 %v4695, 2.0
        %v4698 = vmul.f32 %v4696, 2.0
        %v4701 = vrot.slane %v4697, 2
        %v4702 = vrot.slane %v4698, 2
        %v4703 = vsel %vm656, %v4701, %v4702
        %v4707 = vsub.f32 %v4529, %v4701
        %v4708 = vsub.f32 %v4530, %v4703
        %v4709 = vsub.f32 %v4531, %v4702
        %v4710 = vmax.f32 %v4707, 0.0
        %v4711 = vmax.f32 %v4708, 0.0
        %v4712 = vmax.f32 %v4709, 0.0
        %s4713 = scalar_lea.vmem %s192, 224 [#allocation2]
        %4714 = vst [vmem:[%s4713 - $0x6] sm:$0xc0] %v4710
        %4715 = vst [vmem:[%s4713 + $0x2] sm:$0xff] %v4711
        %4716 = vst [vmem:[%s4713 + $0xa] sm:$0x3f] %v4712
        %v4717 = vrot.slane %v238, 1
        %v4718 = vrot.slane %v239, 1
        %v4719 = vrot.slane %v240, 1
        %v4720 = vsel %vm646, %v4717, %v4719
        %v4721 = vrot.slane %v241, 1
        %v4722 = vsel %vm646, %v4718, %v4721
        %v4723 = vrot.slane %v242, 1
        %v4724 = vsel %vm646, %v4719, %v4723
        %v4725 = vrot.slane %v243, 1
        %v4726 = vsel %vm646, %v4721, %v4725
        %v4735 = vmul.f32 %v270, %v4717
        %v4736 = vmul.f32 %v271, %v4718
        %v4737 = vmul.f32 %v272, %v4720
        %v4738 = vmul.f32 %v273, %v4722
        %v4739 = vmul.f32 %v274, %v4724
        %v4740 = vmul.f32 %v275, %v4726
        %v4741 = vmul.f32 %v276, %v4723
        %v4742 = vmul.f32 %v277, %v4725
        %v4743 = vrot.slane %v245, 1
        %v4744 = vrot.slane %v246, 1
        %v4745 = vrot.slane %v247, 1
        %v4746 = vsel %vm646, %v4743, %v4745
        %v4747 = vrot.slane %v248, 1
        %v4748 = vsel %vm646, %v4744, %v4747
        %v4749 = vrot.slane %v249, 1
        %v4750 = vsel %vm646, %v4745, %v4749
        %v4751 = vrot.slane %v250, 1
        %v4752 = vsel %vm646, %v4747, %v4751
        %v4761 = vmul.f32 %v283, %v4743
        %v4762 = vmul.f32 %v284, %v4744
        %v4763 = vmul.f32 %v285, %v4746
        %v4764 = vmul.f32 %v286, %v4748
        %v4765 = vmul.f32 %v287, %v4750
        %v4766 = vmul.f32 %v288, %v4752
        %v4767 = vmul.f32 %v289, %v4749
        %v4768 = vmul.f32 %v290, %v4751
        %v4769 = vadd.f32 %v4735, %v4761
        %v4770 = vadd.f32 %v4736, %v4762
        %v4771 = vadd.f32 %v4737, %v4763
        %v4772 = vadd.f32 %v4738, %v4764
        %v4773 = vadd.f32 %v4739, %v4765
        %v4774 = vadd.f32 %v4740, %v4766
        %v4775 = vadd.f32 %v4741, %v4767
        %v4776 = vadd.f32 %v4742, %v4768
        %v4777 = vrot.slane %v252, 1
        %v4778 = vrot.slane %v253, 1
        %v4779 = vrot.slane %v254, 1
        %v4780 = vsel %vm646, %v4777, %v4779
        %v4781 = vrot.slane %v255, 1
        %v4782 = vsel %vm646, %v4778, %v4781
        %v4783 = vrot.slane %v256, 1
        %v4784 = vsel %vm646, %v4779, %v4783
        %v4785 = vrot.slane %v257, 1
        %v4786 = vsel %vm646, %v4781, %v4785
        %v4795 = vmul.f32 %v296, %v4777
        %v4796 = vmul.f32 %v297, %v4778
        %v4797 = vmul.f32 %v298, %v4780
        %v4798 = vmul.f32 %v299, %v4782
        %v4799 = vmul.f32 %v300, %v4784
        %v4800 = vmul.f32 %v301, %v4786
        %v4801 = vmul.f32 %v302, %v4783
        %v4802 = vmul.f32 %v303, %v4785
        %v4803 = vadd.f32 %v4769, %v4795
        %v4804 = vadd.f32 %v4770, %v4796
        %v4805 = vadd.f32 %v4771, %v4797
        %v4806 = vadd.f32 %v4772, %v4798
        %v4807 = vadd.f32 %v4773, %v4799
        %v4808 = vadd.f32 %v4774, %v4800
        %v4809 = vadd.f32 %v4775, %v4801
        %v4810 = vadd.f32 %v4776, %v4802
        %v4811 = vrot.slane %v259, 1
        %v4812 = vrot.slane %v260, 1
        %v4813 = vrot.slane %v261, 1
        %v4814 = vsel %vm646, %v4811, %v4813
        %v4815 = vrot.slane %v262, 1
        %v4816 = vsel %vm646, %v4812, %v4815
        %v4817 = vrot.slane %v263, 1
        %v4818 = vsel %vm646, %v4813, %v4817
        %v4819 = vrot.slane %v264, 1
        %v4820 = vsel %vm646, %v4815, %v4819
        %v4829 = vmul.f32 %v309, %v4811
        %v4830 = vmul.f32 %v310, %v4812
        %v4831 = vmul.f32 %v311, %v4814
        %v4832 = vmul.f32 %v312, %v4816
        %v4833 = vmul.f32 %v313, %v4818
        %v4834 = vmul.f32 %v314, %v4820
        %v4835 = vmul.f32 %v315, %v4817
        %v4836 = vmul.f32 %v316, %v4819
        %v4837 = vadd.f32 %v4803, %v4829
        %v4838 = vadd.f32 %v4804, %v4830
        %v4839 = vadd.f32 %v4805, %v4831
        %v4840 = vadd.f32 %v4806, %v4832
        %v4841 = vadd.f32 %v4807, %v4833
        %v4842 = vadd.f32 %v4808, %v4834
        %v4843 = vadd.f32 %v4809, %v4835
        %v4844 = vadd.f32 %v4810, %v4836
        %v4845 = vrot.slane %v664, 1
        %v4846 = vrot.slane %v665, 1
        %v4847 = vsel %vm646, %v4845, %v4846
        %v4851 = vadd.f32 %v845, %v4845
        %v4852 = vadd.f32 %v846, %v4847
        %v4853 = vadd.f32 %v847, %v4846
        %v4854 = vpack.c.bf16 %v4839, %v4837
        %v4855 = vpack.c.bf16 %v4840, %v4838
        %v4856 = vpack.c.bf16 %v4843, %v4841
        %v4857 = vpack.c.bf16 %v4844, %v4842
        %v4858 = vunpack.c.l.bf16 %v4854
        %v4859 = vunpack.c.l.bf16 %v4855
        %v4860 = vunpack.c.h.bf16 %v4854
        %v4861 = vunpack.c.h.bf16 %v4855
        %v4862 = vunpack.c.l.bf16 %v4856
        %v4863 = vunpack.c.l.bf16 %v4857
        %v4864 = vunpack.c.h.bf16 %v4856
        %v4865 = vunpack.c.h.bf16 %v4857
        %v4866 = vsub.f32 %v4837, %v4858
        %v4867 = vsub.f32 %v4838, %v4859
        %v4868 = vsub.f32 %v4839, %v4860
        %v4869 = vsub.f32 %v4840, %v4861
        %v4870 = vsub.f32 %v4841, %v4862
        %v4871 = vsub.f32 %v4842, %v4863
        %v4872 = vsub.f32 %v4843, %v4864
        %v4873 = vsub.f32 %v4844, %v4865
        %v4874 = vpack.c.bf16 %v4868, %v4866
        %v4875 = vpack.c.bf16 %v4869, %v4867
        %v4876 = vpack.c.bf16 %v4872, %v4870
        %v4877 = vpack.c.bf16 %v4873, %v4871
        %vm4878 = vsmask.f32 4352
        %v4880 = vshrl.u32 %v4874, 16
        %v4882 = vrot.slane %v4880, 3
        %v4883 = vshll.u32 %v4874, 16
        %v4885 = vrot.slane %v4883, 4
        %v4886 = vor.u32 %v4882, %v4885
        %v4888 = vshrl.u32 %v4876, 16
        %v4890 = vrot.slane %v4888, 3
        %v4891 = vshll.u32 %v4876, 16
        %v4893 = vrot.slane %v4891, 4
        %v4894 = vor.u32 %v4890, %v4893
        %v4895 = vsel %vm4878, %v4886, %v4894
        %v4897 = vshrl.u32 %v4875, 16
        %v4899 = vrot.slane %v4897, 3
        %v4900 = vshll.u32 %v4875, 16
        %v4902 = vrot.slane %v4900, 4
        %v4903 = vor.u32 %v4899, %v4902
        %v4905 = vshrl.u32 %v4877, 16
        %v4907 = vrot.slane %v4905, 3
        %v4908 = vshll.u32 %v4877, 16
        %v4910 = vrot.slane %v4908, 4
        %v4911 = vor.u32 %v4907, %v4910
        %v4912 = vsel %vm4878, %v4903, %v4911
        %4917 = vmatprep.subr.bf16.mxu0 0
        %4918 = vmatpush1.bf16.msra.mxu0 %v522
        %4919 = vmatprep.subr.bf16.mxu0 0
        %4920 = vmatpush1.bf16.msra.mxu0 %v521
        %4921 = vmatprep.subr.bf16.mxu0 0
        %4922 = vmatpush1.bf16.msra.mxu0 %v520
        %4923 = vmatprep.subr.bf16.mxu0 0
        %4924 = vmatpush1.bf16.msra.mxu0 %v519
        %4925 = vmatprep.subr.bf16.mxu0 0
        %4926 = vmatpush1.bf16.msra.mxu0 %v518
        %4927 = vmatprep.subr.bf16.mxu0 0
        %4928 = vmatpush1.bf16.msra.mxu0 %v517
        %4929 = vmatprep.subr.bf16.mxu0 0
        %4930 = vmatpush1.bf16.msra.mxu0 %v516
        %4931 = vmatprep.subr.bf16.mxu0 0
        %4932 = vmatpush1.bf16.msra.mxu0 %v515
        %4933 = vmatprep.subr.bf16.mxu0 0
        %4934 = vmatpush2.bf16.msra.mxu0 %v530
        %4935 = vmatprep.subr.bf16.mxu0 0
        %4936 = vmatpush2.bf16.msra.mxu0 %v529
        %4937 = vmatprep.subr.bf16.mxu0 0
        %4938 = vmatpush2.bf16.msra.mxu0 %v528
        %4939 = vmatprep.subr.bf16.mxu0 0
        %4940 = vmatpush2.bf16.msra.mxu0 %v527
        %4941 = vmatprep.subr.bf16.mxu0 0
        %4942 = vmatpush2.bf16.msra.mxu0 %v526
        %4943 = vmatprep.subr.bf16.mxu0 0
        %4944 = vmatpush2.bf16.msra.mxu0 %v525
        %4945 = vmatprep.subr.bf16.mxu0 0
        %4946 = vmatpush2.bf16.msra.mxu0 %v524
        %4947 = vmatprep.subr.bf16.mxu0 0
        %4948 = vmatpush2.bf16.msra.mxu0 %v523
        %4949 = vmatprep.mubr.bf16.mxu0 %v4912
        %4950 = vmatmul.mubr.bf16.gmra.mxu0 %v4895
        %v4951 = vpop.f32.mrf.mxu0
        %v4952 = vadd.f32 0.0, %v4951
        %v4953 = vpop.f32.mrf.mxu0
        %v4954 = vpop.f32.mrf.mxu0
        %v4955 = vadd.f32 0.0, %v4954
        %v4956 = vpop.f32.mrf.mxu0
        %4957 = vmatprep.mubr.bf16.mxu0 %v4911
        %4958 = vmatmul.mubr.bf16.gmra.mxu0 %v4894
        %v4959 = vpop.f32.mrf.mxu0
        %v4960 = vadd.f32 0.0, %v4959
        %v4961 = vpop.f32.mrf.mxu0
        %v4962 = vpop.f32.mrf.mxu0
        %v4963 = vpop.f32.mrf.mxu0
        %4964 = vdwg.mxu0
        %v4966 = vshrl.u32 %v4854, 16
        %v4968 = vrot.slane %v4966, 3
        %v4969 = vshll.u32 %v4854, 16
        %v4971 = vrot.slane %v4969, 4
        %v4972 = vor.u32 %v4968, %v4971
        %v4974 = vshrl.u32 %v4856, 16
        %v4976 = vrot.slane %v4974, 3
        %v4977 = vshll.u32 %v4856, 16
        %v4979 = vrot.slane %v4977, 4
        %v4980 = vor.u32 %v4976, %v4979
        %v4981 = vsel %vm4878, %v4972, %v4980
        %v4983 = vshrl.u32 %v4855, 16
        %v4985 = vrot.slane %v4983, 3
        %v4986 = vshll.u32 %v4855, 16
        %v4988 = vrot.slane %v4986, 4
        %v4989 = vor.u32 %v4985, %v4988
        %v4991 = vshrl.u32 %v4857, 16
        %v4993 = vrot.slane %v4991, 3
        %v4994 = vshll.u32 %v4857, 16
        %v4996 = vrot.slane %v4994, 4
        %v4997 = vor.u32 %v4993, %v4996
        %v4998 = vsel %vm4878, %v4989, %v4997
        %5003 = vmatprep.subr.bf16.mxu0 0
        %5004 = vmatpush1.bf16.msra.mxu0 %v522
        %5005 = vmatprep.subr.bf16.mxu0 0
        %5006 = vmatpush1.bf16.msra.mxu0 %v521
        %5007 = vmatprep.subr.bf16.mxu0 0
        %5008 = vmatpush1.bf16.msra.mxu0 %v520
        %5009 = vmatprep.subr.bf16.mxu0 0
        %5010 = vmatpush1.bf16.msra.mxu0 %v519
        %5011 = vmatprep.subr.bf16.mxu0 0
        %5012 = vmatpush1.bf16.msra.mxu0 %v518
        %5013 = vmatprep.subr.bf16.mxu0 0
        %5014 = vmatpush1.bf16.msra.mxu0 %v517
        %5015 = vmatprep.subr.bf16.mxu0 0
        %5016 = vmatpush1.bf16.msra.mxu0 %v516
        %5017 = vmatprep.subr.bf16.mxu0 0
        %5018 = vmatpush1.bf16.msra.mxu0 %v515
        %5019 = vmatprep.subr.bf16.mxu0 0
        %5020 = vmatpush2.bf16.msra.mxu0 %v530
        %5021 = vmatprep.subr.bf16.mxu0 0
        %5022 = vmatpush2.bf16.msra.mxu0 %v529
        %5023 = vmatprep.subr.bf16.mxu0 0
        %5024 = vmatpush2.bf16.msra.mxu0 %v528
        %5025 = vmatprep.subr.bf16.mxu0 0
        %5026 = vmatpush2.bf16.msra.mxu0 %v527
        %5027 = vmatprep.subr.bf16.mxu0 0
        %5028 = vmatpush2.bf16.msra.mxu0 %v526
        %5029 = vmatprep.subr.bf16.mxu0 0
        %5030 = vmatpush2.bf16.msra.mxu0 %v525
        %5031 = vmatprep.subr.bf16.mxu0 0
        %5032 = vmatpush2.bf16.msra.mxu0 %v524
        %5033 = vmatprep.subr.bf16.mxu0 0
        %5034 = vmatpush2.bf16.msra.mxu0 %v523
        %5035 = vmatprep.mubr.bf16.mxu0 %v4998
        %5036 = vmatmul.mubr.bf16.gmra.mxu0 %v4981
        %v5037 = vpop.f32.mrf.mxu0
        %v5038 = vadd.f32 %v4952, %v5037
        %v5039 = vpop.f32.mrf.mxu0
        %v5040 = vpop.f32.mrf.mxu0
        %v5041 = vadd.f32 %v4955, %v5040
        %v5042 = vpop.f32.mrf.mxu0
        %5043 = vmatprep.mubr.bf16.mxu0 %v4997
        %5044 = vmatmul.mubr.bf16.gmra.mxu0 %v4980
        %v5045 = vpop.f32.mrf.mxu0
        %v5046 = vadd.f32 %v4960, %v5045
        %v5047 = vpop.f32.mrf.mxu0
        %v5048 = vpop.f32.mrf.mxu0
        %v5049 = vpop.f32.mrf.mxu0
        %5050 = vdwg.mxu0
        %v5054 = vrot.slane %v5038, 1
        %v5055 = vrot.slane %v5041, 1
        %v5056 = vsel %vm646, %v5054, %v5055
        %v5057 = vrot.slane %v5046, 1
        %v5058 = vsel %vm646, %v5055, %v5057
        %v5061 = vadd.f32 %v5038, %v5056
        %v5062 = vadd.f32 %v5041, %v5058
        %v5063 = vrot.slane %v5038, 2
        %v5064 = vrot.slane %v5041, 2
        %v5065 = vsel %vm656, %v5063, %v5064
        %v5066 = vrot.slane %v5046, 2
        %v5067 = vsel %vm656, %v5064, %v5066
        %v5070 = vadd.f32 %v5061, %v5065
        %v5071 = vadd.f32 %v5062, %v5067
        %v5072 = vmul.f32 %v5070, 2.0
        %v5073 = vmul.f32 %v5071, 2.0
        %v5076 = vrot.slane %v5072, 1
        %v5077 = vrot.slane %v5073, 1
        %v5078 = vsel %vm646, %v5076, %v5077
        %v5082 = vsub.f32 %v4851, %v5076
        %v5083 = vsub.f32 %v4852, %v5078
        %v5084 = vsub.f32 %v4853, %v5077
        %v5085 = vmax.f32 %v5082, 0.0
        %v5086 = vmax.f32 %v5083, 0.0
        %v5087 = vmax.f32 %v5084, 0.0
        %s5088 = scalar_lea.vmem %s192, 112 [#allocation2]
        %5089 = vst [vmem:[%s5088 - $0x7] sm:$0x80] %v5085
        %5090 = vst [vmem:[%s5088 + $0x1] sm:$0xff] %v5086
        %5091 = vst [vmem:[%s5088 + $0x9] sm:$0x7f] %v5087
        %v5092 = vmul.f32 %v272, %v4717
        %v5093 = vmul.f32 %v273, %v4718
        %v5094 = vmul.f32 %v274, %v4720
        %v5095 = vmul.f32 %v275, %v4722
        %v5096 = vmul.f32 %v276, %v4724
        %v5097 = vmul.f32 %v277, %v4726
        %v5098 = vmul.f32 %v278, %v4723
        %v5099 = vmul.f32 %v279, %v4725
        %v5100 = vmul.f32 %v285, %v4743
        %v5101 = vmul.f32 %v286, %v4744
        %v5102 = vmul.f32 %v287, %v4746
        %v5103 = vmul.f32 %v288, %v4748
        %v5104 = vmul.f32 %v289, %v4750
        %v5105 = vmul.f32 %v290, %v4752
        %v5106 = vmul.f32 %v291, %v4749
        %v5107 = vmul.f32 %v292, %v4751
        %v5108 = vadd.f32 %v5092, %v5100
        %v5109 = vadd.f32 %v5093, %v5101
        %v5110 = vadd.f32 %v5094, %v5102
        %v5111 = vadd.f32 %v5095, %v5103
        %v5112 = vadd.f32 %v5096, %v5104
        %v5113 = vadd.f32 %v5097, %v5105
        %v5114 = vadd.f32 %v5098, %v5106
        %v5115 = vadd.f32 %v5099, %v5107
        %v5116 = vmul.f32 %v298, %v4777
        %v5117 = vmul.f32 %v299, %v4778
        %v5118 = vmul.f32 %v300, %v4780
        %v5119 = vmul.f32 %v301, %v4782
        %v5120 = vmul.f32 %v302, %v4784
        %v5121 = vmul.f32 %v303, %v4786
        %v5122 = vmul.f32 %v304, %v4783
        %v5123 = vmul.f32 %v305, %v4785
        %v5124 = vadd.f32 %v5108, %v5116
        %v5125 = vadd.f32 %v5109, %v5117
        %v5126 = vadd.f32 %v5110, %v5118
        %v5127 = vadd.f32 %v5111, %v5119
        %v5128 = vadd.f32 %v5112, %v5120
        %v5129 = vadd.f32 %v5113, %v5121
        %v5130 = vadd.f32 %v5114, %v5122
        %v5131 = vadd.f32 %v5115, %v5123
        %v5132 = vmul.f32 %v311, %v4811
        %v5133 = vmul.f32 %v312, %v4812
        %v5134 = vmul.f32 %v313, %v4814
        %v5135 = vmul.f32 %v314, %v4816
        %v5136 = vmul.f32 %v315, %v4818
        %v5137 = vmul.f32 %v316, %v4820
        %v5138 = vmul.f32 %v317, %v4817
        %v5139 = vmul.f32 %v318, %v4819
        %v5140 = vadd.f32 %v5124, %v5132
        %v5141 = vadd.f32 %v5125, %v5133
        %v5142 = vadd.f32 %v5126, %v5134
        %v5143 = vadd.f32 %v5127, %v5135
        %v5144 = vadd.f32 %v5128, %v5136
        %v5145 = vadd.f32 %v5129, %v5137
        %v5146 = vadd.f32 %v5130, %v5138
        %v5147 = vadd.f32 %v5131, %v5139
        %v5148 = vadd.f32 %v846, %v4845
        %v5149 = vadd.f32 %v847, %v4847
        %v5150 = vadd.f32 %v848, %v4846
        %v5151 = vpack.c.bf16 %v5142, %v5140
        %v5152 = vpack.c.bf16 %v5143, %v5141
        %v5153 = vpack.c.bf16 %v5146, %v5144
        %v5154 = vpack.c.bf16 %v5147, %v5145
        %v5155 = vunpack.c.l.bf16 %v5151
        %v5156 = vunpack.c.l.bf16 %v5152
        %v5157 = vunpack.c.h.bf16 %v5151
        %v5158 = vunpack.c.h.bf16 %v5152
        %v5159 = vunpack.c.l.bf16 %v5153
        %v5160 = vunpack.c.l.bf16 %v5154
        %v5161 = vunpack.c.h.bf16 %v5153
        %v5162 = vunpack.c.h.bf16 %v5154
        %v5163 = vsub.f32 %v5140, %v5155
        %v5164 = vsub.f32 %v5141, %v5156
        %v5165 = vsub.f32 %v5142, %v5157
        %v5166 = vsub.f32 %v5143, %v5158
        %v5167 = vsub.f32 %v5144, %v5159
        %v5168 = vsub.f32 %v5145, %v5160
        %v5169 = vsub.f32 %v5146, %v5161
        %v5170 = vsub.f32 %v5147, %v5162
        %v5171 = vpack.c.bf16 %v5165, %v5163
        %v5172 = vpack.c.bf16 %v5166, %v5164
        %v5173 = vpack.c.bf16 %v5169, %v5167
        %v5174 = vpack.c.bf16 %v5170, %v5168
        %v5176 = vshrl.u32 %v5171, 16
        %v5178 = vrot.slane %v5176, 3
        %v5179 = vshll.u32 %v5171, 16
        %v5181 = vrot.slane %v5179, 4
        %v5182 = vor.u32 %v5178, %v5181
        %v5184 = vshrl.u32 %v5173, 16
        %v5186 = vrot.slane %v5184, 3
        %v5187 = vshll.u32 %v5173, 16
        %v5189 = vrot.slane %v5187, 4
        %v5190 = vor.u32 %v5186, %v5189
        %v5191 = vsel %vm4878, %v5182, %v5190
        %v5193 = vshrl.u32 %v5172, 16
        %v5195 = vrot.slane %v5193, 3
        %v5196 = vshll.u32 %v5172, 16
        %v5198 = vrot.slane %v5196, 4
        %v5199 = vor.u32 %v5195, %v5198
        %v5201 = vshrl.u32 %v5174, 16
        %v5203 = vrot.slane %v5201, 3
        %v5204 = vshll.u32 %v5174, 16
        %v5206 = vrot.slane %v5204, 4
        %v5207 = vor.u32 %v5203, %v5206
        %v5208 = vsel %vm4878, %v5199, %v5207
        %5213 = vmatprep.subr.bf16.mxu0 0
        %5214 = vmatpush1.bf16.msra.mxu0 %v522
        %5215 = vmatprep.subr.bf16.mxu0 0
        %5216 = vmatpush1.bf16.msra.mxu0 %v521
        %5217 = vmatprep.subr.bf16.mxu0 0
        %5218 = vmatpush1.bf16.msra.mxu0 %v520
        %5219 = vmatprep.subr.bf16.mxu0 0
        %5220 = vmatpush1.bf16.msra.mxu0 %v519
        %5221 = vmatprep.subr.bf16.mxu0 0
        %5222 = vmatpush1.bf16.msra.mxu0 %v518
        %5223 = vmatprep.subr.bf16.mxu0 0
        %5224 = vmatpush1.bf16.msra.mxu0 %v517
        %5225 = vmatprep.subr.bf16.mxu0 0
        %5226 = vmatpush1.bf16.msra.mxu0 %v516
        %5227 = vmatprep.subr.bf16.mxu0 0
        %5228 = vmatpush1.bf16.msra.mxu0 %v515
        %5229 = vmatprep.subr.bf16.mxu0 0
        %5230 = vmatpush2.bf16.msra.mxu0 %v530
        %5231 = vmatprep.subr.bf16.mxu0 0
        %5232 = vmatpush2.bf16.msra.mxu0 %v529
        %5233 = vmatprep.subr.bf16.mxu0 0
        %5234 = vmatpush2.bf16.msra.mxu0 %v528
        %5235 = vmatprep.subr.bf16.mxu0 0
        %5236 = vmatpush2.bf16.msra.mxu0 %v527
        %5237 = vmatprep.subr.bf16.mxu0 0
        %5238 = vmatpush2.bf16.msra.mxu0 %v526
        %5239 = vmatprep.subr.bf16.mxu0 0
        %5240 = vmatpush2.bf16.msra.mxu0 %v525
        %5241 = vmatprep.subr.bf16.mxu0 0
        %5242 = vmatpush2.bf16.msra.mxu0 %v524
        %5243 = vmatprep.subr.bf16.mxu0 0
        %5244 = vmatpush2.bf16.msra.mxu0 %v523
        %5245 = vmatprep.mubr.bf16.mxu0 %v5208
        %5246 = vmatmul.mubr.bf16.gmra.mxu0 %v5191
        %v5247 = vpop.f32.mrf.mxu0
        %v5248 = vadd.f32 0.0, %v5247
        %v5249 = vpop.f32.mrf.mxu0
        %v5250 = vpop.f32.mrf.mxu0
        %v5251 = vadd.f32 0.0, %v5250
        %v5252 = vpop.f32.mrf.mxu0
        %5253 = vmatprep.mubr.bf16.mxu0 %v5207
        %5254 = vmatmul.mubr.bf16.gmra.mxu0 %v5190
        %v5255 = vpop.f32.mrf.mxu0
        %v5256 = vadd.f32 0.0, %v5255
        %v5257 = vpop.f32.mrf.mxu0
        %v5258 = vpop.f32.mrf.mxu0
        %v5259 = vpop.f32.mrf.mxu0
        %5260 = vdwg.mxu0
        %v5262 = vshrl.u32 %v5151, 16
        %v5264 = vrot.slane %v5262, 3
        %v5265 = vshll.u32 %v5151, 16
        %v5267 = vrot.slane %v5265, 4
        %v5268 = vor.u32 %v5264, %v5267
        %v5270 = vshrl.u32 %v5153, 16
        %v5272 = vrot.slane %v5270, 3
        %v5273 = vshll.u32 %v5153, 16
        %v5275 = vrot.slane %v5273, 4
        %v5276 = vor.u32 %v5272, %v5275
        %v5277 = vsel %vm4878, %v5268, %v5276
        %v5279 = vshrl.u32 %v5152, 16
        %v5281 = vrot.slane %v5279, 3
        %v5282 = vshll.u32 %v5152, 16
        %v5284 = vrot.slane %v5282, 4
        %v5285 = vor.u32 %v5281, %v5284
        %v5287 = vshrl.u32 %v5154, 16
        %v5289 = vrot.slane %v5287, 3
        %v5290 = vshll.u32 %v5154, 16
        %v5292 = vrot.slane %v5290, 4
        %v5293 = vor.u32 %v5289, %v5292
        %v5294 = vsel %vm4878, %v5285, %v5293
        %5299 = vmatprep.subr.bf16.mxu0 0
        %5300 = vmatpush1.bf16.msra.mxu0 %v522
        %5301 = vmatprep.subr.bf16.mxu0 0
        %5302 = vmatpush1.bf16.msra.mxu0 %v521
        %5303 = vmatprep.subr.bf16.mxu0 0
        %5304 = vmatpush1.bf16.msra.mxu0 %v520
        %5305 = vmatprep.subr.bf16.mxu0 0
        %5306 = vmatpush1.bf16.msra.mxu0 %v519
        %5307 = vmatprep.subr.bf16.mxu0 0
        %5308 = vmatpush1.bf16.msra.mxu0 %v518
        %5309 = vmatprep.subr.bf16.mxu0 0
        %5310 = vmatpush1.bf16.msra.mxu0 %v517
        %5311 = vmatprep.subr.bf16.mxu0 0
        %5312 = vmatpush1.bf16.msra.mxu0 %v516
        %5313 = vmatprep.subr.bf16.mxu0 0
        %5314 = vmatpush1.bf16.msra.mxu0 %v515
        %5315 = vmatprep.subr.bf16.mxu0 0
        %5316 = vmatpush2.bf16.msra.mxu0 %v530
        %5317 = vmatprep.subr.bf16.mxu0 0
        %5318 = vmatpush2.bf16.msra.mxu0 %v529
        %5319 = vmatprep.subr.bf16.mxu0 0
        %5320 = vmatpush2.bf16.msra.mxu0 %v528
        %5321 = vmatprep.subr.bf16.mxu0 0
        %5322 = vmatpush2.bf16.msra.mxu0 %v527
        %5323 = vmatprep.subr.bf16.mxu0 0
        %5324 = vmatpush2.bf16.msra.mxu0 %v526
        %5325 = vmatprep.subr.bf16.mxu0 0
        %5326 = vmatpush2.bf16.msra.mxu0 %v525
        %5327 = vmatprep.subr.bf16.mxu0 0
        %5328 = vmatpush2.bf16.msra.mxu0 %v524
        %5329 = vmatprep.subr.bf16.mxu0 0
        %5330 = vmatpush2.bf16.msra.mxu0 %v523
        %5331 = vmatprep.mubr.bf16.mxu0 %v5294
        %5332 = vmatmul.mubr.bf16.gmra.mxu0 %v5277
        %v5333 = vpop.f32.mrf.mxu0
        %v5334 = vadd.f32 %v5248, %v5333
        %v5335 = vpop.f32.mrf.mxu0
        %v5336 = vpop.f32.mrf.mxu0
        %v5337 = vadd.f32 %v5251, %v5336
        %v5338 = vpop.f32.mrf.mxu0
        %5339 = vmatprep.mubr.bf16.mxu0 %v5293
        %5340 = vmatmul.mubr.bf16.gmra.mxu0 %v5276
        %v5341 = vpop.f32.mrf.mxu0
        %v5342 = vadd.f32 %v5256, %v5341
        %v5343 = vpop.f32.mrf.mxu0
        %v5344 = vpop.f32.mrf.mxu0
        %v5345 = vpop.f32.mrf.mxu0
        %5346 = vdwg.mxu0
        %v5350 = vrot.slane %v5334, 1
        %v5351 = vrot.slane %v5337, 1
        %v5352 = vsel %vm646, %v5350, %v5351
        %v5353 = vrot.slane %v5342, 1
        %v5354 = vsel %vm646, %v5351, %v5353
        %v5357 = vadd.f32 %v5334, %v5352
        %v5358 = vadd.f32 %v5337, %v5354
        %v5359 = vrot.slane %v5334, 2
        %v5360 = vrot.slane %v5337, 2
        %v5361 = vsel %vm656, %v5359, %v5360
        %v5362 = vrot.slane %v5342, 2
        %v5363 = vsel %vm656, %v5360, %v5362
        %v5366 = vadd.f32 %v5357, %v5361
        %v5367 = vadd.f32 %v5358, %v5363
        %v5368 = vmul.f32 %v5366, 2.0
        %v5369 = vmul.f32 %v5367, 2.0
        %v5372 = vrot.slane %v5368, 1
        %v5373 = vrot.slane %v5369, 1
        %v5374 = vsel %vm646, %v5372, %v5373
        %v5378 = vsub.f32 %v5148, %v5372
        %v5379 = vsub.f32 %v5149, %v5374
        %v5380 = vsub.f32 %v5150, %v5373
        %v5381 = vmax.f32 %v5378, 0.0
        %v5382 = vmax.f32 %v5379, 0.0
        %v5383 = vmax.f32 %v5380, 0.0
        %s5384 = scalar_lea.vmem %s192, 240 [#allocation2]
        %5385 = vst [vmem:[%s5384 - $0x7] sm:$0x80] %v5381
        %5386 = vst [vmem:[%s5384 + $0x1] sm:$0xff] %v5382
        %5387 = vst [vmem:[%s5384 + $0x9] sm:$0x7f] %v5383
        %s5388 = sand.u32 %s112, 1
        %s5389 = scalar_lea.sflag [#allocation3], %s5388
        %s5390 = sand.u32 %s112, 1
        %s5391 = smul.addr %s5390, 256
        %s5392 = scalar_lea.vmem [#allocation2], %s5391
        // Predicated region
        $region33: #{tpu_custom_call.1} parent=31 // pred_check
          %p5393 = pneg %p122
        $region34: #{tpu_custom_call.1} parent=31 // pred_check_branch
          %5395 = sbr.rel (%p5393) target = $region36
        $region35: #{tpu_custom_call.1} parent=31 // pred_region
          %s5396 = smul.u32 16, %s22
          %s5398 = ssub.s32 4096, 4096
          %5399 = vsyncadd %s5389, %s5398
          %s5400 = smul.addr %s5396, 2
          %s5401 = smul.addr %s21, 32
          %s5402 = sadd.s32 %s5400, %s5401
          %s5403 = smul.addr %s5402, 128
          %s5404 = scalar_lea.hbm %s3, %s5403
          %s5405 = sshll.u32 %s5392, 4
          %s5406 = int_to_ptr.vmem [resolvable:$true] %s5405
          %5411 = dma.vmem_to_hbm [thread:$0]  %s5406, 4096, %s5404, %s5389, 128, 128, 8
        $region36: #{tpu_custom_call.1} parent=31 // pred_fallthru
          _
      $region32: #{tpu_custom_call.1} parent=5 // pred_fallthru
        _
      %p5412 = scmp.le.s32.totalorder 2, %s12
      // Predicated region
      $region37: #{tpu_custom_call.1} parent=5 // pred_check
        %p5413 = pneg %p5412
      $region38: #{tpu_custom_call.1} parent=5 // pred_check_branch
        %5415 = sbr.rel (%p5413) target = $region40
      $region39: #{tpu_custom_call.1} parent=5 // pred_region
        %s5416 = ssub.s32 %s12, 2
        // Predicated region
        $region41: #{tpu_custom_call.1} parent=39 // pred_check
          %p5417 = pneg %p128
        $region42: #{tpu_custom_call.1} parent=39 // pred_check_branch
          %5419 = sbr.rel (%p5417) target = $region44
        $region43: #{tpu_custom_call.1} parent=39 // pred_region
          %s5420 = sand.u32 %s113, 1
          %s5421 = scalar_lea.sflag [#allocation3], %s5420
          %s5422 = sand.u32 %s113, 1
          %s5423 = smul.addr %s5422, 256
          %s5424 = scalar_lea.vmem [#allocation2], %s5423
          %5425 = dma.done %s5421, 4096
        $region44: #{tpu_custom_call.1} parent=39 // pred_fallthru
          _
      $region40: #{tpu_custom_call.1} parent=5 // pred_fallthru
        _
    $region6: #{tpu_custom_call.1} parent=1 // loop_footer
      %s16 = sadd.s32 1, %s12
    $region7: #{tpu_custom_call.1} parent=1 // loop_footer_branch
      %11 = sbr.rel target = $region3
    $region8: #{tpu_custom_call.1} parent=1 // loop_exit
      _
    %5426 = vsyncpa [#allocation3], 1
    %s5427 = scalar_lea.sflag [#allocation3], 1
    %5428 = vsyncpa %s5427, 1

</llo_original>
